<compile_context>
chip_gen: v6e
topology: v6e:2x2x1
jax: 0.10.0
libtpu: 0.0.40
codegen_flags: <defaults>
</compile_context>

<pallas_src>
import functools

import jax
import jax.numpy as jnp
from jax.experimental import pallas as pl
from jax.experimental.pallas import tpu as pltpu

HIDDEN = 512          # SimpleBody feature size and adv1/val1 width
ATOMS = 51            # distributional atoms
_NEG = -1e30          # "-inf" for padded softmax lanes (kept finite -> no NaNs)


def _round_up(n, m):
    return ((n + m - 1) // m) * m


def _device_kind():
    try:
        return jax.devices()[0].device_kind.lower()
    except Exception:
        return ""


_KIND = _device_kind()
_IS_V5 = "v5" in _KIND                                    # no bf16 VALU
_IS_V7 = ("v7" in _KIND) or ("tpu7" in _KIND) or ("7x" in _KIND)  # 2 TCs/chip


# ----------------------------------------------------------------------------
# Pallas kernel: body -> fused hidden layer -> combined dueling head -> softmax
# ----------------------------------------------------------------------------
def _dueling_dqn_kernel(x_ref, w1_ref, b1_ref, wh_ref, bh_ref, wc_ref, bc_ref,
                        out_ref, *, num_actions, ap, ew_dtype):
    # SimpleBody: relu(x @ W1 + b1) — bf16 MXU operands, f32 accumulation.
    # Bias + ReLU in ew_dtype (bf16 on v6e/v7x, f32 on v5e).
    feat = jnp.dot(x_ref[...], w1_ref[...], preferred_element_type=jnp.float32)
    feat = jnp.maximum(feat.astype(ew_dtype) + b1_ref[...], 0.0)
    feat = feat.astype(jnp.bfloat16)

    # adv1|val1 fused: h = relu(feat @ [Wadv1|Wval1] + [badv1|bval1]) -> [tb, 1024]
    h = jnp.dot(feat, wh_ref[...], preferred_element_type=jnp.float32)
    h = jnp.maximum(h.astype(ew_dtype) + bh_ref[...], 0.0)
    h = h.astype(jnp.bfloat16)

    # Dueling combine folded into the MXU: one matmul gives the pre-softmax
    # logits  f_a = val + adv_a - mean_a'(adv_a')  for every action at once.
    f = jnp.dot(h, wc_ref[...], preferred_element_type=jnp.float32)
    f = f + bc_ref[...]                        # [tb, A*ap] f32; pad lanes ~ -1e30

    # Per-action softmax over the atom lanes (pad lanes -> exp == 0 exactly).
    probs = []
    for a in range(num_actions):
        fa = f[:, a * ap:(a + 1) * ap]
        fa = fa - jnp.max(fa, axis=-1, keepdims=True)
        e = jnp.exp(fa)
        probs.append(e * pl.reciprocal(jnp.sum(e, axis=-1, keepdims=True),
                                       approx=True))

    # Single lane-dense store of the whole [tb, A*ap] tile.
    out_ref[...] = jnp.concatenate(probs, axis=-1).astype(out_ref.dtype)


# ----------------------------------------------------------------------------
# Wrapper: weight packing/padding/casting + one pallas_call, grid over batch
# ----------------------------------------------------------------------------
def categorical_dueling_dqn(x, params, *, num_actions, atoms=ATOMS, tb=None):
    B, D = x.shape
    A = num_actions
    ap = _round_up(atoms, 64)                 # per-action lane-padded width (64)
    ew_dtype = jnp.float32 if _IS_V5 else jnp.bfloat16

    # --- pack / pad / cast weights (plain JAX, outside the kernel) ------------
    w1 = params["w1"].astype(jnp.bfloat16)
    b1 = params["b1"].astype(ew_dtype)
    wh = jnp.concatenate([params["wadv1"], params["wval1"]], axis=1).astype(jnp.bfloat16)
    bh = jnp.concatenate([params["badv1"], params["bval1"]], axis=1).astype(ew_dtype)

    # Combined dueling head:
    #   f_a = h_adv @ (wadv2_a - mean_a'(wadv2)) + h_val @ wval2
    #         + (badv2_a - mean(badv2) + bval2)
    wadv2 = params["wadv2"].reshape(HIDDEN, A, atoms)
    badv2 = params["badv2"].reshape(A, atoms)
    wadv2_c = wadv2 - jnp.mean(wadv2, axis=1, keepdims=True)
    badv2_c = badv2 - jnp.mean(badv2, axis=0, keepdims=True)
    wval2 = params["wval2"]                                   # [512, atoms]
    bval2 = params["bval2"].reshape(atoms)

    wc = jnp.zeros((2 * HIDDEN, A, ap), jnp.float32)          # pad cols stay 0
    wc = wc.at[:HIDDEN, :, :atoms].set(wadv2_c)
    wc = wc.at[HIDDEN:, :, :atoms].set(
        jnp.broadcast_to(wval2[:, None, :], (HIDDEN, A, atoms)))
    wc = wc.reshape(2 * HIDDEN, A * ap).astype(jnp.bfloat16)

    bc = jnp.full((A, ap), _NEG, jnp.float32)                 # pad bias -> -1e30
    bc = bc.at[:, :atoms].set(badv2_c + bval2[None, :])
    bc = bc.reshape(1, A * ap)

    # --- batch tiling ---------------------------------------------------------
    if tb is None:
        if _IS_V7 and B > 8:
            # >= 2 grid steps so the "parallel" axis shards across both TCs.
            tb = min(512, _round_up((B + 1) // 2, 8))
        else:
            tb = min(512, _round_up(B, 8))
    Bp = _round_up(B, tb)

    x = x.astype(jnp.bfloat16)                # halve x DMA bytes; no in-kernel cast
    if Bp != B:
        x = jnp.pad(x, ((0, Bp - B), (0, 0)))

    grid = (Bp // tb,)
    kernel = functools.partial(_dueling_dqn_kernel,
                               num_actions=A, ap=ap, ew_dtype=ew_dtype)

    cost = pl.CostEstimate(
        flops=int(2 * Bp * (D * HIDDEN + HIDDEN * 2 * HIDDEN + 2 * HIDDEN * A * ap)),
        transcendentals=int(Bp * A * (ap + 1)),
        bytes_accessed=int(2 * (x.size + w1.size + wh.size + wc.size)
                           + 4 * (b1.size + bh.size + bc.size + Bp * A * ap)),
    )

    out_flat = pl.pallas_call(
        kernel,
        out_shape=jax.ShapeDtypeStruct((Bp, A * ap), jnp.float32),
        grid=grid,
        in_specs=[
            pl.BlockSpec((tb, D), lambda i: (i, 0)),               # x (bf16)
            pl.BlockSpec((D, HIDDEN), lambda i: (0, 0)),           # w1 (bf16)
            pl.BlockSpec((1, HIDDEN), lambda i: (0, 0)),           # b1
            pl.BlockSpec((HIDDEN, 2 * HIDDEN), lambda i: (0, 0)),  # [Wadv1|Wval1] bf16
            pl.BlockSpec((1, 2 * HIDDEN), lambda i: (0, 0)),       # fused bias
            pl.BlockSpec((2 * HIDDEN, A * ap), lambda i: (0, 0)),  # W_comb (bf16)
            pl.BlockSpec((1, A * ap), lambda i: (0, 0)),           # b_comb (f32, -1e30 pads)
        ],
        out_specs=pl.BlockSpec((tb, A * ap), lambda i: (i, 0)),
        compiler_params=pltpu.CompilerParams(
            dimension_semantics=("parallel",)),
        cost_estimate=cost,
    )(x, w1, b1, wh, bh, wc, bc)

    # Un-pad: [Bp, A*ap] -> [B, A, atoms] (cheap XLA reshape/slice outside kernel).
    return out_flat.reshape(Bp, A, ap)[:B, :, :atoms]


# ----------------------------------------------------------------------------
# Deterministic synthetic parameters (PyTorch-Linear-like uniform init)
# ----------------------------------------------------------------------------
def init_params(key, d_in, num_actions, atoms=ATOMS):
    ks = jax.random.split(key, 10)

    def u(k, shape, fan_in):
        bound = 1.0 / jnp.sqrt(jnp.float32(fan_in))
        return jax.random.uniform(k, shape, jnp.float32, -bound, bound)

    return {
        "w1":    u(ks[0], (d_in, HIDDEN), d_in),
        "b1":    u(ks[1], (1, HIDDEN), d_in),
        "wadv1": u(ks[2], (HIDDEN, HIDDEN), HIDDEN),
        "badv1": u(ks[3], (1, HIDDEN), HIDDEN),
        "wadv2": u(ks[4], (HIDDEN, num_actions * atoms), HIDDEN),
        "badv2": u(ks[5], (1, num_actions * atoms), HIDDEN),
        "wval1": u(ks[6], (HIDDEN, HIDDEN), HIDDEN),
        "bval1": u(ks[7], (1, HIDDEN), HIDDEN),
        "wval2": u(ks[8], (HIDDEN, atoms), HIDDEN),
        "bval2": u(ks[9], (1, atoms), HIDDEN),
    }


# Pure-JAX f32 reference (matches the PyTorch forward semantics exactly)
def reference(x, p, num_actions, atoms=ATOMS):
    feat = jax.nn.relu(x @ p["w1"] + p["b1"][0])
    h_adv = jax.nn.relu(feat @ p["wadv1"] + p["badv1"][0])
    h_val = jax.nn.relu(feat @ p["wval1"] + p["bval1"][0])
    adv = (h_adv @ p["wadv2"] + p["badv2"][0]).reshape(-1, num_actions, atoms)
    val = (h_val @ p["wval2"] + p["bval2"][0]).reshape(-1, 1, atoms)
    final = val + adv - adv.mean(axis=1, keepdims=True)
    return jax.nn.softmax(final, axis=2)


if __name__ == "__main__":
    B, D_IN, NUM_ACTIONS = 32, 16, 4

    key = jax.random.PRNGKey(0)
    k_x, k_p = jax.random.split(key)
    x = jax.random.normal(k_x, (B, D_IN), jnp.float32)
    params = init_params(k_p, D_IN, NUM_ACTIONS, ATOMS)

    out = categorical_dueling_dqn(x, params, num_actions=NUM_ACTIONS, atoms=ATOMS)
    out = jax.block_until_ready(out)

    ref = reference(x, params, NUM_ACTIONS, ATOMS)
    assert out.shape == (B, NUM_ACTIONS, ATOMS)
    # bf16 MXU operands + approx reciprocal -> loosened tolerances vs f32 ref.
    assert jnp.allclose(jnp.sum(out, axis=-1), 1.0, atol=5e-3)
    assert jnp.allclose(out, ref, atol=1e-2, rtol=5e-2)

    print("KERNEL_OK")
</pallas_src>

<mosaic_0001>
module attributes {stable_mosaic.version = 11 : i64} {
  func.func @_dueling_dqn_kernel(%arg0: i32, %arg1: memref<32x16xbf16, #tpu.memory_space<vmem>>, %arg2: memref<16x512xbf16, #tpu.memory_space<vmem>>, %arg3: memref<1x512xbf16, #tpu.memory_space<vmem>>, %arg4: memref<512x1024xbf16, #tpu.memory_space<vmem>>, %arg5: memref<1x1024xbf16, #tpu.memory_space<vmem>>, %arg6: memref<1024x256xbf16, #tpu.memory_space<vmem>>, %arg7: memref<1x256xf32, #tpu.memory_space<vmem>>, %arg8: memref<32x256xf32, #tpu.memory_space<vmem>>) attributes {dimension_semantics = [#tpu.dimension_semantics<parallel>], iteration_bounds = array<i64: 1>, scalar_prefetch = 0 : i64, scratch_operands = 0 : i64, tpu.core_type = #tpu.core_type<tc>, window_params = [{transform_indices = @transform_0, window_bounds = array<i64: 32, 16>}, {pipeline_mode = #tpu.pipeline_mode<synchronous>, transform_indices = @transform_1, window_bounds = array<i64: 16, 512>}, {pipeline_mode = #tpu.pipeline_mode<synchronous>, transform_indices = @transform_2, window_bounds = array<i64: 1, 512>}, {pipeline_mode = #tpu.pipeline_mode<synchronous>, transform_indices = @transform_3, window_bounds = array<i64: 512, 1024>}, {pipeline_mode = #tpu.pipeline_mode<synchronous>, transform_indices = @transform_4, window_bounds = array<i64: 1, 1024>}, {pipeline_mode = #tpu.pipeline_mode<synchronous>, transform_indices = @transform_5, window_bounds = array<i64: 1024, 256>}, {pipeline_mode = #tpu.pipeline_mode<synchronous>, transform_indices = @transform_6, window_bounds = array<i64: 1, 256>}, {transform_indices = @transform_7, window_bounds = array<i64: 32, 256>}]} {
    %c0 = arith.constant 0 : index
    %c0_0 = arith.constant 0 : index
    %0 = vector.load %arg1[%c0, %c0_0] : memref<32x16xbf16, #tpu.memory_space<vmem>>, vector<32x16xbf16>
    %c0_1 = arith.constant 0 : index
    %c0_2 = arith.constant 0 : index
    %1 = vector.load %arg2[%c0_1, %c0_2] : memref<16x512xbf16, #tpu.memory_space<vmem>>, vector<16x512xbf16>
    %cst = arith.constant dense<0.000000e+00> : vector<32x512xf32>
    %2 = tpu.matmul %0, %1, %cst {dimension_numbers = #tpu.dot_dimension_numbers<[1], [0], [0], [1], [0, 0, 1, 1], [], []>} : vector<32x16xbf16>, vector<16x512xbf16>, vector<32x512xf32> -> vector<32x512xf32>
    %3 = arith.truncf %2 : vector<32x512xf32> to vector<32x512xbf16>
    %c0_3 = arith.constant 0 : index
    %c0_4 = arith.constant 0 : index
    %4 = vector.load %arg3[%c0_3, %c0_4] : memref<1x512xbf16, #tpu.memory_space<vmem>>, vector<1x512xbf16>
    %5 = vector.broadcast %4 : vector<1x512xbf16> to vector<32x512xbf16>
    %6 = arith.addf %3, %5 : vector<32x512xbf16>
    %cst_5 = arith.constant 0.000000e+00 : bf16
    %7 = vector.broadcast %cst_5 : bf16 to vector<32x512xbf16>
    %8 = arith.maximumf %6, %7 : vector<32x512xbf16>
    %c0_6 = arith.constant 0 : index
    %c0_7 = arith.constant 0 : index
    %9 = vector.load %arg4[%c0_6, %c0_7] : memref<512x1024xbf16, #tpu.memory_space<vmem>>, vector<512x1024xbf16>
    %cst_8 = arith.constant dense<0.000000e+00> : vector<32x1024xf32>
    %10 = tpu.matmul %8, %9, %cst_8 {dimension_numbers = #tpu.dot_dimension_numbers<[1], [0], [0], [1], [0, 0, 1, 1], [], []>} : vector<32x512xbf16>, vector<512x1024xbf16>, vector<32x1024xf32> -> vector<32x1024xf32>
    %11 = arith.truncf %10 : vector<32x1024xf32> to vector<32x1024xbf16>
    %c0_9 = arith.constant 0 : index
    %c0_10 = arith.constant 0 : index
    %12 = vector.load %arg5[%c0_9, %c0_10] : memref<1x1024xbf16, #tpu.memory_space<vmem>>, vector<1x1024xbf16>
    %13 = vector.broadcast %12 : vector<1x1024xbf16> to vector<32x1024xbf16>
    %14 = arith.addf %11, %13 : vector<32x1024xbf16>
    %cst_11 = arith.constant 0.000000e+00 : bf16
    %15 = vector.broadcast %cst_11 : bf16 to vector<32x1024xbf16>
    %16 = arith.maximumf %14, %15 : vector<32x1024xbf16>
    %c0_12 = arith.constant 0 : index
    %c0_13 = arith.constant 0 : index
    %17 = vector.load %arg6[%c0_12, %c0_13] : memref<1024x256xbf16, #tpu.memory_space<vmem>>, vector<1024x256xbf16>
    %cst_14 = arith.constant dense<0.000000e+00> : vector<32x256xf32>
    %18 = tpu.matmul %16, %17, %cst_14 {dimension_numbers = #tpu.dot_dimension_numbers<[1], [0], [0], [1], [0, 0, 1, 1], [], []>} : vector<32x1024xbf16>, vector<1024x256xbf16>, vector<32x256xf32> -> vector<32x256xf32>
    %c0_15 = arith.constant 0 : index
    %c0_16 = arith.constant 0 : index
    %19 = vector.load %arg7[%c0_15, %c0_16] : memref<1x256xf32, #tpu.memory_space<vmem>>, vector<1x256xf32>
    %20 = vector.broadcast %19 : vector<1x256xf32> to vector<32x256xf32>
    %21 = arith.addf %18, %20 : vector<32x256xf32>
    %22 = vector.extract_strided_slice %21 {offsets = [0, 0], sizes = [32, 64], strides = [1, 1]} : vector<32x256xf32> to vector<32x64xf32>
    %cst_17 = arith.constant dense<0xFF800000> : vector<32xf32>
    %23 = vector.multi_reduction <maximumf>, %22, %cst_17 [1] : vector<32x64xf32> to vector<32xf32>
    %24 = vector.shape_cast %23 : vector<32xf32> to vector<32x1xf32>
    %25 = vector.broadcast %24 : vector<32x1xf32> to vector<32x64xf32>
    %26 = arith.subf %22, %25 : vector<32x64xf32>
    %27 = math.exp %26 : vector<32x64xf32>
    %cst_18 = arith.constant dense<0.000000e+00> : vector<32xf32>
    %28 = vector.multi_reduction <add>, %27, %cst_18 [1] : vector<32x64xf32> to vector<32xf32>
    %29 = vector.shape_cast %28 : vector<32xf32> to vector<32x1xf32>
    %30 = tpu.reciprocal %29 {approx = true} : vector<32x1xf32> -> vector<32x1xf32>
    %31 = vector.broadcast %30 : vector<32x1xf32> to vector<32x64xf32>
    %32 = arith.mulf %27, %31 : vector<32x64xf32>
    %33 = vector.extract_strided_slice %21 {offsets = [0, 64], sizes = [32, 64], strides = [1, 1]} : vector<32x256xf32> to vector<32x64xf32>
    %cst_19 = arith.constant dense<0xFF800000> : vector<32xf32>
    %34 = vector.multi_reduction <maximumf>, %33, %cst_19 [1] : vector<32x64xf32> to vector<32xf32>
    %35 = vector.shape_cast %34 : vector<32xf32> to vector<32x1xf32>
    %36 = vector.broadcast %35 : vector<32x1xf32> to vector<32x64xf32>
    %37 = arith.subf %33, %36 : vector<32x64xf32>
    %38 = math.exp %37 : vector<32x64xf32>
    %cst_20 = arith.constant dense<0.000000e+00> : vector<32xf32>
    %39 = vector.multi_reduction <add>, %38, %cst_20 [1] : vector<32x64xf32> to vector<32xf32>
    %40 = vector.shape_cast %39 : vector<32xf32> to vector<32x1xf32>
    %41 = tpu.reciprocal %40 {approx = true} : vector<32x1xf32> -> vector<32x1xf32>
    %42 = vector.broadcast %41 : vector<32x1xf32> to vector<32x64xf32>
    %43 = arith.mulf %38, %42 : vector<32x64xf32>
    %44 = vector.extract_strided_slice %21 {offsets = [0, 128], sizes = [32, 64], strides = [1, 1]} : vector<32x256xf32> to vector<32x64xf32>
    %cst_21 = arith.constant dense<0xFF800000> : vector<32xf32>
    %45 = vector.multi_reduction <maximumf>, %44, %cst_21 [1] : vector<32x64xf32> to vector<32xf32>
    %46 = vector.shape_cast %45 : vector<32xf32> to vector<32x1xf32>
    %47 = vector.broadcast %46 : vector<32x1xf32> to vector<32x64xf32>
    %48 = arith.subf %44, %47 : vector<32x64xf32>
    %49 = math.exp %48 : vector<32x64xf32>
    %cst_22 = arith.constant dense<0.000000e+00> : vector<32xf32>
    %50 = vector.multi_reduction <add>, %49, %cst_22 [1] : vector<32x64xf32> to vector<32xf32>
    %51 = vector.shape_cast %50 : vector<32xf32> to vector<32x1xf32>
    %52 = tpu.reciprocal %51 {approx = true} : vector<32x1xf32> -> vector<32x1xf32>
    %53 = vector.broadcast %52 : vector<32x1xf32> to vector<32x64xf32>
    %54 = arith.mulf %49, %53 : vector<32x64xf32>
    %55 = vector.extract_strided_slice %21 {offsets = [0, 192], sizes = [32, 64], strides = [1, 1]} : vector<32x256xf32> to vector<32x64xf32>
    %cst_23 = arith.constant dense<0xFF800000> : vector<32xf32>
    %56 = vector.multi_reduction <maximumf>, %55, %cst_23 [1] : vector<32x64xf32> to vector<32xf32>
    %57 = vector.shape_cast %56 : vector<32xf32> to vector<32x1xf32>
    %58 = vector.broadcast %57 : vector<32x1xf32> to vector<32x64xf32>
    %59 = arith.subf %55, %58 : vector<32x64xf32>
    %60 = math.exp %59 : vector<32x64xf32>
    %cst_24 = arith.constant dense<0.000000e+00> : vector<32xf32>
    %61 = vector.multi_reduction <add>, %60, %cst_24 [1] : vector<32x64xf32> to vector<32xf32>
    %62 = vector.shape_cast %61 : vector<32xf32> to vector<32x1xf32>
    %63 = tpu.reciprocal %62 {approx = true} : vector<32x1xf32> -> vector<32x1xf32>
    %64 = vector.broadcast %63 : vector<32x1xf32> to vector<32x64xf32>
    %65 = arith.mulf %60, %64 : vector<32x64xf32>
    %66 = tpu.concatenate %32, %43, %54, %65 in 1 : vector<32x64xf32>, vector<32x64xf32>, vector<32x64xf32>, vector<32x64xf32> -> vector<32x256xf32>
    %c0_25 = arith.constant 0 : index
    %c0_26 = arith.constant 0 : index
    %67 = vector.load %arg8[%c0_25, %c0_26] : memref<32x256xf32, #tpu.memory_space<vmem>>, vector<32x256xf32>
    tpu.vector_store %arg8[%c0_25, %c0_26], %66 {strides = array<i32>} : memref<32x256xf32, #tpu.memory_space<vmem>>, vector<32x256xf32>,
    return
  }
  func.func @transform_0(%arg0: i32) -> (i32, i32) {
    %c0_i32 = arith.constant 0 : i32
    %c0_i32_0 = arith.constant 0 : i32
    return %arg0, %c0_i32 : i32, i32
  }
  func.func @transform_1(%arg0: i32) -> (i32, i32) {
    %c0_i32 = arith.constant 0 : i32
    %c0_i32_0 = arith.constant 0 : i32
    %c0_i32_1 = arith.constant 0 : i32
    return %c0_i32, %c0_i32_0 : i32, i32
  }
  func.func @transform_2(%arg0: i32) -> (i32, i32) {
    %c0_i32 = arith.constant 0 : i32
    %c0_i32_0 = arith.constant 0 : i32
    %c0_i32_1 = arith.constant 0 : i32
    return %c0_i32, %c0_i32_0 : i32, i32
  }
  func.func @transform_3(%arg0: i32) -> (i32, i32) {
    %c0_i32 = arith.constant 0 : i32
    %c0_i32_0 = arith.constant 0 : i32
    %c0_i32_1 = arith.constant 0 : i32
    return %c0_i32, %c0_i32_0 : i32, i32
  }
  func.func @transform_4(%arg0: i32) -> (i32, i32) {
    %c0_i32 = arith.constant 0 : i32
    %c0_i32_0 = arith.constant 0 : i32
    %c0_i32_1 = arith.constant 0 : i32
    return %c0_i32, %c0_i32_0 : i32, i32
  }
  func.func @transform_5(%arg0: i32) -> (i32, i32) {
    %c0_i32 = arith.constant 0 : i32
    %c0_i32_0 = arith.constant 0 : i32
    %c0_i32_1 = arith.constant 0 : i32
    return %c0_i32, %c0_i32_0 : i32, i32
  }
  func.func @transform_6(%arg0: i32) -> (i32, i32) {
    %c0_i32 = arith.constant 0 : i32
    %c0_i32_0 = arith.constant 0 : i32
    %c0_i32_1 = arith.constant 0 : i32
    return %c0_i32, %c0_i32_0 : i32, i32
  }
  func.func @transform_7(%arg0: i32) -> (i32, i32) {
    %c0_i32 = arith.constant 0 : i32
    %c0_i32_0 = arith.constant 0 : i32
    return %arg0, %c0_i32 : i32, i32
  }
}

</mosaic_0001>

<llo_original>
// kernel: tpu_custom_call.1
$region0: #{tpu_custom_call.1}
  #allocation0 [shape = 'u32[]', space=smem, size = 0x4, offset = 0x4, fixed_abs, tag = 'smem constant byte address 0x4 - core index']
  #allocation1 [shape = 'u32[144,128]{1,0:T(1,128)}', space=vmem, size = 0x12000, scoped, tag = 'internal scratch']
  %s0 = inlined_call_operand.vmem [shape: bf16[32,16], index: 0, kind: input, shape index: {}]
  %s1 = inlined_call_operand.hbm [shape: bf16[16,512], index: 1, kind: input, shape index: {}]
  %s2 = inlined_call_operand.vmem [shape: bf16[1,512], index: 2, kind: input, shape index: {}]
  %s3 = inlined_call_operand.hbm [shape: bf16[512,1024], index: 3, kind: input, shape index: {}]
  %s4 = inlined_call_operand.vmem [shape: bf16[1,1024], index: 4, kind: input, shape index: {}]
  %s5 = inlined_call_operand.hbm [shape: bf16[1024,256], index: 5, kind: input, shape index: {}]
  %s6 = inlined_call_operand.vmem [shape: f32[1,256], index: 6, kind: input, shape index: {}]
  %s7 = inlined_call_operand.hbm [shape: f32[32,256], index: 7, kind: output, shape index: {}]
  %s8 = sld [smem:[#allocation0]]
  $region50: #{tpu_custom_call.1} parent=0
    _
  %s10 = ssub.s32 1, %s8
  %s11 = scalar_select 0, %s10, %s8
  $region1: #{tpu_custom_call.1} parent=0
    #allocation2 [shape = 'u8[16384]{0}', space=vmem, size = 0x4000, scoped, tag = 'input window, operand 1, single buffered']
    #allocation3 [shape = 's32[1]{0}', space=sflag, size = 0x4, scoped, tag = 'scoped memory for tpu_custom_call.1']
    #allocation4 [shape = 's32[1]{0}', space=sflag, size = 0x4, scoped, tag = 'scoped memory for tpu_custom_call.1']
    #allocation5 [shape = 'u8[1048576]{0}', space=vmem, size = 0x100000, scoped, tag = 'input window, operand 3, single buffered']
    #allocation6 [shape = 's32[1]{0}', space=sflag, size = 0x4, scoped, tag = 'scoped memory for tpu_custom_call.1']
    #allocation7 [shape = 'u8[524288]{0}', space=vmem, size = 0x80000, scoped, tag = 'input window, operand 5, single buffered']
    #allocation8 [shape = 'u8[32768]{0}', space=vmem, size = 0x8000, scoped, tag = 'output window, operand 0, single buffered']
    %12 = vsyncpa [#allocation3], 0
    %13 = vsyncpa [#allocation6], 0
    %14 = vsyncpa [#allocation4], 0
    // Predicated region
    $region2: #{tpu_custom_call.1} parent=1 // pred_check
      _
    $region3: #{tpu_custom_call.1} parent=1 // pred_check_branch
      %16 = sbr.rel (0) target = $region5
    $region4: #{tpu_custom_call.1} parent=1 // pred_region
      _
    $region5: #{tpu_custom_call.1} parent=1 // pred_fallthru
      _
    // Predicated region
    $region6: #{tpu_custom_call.1} parent=1 // pred_check
      _
    $region7: #{tpu_custom_call.1} parent=1 // pred_check_branch
      %18 = sbr.rel (0) target = $region9
    $region8: #{tpu_custom_call.1} parent=1 // pred_region
      %s20 = ssub.s32 512, 512
      %21 = vsyncadd [#allocation3], %s20
      %s22 = sshll.u32 [#allocation2], 4
      %s23 = int_to_ptr.vmem [resolvable:$true] %s22
      %28 = dma.hbm_to_vmem [thread:$0]  %s1, 512, %s23, [#allocation3], 256, 256, 16
    $region9: #{tpu_custom_call.1} parent=1 // pred_fallthru
      _
    // Predicated region
    $region10: #{tpu_custom_call.1} parent=1 // pred_check
      _
    $region11: #{tpu_custom_call.1} parent=1 // pred_check_branch
      %30 = sbr.rel (0) target = $region13
    $region12: #{tpu_custom_call.1} parent=1 // pred_region
      _
    $region13: #{tpu_custom_call.1} parent=1 // pred_fallthru
      _
    // Predicated region
    $region14: #{tpu_custom_call.1} parent=1 // pred_check
      _
    $region15: #{tpu_custom_call.1} parent=1 // pred_check_branch
      %32 = sbr.rel (0) target = $region17
    $region16: #{tpu_custom_call.1} parent=1 // pred_region
      %s34 = ssub.s32 32768, 32768
      %35 = vsyncadd [#allocation6], %s34
      %s36 = sshll.u32 [#allocation5], 4
      %s37 = int_to_ptr.vmem [resolvable:$true] %s36
      %42 = dma.hbm_to_vmem [thread:$0]  %s3, 32768, %s37, [#allocation6], 512, 512, 32
    $region17: #{tpu_custom_call.1} parent=1 // pred_fallthru
      _
    // Predicated region
    $region18: #{tpu_custom_call.1} parent=1 // pred_check
      _
    $region19: #{tpu_custom_call.1} parent=1 // pred_check_branch
      %44 = sbr.rel (0) target = $region21
    $region20: #{tpu_custom_call.1} parent=1 // pred_region
      _
    $region21: #{tpu_custom_call.1} parent=1 // pred_fallthru
      _
    // Predicated region
    $region22: #{tpu_custom_call.1} parent=1 // pred_check
      _
    $region23: #{tpu_custom_call.1} parent=1 // pred_check_branch
      %46 = sbr.rel (0) target = $region25
    $region24: #{tpu_custom_call.1} parent=1 // pred_region
      %s48 = ssub.s32 16384, 16384
      %49 = vsyncadd [#allocation6], %s48
      %s50 = sshll.u32 [#allocation7], 4
      %s51 = int_to_ptr.vmem [resolvable:$true] %s50
      %56 = dma.hbm_to_vmem [thread:$0]  %s5, 16384, %s51, [#allocation6], 128, 128, 8
    $region25: #{tpu_custom_call.1} parent=1 // pred_fallthru
      _
    // Predicated region
    $region26: #{tpu_custom_call.1} parent=1 // pred_check
      _
    $region27: #{tpu_custom_call.1} parent=1 // pred_check_branch
      %58 = sbr.rel (0) target = $region29
    $region28: #{tpu_custom_call.1} parent=1 // pred_region
      _
    $region29: #{tpu_custom_call.1} parent=1 // pred_fallthru
      _
    // Predicated region
    $region30: #{tpu_custom_call.1} parent=1 // pred_check
      _
    $region31: #{tpu_custom_call.1} parent=1 // pred_check_branch
      %60 = sbr.rel (0) target = $region33
    $region32: #{tpu_custom_call.1} parent=1 // pred_region
      %61 = dma.done [#allocation3], 512
    $region33: #{tpu_custom_call.1} parent=1 // pred_fallthru
      _
    // Predicated region
    $region34: #{tpu_custom_call.1} parent=1 // pred_check
      _
    $region35: #{tpu_custom_call.1} parent=1 // pred_check_branch
      %63 = sbr.rel (0) target = $region37
    $region36: #{tpu_custom_call.1} parent=1 // pred_region
      %64 = dma.done [#allocation6], 32768
    $region37: #{tpu_custom_call.1} parent=1 // pred_fallthru
      _
    // Predicated region
    $region38: #{tpu_custom_call.1} parent=1 // pred_check
      _
    $region39: #{tpu_custom_call.1} parent=1 // pred_check_branch
      %66 = sbr.rel (0) target = $region41
    $region40: #{tpu_custom_call.1} parent=1 // pred_region
      %67 = dma.done [#allocation6], 16384
    $region41: #{tpu_custom_call.1} parent=1 // pred_fallthru
      _
    %v69 = vld [vmem:[%s0] sm:$0xf]
    %v70 = vld [vmem:[%s0 + $0x4] sm:$0xf]
    %v71 = vld [vmem:[%s0 + $0x8] sm:$0xf]
    %v72 = vld [vmem:[%s0 + $0xc] sm:$0xf]
    %v73 = vld [vmem:[#allocation2] sm:$0xff]
    %v74 = vld [vmem:[#allocation2 + $0x8] sm:$0xff]
    %v75 = vld [vmem:[#allocation2 + $0x10] sm:$0xff]
    %v76 = vld [vmem:[#allocation2 + $0x18] sm:$0xff]
    %v81 = vunpack.c.l.b16 %v69
    %v82 = vunpack.c.l.b16 %v70
    %v83 = vunpack.c.l.b16 %v71
    %v84 = vunpack.c.l.b16 %v72
    %v85 = vpack.c.b16 %v82, %v81
    %v86 = vpack.c.b16 %v84, %v83
    %v91 = vunpack.c.l.b16 %v73
    %v92 = vunpack.c.h.b16 %v73
    %v93 = vunpack.c.l.b16 %v74
    %v94 = vunpack.c.h.b16 %v74
    %v95 = vunpack.c.l.b16 %v75
    %v96 = vunpack.c.h.b16 %v75
    %v97 = vunpack.c.l.b16 %v76
    %v98 = vunpack.c.h.b16 %v76
    %v99 = vpack.c.b16 %v95, %v91
    %v100 = vpack.c.b16 %v96, %v92
    %v101 = vpack.c.b16 %v97, %v93
    %v102 = vpack.c.b16 %v98, %v94
    %vm107 = vcmask 130048
    %v109 = vsel %vm107, %v85, 0
    %v112 = vsel %vm107, %v86, 0
    %114 = vmatprep.subr.bf16.mxu0 0
    %115 = vmatpush1.bf16.msra.mxu0 0
    %116 = vmatprep.subr.bf16.mxu0 0
    %117 = vmatpush1.bf16.msra.mxu0 0
    %118 = vmatprep.subr.bf16.mxu0 0
    %119 = vmatpush1.bf16.msra.mxu0 0
    %120 = vmatprep.subr.bf16.mxu0 0
    %121 = vmatpush1.bf16.msra.mxu0 0
    %122 = vmatprep.subr.bf16.mxu0 0
    %123 = vmatpush1.bf16.msra.mxu0 0
    %124 = vmatprep.subr.bf16.mxu0 0
    %125 = vmatpush1.bf16.msra.mxu0 0
    %126 = vmatprep.subr.bf16.mxu0 0
    %127 = vmatpush1.bf16.msra.mxu0 0
    %128 = vmatprep.subr.bf16.mxu0 %v100
    %129 = vmatpush1.bf16.msra.mxu0 %v99
    %130 = vmatprep.subr.bf16.mxu0 0
    %131 = vmatpush2.bf16.msra.mxu0 0
    %132 = vmatprep.subr.bf16.mxu0 0
    %133 = vmatpush2.bf16.msra.mxu0 0
    %134 = vmatprep.subr.bf16.mxu0 0
    %135 = vmatpush2.bf16.msra.mxu0 0
    %136 = vmatprep.subr.bf16.mxu0 0
    %137 = vmatpush2.bf16.msra.mxu0 0
    %138 = vmatprep.subr.bf16.mxu0 0
    %139 = vmatpush2.bf16.msra.mxu0 0
    %140 = vmatprep.subr.bf16.mxu0 0
    %141 = vmatpush2.bf16.msra.mxu0 0
    %142 = vmatprep.subr.bf16.mxu0 0
    %143 = vmatpush2.bf16.msra.mxu0 0
    %144 = vmatprep.subr.bf16.mxu0 0
    %145 = vmatpush2.bf16.msra.mxu0 0
    %146 = vmatprep.mubr.bf16.mxu0 0
    %147 = vmatmul.mubr.bf16.gmra.mxu0 %v109
    %v148 = vpop.f32.mrf.mxu0
    %v149 = vadd.f32 0.0, %v148
    %v150 = vpop.f32.mrf.mxu0
    %v151 = vadd.f32 0.0, %v150
    %v152 = vpop.f32.mrf.mxu0
    %v153 = vadd.f32 0.0, %v152
    %v154 = vpop.f32.mrf.mxu0
    %v155 = vadd.f32 0.0, %v154
    %156 = vmatprep.mubr.bf16.mxu0 0
    %157 = vmatmul.mubr.bf16.gmra.mxu0 %v112
    %v158 = vpop.f32.mrf.mxu0
    %v159 = vadd.f32 0.0, %v158
    %v160 = vpop.f32.mrf.mxu0
    %v161 = vadd.f32 0.0, %v160
    %v162 = vpop.f32.mrf.mxu0
    %v163 = vadd.f32 0.0, %v162
    %v164 = vpop.f32.mrf.mxu0
    %v165 = vadd.f32 0.0, %v164
    %166 = vdwg.mxu0
    %167 = vmatprep.subr.bf16.mxu0 0
    %168 = vmatpush1.bf16.msra.mxu0 0
    %169 = vmatprep.subr.bf16.mxu0 0
    %170 = vmatpush1.bf16.msra.mxu0 0
    %171 = vmatprep.subr.bf16.mxu0 0
    %172 = vmatpush1.bf16.msra.mxu0 0
    %173 = vmatprep.subr.bf16.mxu0 0
    %174 = vmatpush1.bf16.msra.mxu0 0
    %175 = vmatprep.subr.bf16.mxu0 0
    %176 = vmatpush1.bf16.msra.mxu0 0
    %177 = vmatprep.subr.bf16.mxu0 0
    %178 = vmatpush1.bf16.msra.mxu0 0
    %179 = vmatprep.subr.bf16.mxu0 0
    %180 = vmatpush1.bf16.msra.mxu0 0
    %181 = vmatprep.subr.bf16.mxu0 %v102
    %182 = vmatpush1.bf16.msra.mxu0 %v101
    %183 = vmatprep.subr.bf16.mxu0 0
    %184 = vmatpush2.bf16.msra.mxu0 0
    %185 = vmatprep.subr.bf16.mxu0 0
    %186 = vmatpush2.bf16.msra.mxu0 0
    %187 = vmatprep.subr.bf16.mxu0 0
    %188 = vmatpush2.bf16.msra.mxu0 0
    %189 = vmatprep.subr.bf16.mxu0 0
    %190 = vmatpush2.bf16.msra.mxu0 0
    %191 = vmatprep.subr.bf16.mxu0 0
    %192 = vmatpush2.bf16.msra.mxu0 0
    %193 = vmatprep.subr.bf16.mxu0 0
    %194 = vmatpush2.bf16.msra.mxu0 0
    %195 = vmatprep.subr.bf16.mxu0 0
    %196 = vmatpush2.bf16.msra.mxu0 0
    %197 = vmatprep.subr.bf16.mxu0 0
    %198 = vmatpush2.bf16.msra.mxu0 0
    %199 = vmatprep.mubr.bf16.mxu0 0
    %200 = vmatmul.mubr.bf16.gmra.mxu0 %v109
    %v201 = vpop.f32.mrf.mxu0
    %v202 = vadd.f32 0.0, %v201
    %v203 = vpop.f32.mrf.mxu0
    %v204 = vadd.f32 0.0, %v203
    %v205 = vpop.f32.mrf.mxu0
    %v206 = vadd.f32 0.0, %v205
    %v207 = vpop.f32.mrf.mxu0
    %v208 = vadd.f32 0.0, %v207
    %209 = vmatprep.mubr.bf16.mxu0 0
    %210 = vmatmul.mubr.bf16.gmra.mxu0 %v112
    %v211 = vpop.f32.mrf.mxu0
    %v212 = vadd.f32 0.0, %v211
    %v213 = vpop.f32.mrf.mxu0
    %v214 = vadd.f32 0.0, %v213
    %v215 = vpop.f32.mrf.mxu0
    %v216 = vadd.f32 0.0, %v215
    %v217 = vpop.f32.mrf.mxu0
    %v218 = vadd.f32 0.0, %v217
    %219 = vdwg.mxu0
    %v220 = vpack.c.bf16 %v153, %v149
    %v221 = vpack.c.bf16 %v155, %v151
    %v222 = vpack.c.bf16 %v206, %v202
    %v223 = vpack.c.bf16 %v208, %v204
    %v224 = vpack.c.bf16 %v163, %v159
    %v225 = vpack.c.bf16 %v165, %v161
    %v226 = vpack.c.bf16 %v216, %v212
    %v227 = vpack.c.bf16 %v218, %v214
    %v228 = vld [vmem:[%s2] sm:$0xf]
    %v231 = vunpack.c.l.s4 1966171168
    %v232 = vunpack.c.0.s8 %v231
    %v233 = vlaneseq
    %v234 = vshrl.u32 %v233, 7
    %v235 = vsub.s32 %v232, %v234
    %v236 = vrot.slane %v228, %v235
    %v237 = vcombine.high %v236, %v236
    %v239 = vunpack.c.l.s4 1966171168
    %v240 = vunpack.c.0.s8 %v239
    %v241 = vlaneseq
    %v242 = vshrl.u32 %v241, 7
    %v243 = vsub.s32 %v240, %v242
    %v244 = vrot.slane %v236, %v243
    %v246 = vunpack.c.l.s4 1966171168
    %v247 = vunpack.c.0.s8 %v246
    %v248 = vlaneseq
    %v249 = vshrl.u32 %v248, 7
    %v250 = vsub.s32 %v247, %v249
    %v251 = vrot.slane %v237, %v250
    %v252 = vcombine.high %v244, %v244
    %v253 = vcombine.high %v251, %v251
    %v255 = vpack.i.b16 %v244, %v244
    %v257 = vlaneseq
    %v258 = vshrl.u32 %v257, 7
    %v259 = vsub.s32 0, %v258
    %v260 = vrot.slane %v255, %v259
    %v262 = vpack.i.b16 %v251, %v251
    %v264 = vlaneseq
    %v265 = vshrl.u32 %v264, 7
    %v266 = vsub.s32 0, %v265
    %v267 = vrot.slane %v262, %v266
    %v269 = vpack.i.b16 %v252, %v252
    %v271 = vlaneseq
    %v272 = vshrl.u32 %v271, 7
    %v273 = vsub.s32 0, %v272
    %v274 = vrot.slane %v269, %v273
    %v276 = vpack.i.b16 %v253, %v253
    %v278 = vlaneseq
    %v279 = vshrl.u32 %v278, 7
    %v280 = vsub.s32 0, %v279
    %v281 = vrot.slane %v276, %v280
    %v282 = vadd.bf16 %v220, %v260
    %v283 = vadd.bf16 %v221, %v267
    %v284 = vadd.bf16 %v222, %v274
    %v285 = vadd.bf16 %v223, %v281
    %v286 = vadd.bf16 %v224, %v260
    %v287 = vadd.bf16 %v225, %v267
    %v288 = vadd.bf16 %v226, %v274
    %v289 = vadd.bf16 %v227, %v281
    %v290 = vmax.bf16 %v282, 0
    %v291 = vmax.bf16 %v283, 0
    %v292 = vmax.bf16 %v284, 0
    %v293 = vmax.bf16 %v285, 0
    %v294 = vmax.bf16 %v286, 0
    %v295 = vmax.bf16 %v287, 0
    %v296 = vmax.bf16 %v288, 0
    %v297 = vmax.bf16 %v289, 0
    %v298 = vld [vmem:[#allocation5] sm:$0xff]
    %v299 = vld [vmem:[#allocation5 + $0x8] sm:$0xff]
    %v300 = vld [vmem:[#allocation5 + $0x10] sm:$0xff]
    %v301 = vld [vmem:[#allocation5 + $0x18] sm:$0xff]
    %v302 = vld [vmem:[#allocation5 + $0x20] sm:$0xff]
    %v303 = vld [vmem:[#allocation5 + $0x28] sm:$0xff]
    %v304 = vld [vmem:[#allocation5 + $0x30] sm:$0xff]
    %v305 = vld [vmem:[#allocation5 + $0x38] sm:$0xff]
    %v306 = vld [vmem:[#allocation5 + $0x40] sm:$0xff]
    %v307 = vld [vmem:[#allocation5 + $0x48] sm:$0xff]
    %v308 = vld [vmem:[#allocation5 + $0x50] sm:$0xff]
    %v309 = vld [vmem:[#allocation5 + $0x58] sm:$0xff]
    %v310 = vld [vmem:[#allocation5 + $0x60] sm:$0xff]
    %v311 = vld [vmem:[#allocation5 + $0x68] sm:$0xff]
    %v312 = vld [vmem:[#allocation5 + $0x70] sm:$0xff]
    %v313 = vld [vmem:[#allocation5 + $0x78] sm:$0xff]
    %v314 = vld [vmem:[#allocation5 + $0x80] sm:$0xff]
    %v315 = vld [vmem:[#allocation5 + $0x88] sm:$0xff]
    %v316 = vld [vmem:[#allocation5 + $0x90] sm:$0xff]
    %v317 = vld [vmem:[#allocation5 + $0x98] sm:$0xff]
    %v318 = vld [vmem:[#allocation5 + $0xa0] sm:$0xff]
    %v319 = vld [vmem:[#allocation5 + $0xa8] sm:$0xff]
    %v320 = vld [vmem:[#allocation5 + $0xb0] sm:$0xff]
    %v321 = vld [vmem:[#allocation5 + $0xb8] sm:$0xff]
    %v322 = vld [vmem:[#allocation5 + $0xc0] sm:$0xff]
    %v323 = vld [vmem:[#allocation5 + $0xc8] sm:$0xff]
    %v324 = vld [vmem:[#allocation5 + $0xd0] sm:$0xff]
    %v325 = vld [vmem:[#allocation5 + $0xd8] sm:$0xff]
    %v326 = vld [vmem:[#allocation5 + $0xe0] sm:$0xff]
    %v327 = vld [vmem:[#allocation5 + $0xe8] sm:$0xff]
    %v328 = vld [vmem:[#allocation5 + $0xf0] sm:$0xff]
    %v329 = vld [vmem:[#allocation5 + $0xf8] sm:$0xff]
    %v330 = vld [vmem:[#allocation5 + $0x100] sm:$0xff]
    %v331 = vld [vmem:[#allocation5 + $0x108] sm:$0xff]
    %v332 = vld [vmem:[#allocation5 + $0x110] sm:$0xff]
    %v333 = vld [vmem:[#allocation5 + $0x118] sm:$0xff]
    %v334 = vld [vmem:[#allocation5 + $0x120] sm:$0xff]
    %v335 = vld [vmem:[#allocation5 + $0x128] sm:$0xff]
    %v336 = vld [vmem:[#allocation5 + $0x130] sm:$0xff]
    %v337 = vld [vmem:[#allocation5 + $0x138] sm:$0xff]
    %v338 = vld [vmem:[#allocation5 + $0x140] sm:$0xff]
    %v339 = vld [vmem:[#allocation5 + $0x148] sm:$0xff]
    %v340 = vld [vmem:[#allocation5 + $0x150] sm:$0xff]
    %v341 = vld [vmem:[#allocation5 + $0x158] sm:$0xff]
    %v342 = vld [vmem:[#allocation5 + $0x160] sm:$0xff]
    %v343 = vld [vmem:[#allocation5 + $0x168] sm:$0xff]
    %v344 = vld [vmem:[#allocation5 + $0x170] sm:$0xff]
    %v345 = vld [vmem:[#allocation5 + $0x178] sm:$0xff]
    %v346 = vld [vmem:[#allocation5 + $0x180] sm:$0xff]
    %v347 = vld [vmem:[#allocation5 + $0x188] sm:$0xff]
    %v348 = vld [vmem:[#allocation5 + $0x190] sm:$0xff]
    %v349 = vld [vmem:[#allocation5 + $0x198] sm:$0xff]
    %v350 = vld [vmem:[#allocation5 + $0x1a0] sm:$0xff]
    %v351 = vld [vmem:[#allocation5 + $0x1a8] sm:$0xff]
    %v352 = vld [vmem:[#allocation5 + $0x1b0] sm:$0xff]
    %v353 = vld [vmem:[#allocation5 + $0x1b8] sm:$0xff]
    %v354 = vld [vmem:[#allocation5 + $0x1c0] sm:$0xff]
    %v355 = vld [vmem:[#allocation5 + $0x1c8] sm:$0xff]
    %v356 = vld [vmem:[#allocation5 + $0x1d0] sm:$0xff]
    %v357 = vld [vmem:[#allocation5 + $0x1d8] sm:$0xff]
    %v358 = vld [vmem:[#allocation5 + $0x1e0] sm:$0xff]
    %v359 = vld [vmem:[#allocation5 + $0x1e8] sm:$0xff]
    %v360 = vld [vmem:[#allocation5 + $0x1f0] sm:$0xff]
    %v361 = vld [vmem:[#allocation5 + $0x1f8] sm:$0xff]
    %v362 = vld [vmem:[#allocation5 + $0x200] sm:$0xff]
    %v363 = vld [vmem:[#allocation5 + $0x208] sm:$0xff]
    %v364 = vld [vmem:[#allocation5 + $0x210] sm:$0xff]
    %v365 = vld [vmem:[#allocation5 + $0x218] sm:$0xff]
    %v366 = vld [vmem:[#allocation5 + $0x220] sm:$0xff]
    %v367 = vld [vmem:[#allocation5 + $0x228] sm:$0xff]
    %v368 = vld [vmem:[#allocation5 + $0x230] sm:$0xff]
    %v369 = vld [vmem:[#allocation5 + $0x238] sm:$0xff]
    %v370 = vld [vmem:[#allocation5 + $0x240] sm:$0xff]
    %v371 = vld [vmem:[#allocation5 + $0x248] sm:$0xff]
    %v372 = vld [vmem:[#allocation5 + $0x250] sm:$0xff]
    %v373 = vld [vmem:[#allocation5 + $0x258] sm:$0xff]
    %v374 = vld [vmem:[#allocation5 + $0x260] sm:$0xff]
    %v375 = vld [vmem:[#allocation5 + $0x268] sm:$0xff]
    %v376 = vld [vmem:[#allocation5 + $0x270] sm:$0xff]
    %v377 = vld [vmem:[#allocation5 + $0x278] sm:$0xff]
    %v378 = vld [vmem:[#allocation5 + $0x280] sm:$0xff]
    %v379 = vld [vmem:[#allocation5 + $0x288] sm:$0xff]
    %v380 = vld [vmem:[#allocation5 + $0x290] sm:$0xff]
    %v381 = vld [vmem:[#allocation5 + $0x298] sm:$0xff]
    %v382 = vld [vmem:[#allocation5 + $0x2a0] sm:$0xff]
    %v383 = vld [vmem:[#allocation5 + $0x2a8] sm:$0xff]
    %v384 = vld [vmem:[#allocation5 + $0x2b0] sm:$0xff]
    %v385 = vld [vmem:[#allocation5 + $0x2b8] sm:$0xff]
    %v386 = vld [vmem:[#allocation5 + $0x2c0] sm:$0xff]
    %v387 = vld [vmem:[#allocation5 + $0x2c8] sm:$0xff]
    %v388 = vld [vmem:[#allocation5 + $0x2d0] sm:$0xff]
    %v389 = vld [vmem:[#allocation5 + $0x2d8] sm:$0xff]
    %v390 = vld [vmem:[#allocation5 + $0x2e0] sm:$0xff]
    %v391 = vld [vmem:[#allocation5 + $0x2e8] sm:$0xff]
    %v392 = vld [vmem:[#allocation5 + $0x2f0] sm:$0xff]
    %v393 = vld [vmem:[#allocation5 + $0x2f8] sm:$0xff]
    %v394 = vld [vmem:[#allocation5 + $0x300] sm:$0xff]
    %v395 = vld [vmem:[#allocation5 + $0x308] sm:$0xff]
    %v396 = vld [vmem:[#allocation5 + $0x310] sm:$0xff]
    %v397 = vld [vmem:[#allocation5 + $0x318] sm:$0xff]
    %v398 = vld [vmem:[#allocation5 + $0x320] sm:$0xff]
    %v399 = vld [vmem:[#allocation5 + $0x328] sm:$0xff]
    %v400 = vld [vmem:[#allocation5 + $0x330] sm:$0xff]
    %v401 = vld [vmem:[#allocation5 + $0x338] sm:$0xff]
    %v402 = vld [vmem:[#allocation5 + $0x340] sm:$0xff]
    %v403 = vld [vmem:[#allocation5 + $0x348] sm:$0xff]
    %v404 = vld [vmem:[#allocation5 + $0x350] sm:$0xff]
    %v405 = vld [vmem:[#allocation5 + $0x358] sm:$0xff]
    %v406 = vld [vmem:[#allocation5 + $0x360] sm:$0xff]
    %v407 = vld [vmem:[#allocation5 + $0x368] sm:$0xff]
    %v408 = vld [vmem:[#allocation5 + $0x370] sm:$0xff]
    %v409 = vld [vmem:[#allocation5 + $0x378] sm:$0xff]
    %v410 = vld [vmem:[#allocation5 + $0x380] sm:$0xff]
    %v411 = vld [vmem:[#allocation5 + $0x388] sm:$0xff]
    %v412 = vld [vmem:[#allocation5 + $0x390] sm:$0xff]
    %v413 = vld [vmem:[#allocation5 + $0x398] sm:$0xff]
    %v414 = vld [vmem:[#allocation5 + $0x3a0] sm:$0xff]
    %v415 = vld [vmem:[#allocation5 + $0x3a8] sm:$0xff]
    %v416 = vld [vmem:[#allocation5 + $0x3b0] sm:$0xff]
    %v417 = vld [vmem:[#allocation5 + $0x3b8] sm:$0xff]
    %v418 = vld [vmem:[#allocation5 + $0x3c0] sm:$0xff]
    %v419 = vld [vmem:[#allocation5 + $0x3c8] sm:$0xff]
    %v420 = vld [vmem:[#allocation5 + $0x3d0] sm:$0xff]
    %v421 = vld [vmem:[#allocation5 + $0x3d8] sm:$0xff]
    %v422 = vld [vmem:[#allocation5 + $0x3e0] sm:$0xff]
    %v423 = vld [vmem:[#allocation5 + $0x3e8] sm:$0xff]
    %v424 = vld [vmem:[#allocation5 + $0x3f0] sm:$0xff]
    %v425 = vld [vmem:[#allocation5 + $0x3f8] sm:$0xff]
    %v426 = vld [vmem:[#allocation5 + $0x400] sm:$0xff]
    %v427 = vld [vmem:[#allocation5 + $0x408] sm:$0xff]
    %v428 = vld [vmem:[#allocation5 + $0x410] sm:$0xff]
    %v429 = vld [vmem:[#allocation5 + $0x418] sm:$0xff]
    %v430 = vld [vmem:[#allocation5 + $0x420] sm:$0xff]
    %v431 = vld [vmem:[#allocation5 + $0x428] sm:$0xff]
    %v432 = vld [vmem:[#allocation5 + $0x430] sm:$0xff]
    %v433 = vld [vmem:[#allocation5 + $0x438] sm:$0xff]
    %v434 = vld [vmem:[#allocation5 + $0x440] sm:$0xff]
    %v435 = vld [vmem:[#allocation5 + $0x448] sm:$0xff]
    %v436 = vld [vmem:[#allocation5 + $0x450] sm:$0xff]
    %v437 = vld [vmem:[#allocation5 + $0x458] sm:$0xff]
    %v438 = vld [vmem:[#allocation5 + $0x460] sm:$0xff]
    %v439 = vld [vmem:[#allocation5 + $0x468] sm:$0xff]
    %v440 = vld [vmem:[#allocation5 + $0x470] sm:$0xff]
    %v441 = vld [vmem:[#allocation5 + $0x478] sm:$0xff]
    %v442 = vld [vmem:[#allocation5 + $0x480] sm:$0xff]
    %v443 = vld [vmem:[#allocation5 + $0x488] sm:$0xff]
    %v444 = vld [vmem:[#allocation5 + $0x490] sm:$0xff]
    %v445 = vld [vmem:[#allocation5 + $0x498] sm:$0xff]
    %v446 = vld [vmem:[#allocation5 + $0x4a0] sm:$0xff]
    %v447 = vld [vmem:[#allocation5 + $0x4a8] sm:$0xff]
    %v448 = vld [vmem:[#allocation5 + $0x4b0] sm:$0xff]
    %v449 = vld [vmem:[#allocation5 + $0x4b8] sm:$0xff]
    %v450 = vld [vmem:[#allocation5 + $0x4c0] sm:$0xff]
    %v451 = vld [vmem:[#allocation5 + $0x4c8] sm:$0xff]
    %v452 = vld [vmem:[#allocation5 + $0x4d0] sm:$0xff]
    %v453 = vld [vmem:[#allocation5 + $0x4d8] sm:$0xff]
    %v454 = vld [vmem:[#allocation5 + $0x4e0] sm:$0xff]
    %v455 = vld [vmem:[#allocation5 + $0x4e8] sm:$0xff]
    %v456 = vld [vmem:[#allocation5 + $0x4f0] sm:$0xff]
    %v457 = vld [vmem:[#allocation5 + $0x4f8] sm:$0xff]
    %v458 = vld [vmem:[#allocation5 + $0x500] sm:$0xff]
    %v459 = vld [vmem:[#allocation5 + $0x508] sm:$0xff]
    %v460 = vld [vmem:[#allocation5 + $0x510] sm:$0xff]
    %v461 = vld [vmem:[#allocation5 + $0x518] sm:$0xff]
    %v462 = vld [vmem:[#allocation5 + $0x520] sm:$0xff]
    %v463 = vld [vmem:[#allocation5 + $0x528] sm:$0xff]
    %v464 = vld [vmem:[#allocation5 + $0x530] sm:$0xff]
    %v465 = vld [vmem:[#allocation5 + $0x538] sm:$0xff]
    %v466 = vld [vmem:[#allocation5 + $0x540] sm:$0xff]
    %v467 = vld [vmem:[#allocation5 + $0x548] sm:$0xff]
    %v468 = vld [vmem:[#allocation5 + $0x550] sm:$0xff]
    %v469 = vld [vmem:[#allocation5 + $0x558] sm:$0xff]
    %v470 = vld [vmem:[#allocation5 + $0x560] sm:$0xff]
    %v471 = vld [vmem:[#allocation5 + $0x568] sm:$0xff]
    %v472 = vld [vmem:[#allocation5 + $0x570] sm:$0xff]
    %v473 = vld [vmem:[#allocation5 + $0x578] sm:$0xff]
    %v474 = vld [vmem:[#allocation5 + $0x580] sm:$0xff]
    %v475 = vld [vmem:[#allocation5 + $0x588] sm:$0xff]
    %v476 = vld [vmem:[#allocation5 + $0x590] sm:$0xff]
    %v477 = vld [vmem:[#allocation5 + $0x598] sm:$0xff]
    %v478 = vld [vmem:[#allocation5 + $0x5a0] sm:$0xff]
    %v479 = vld [vmem:[#allocation5 + $0x5a8] sm:$0xff]
    %v480 = vld [vmem:[#allocation5 + $0x5b0] sm:$0xff]
    %v481 = vld [vmem:[#allocation5 + $0x5b8] sm:$0xff]
    %v482 = vld [vmem:[#allocation5 + $0x5c0] sm:$0xff]
    %v483 = vld [vmem:[#allocation5 + $0x5c8] sm:$0xff]
    %v484 = vld [vmem:[#allocation5 + $0x5d0] sm:$0xff]
    %v485 = vld [vmem:[#allocation5 + $0x5d8] sm:$0xff]
    %v486 = vld [vmem:[#allocation5 + $0x5e0] sm:$0xff]
    %v487 = vld [vmem:[#allocation5 + $0x5e8] sm:$0xff]
    %v488 = vld [vmem:[#allocation5 + $0x5f0] sm:$0xff]
    %v489 = vld [vmem:[#allocation5 + $0x5f8] sm:$0xff]
    %v490 = vld [vmem:[#allocation5 + $0x600] sm:$0xff]
    %v491 = vld [vmem:[#allocation5 + $0x608] sm:$0xff]
    %v492 = vld [vmem:[#allocation5 + $0x610] sm:$0xff]
    %v493 = vld [vmem:[#allocation5 + $0x618] sm:$0xff]
    %v494 = vld [vmem:[#allocation5 + $0x620] sm:$0xff]
    %v495 = vld [vmem:[#allocation5 + $0x628] sm:$0xff]
    %v496 = vld [vmem:[#allocation5 + $0x630] sm:$0xff]
    %v497 = vld [vmem:[#allocation5 + $0x638] sm:$0xff]
    %v498 = vld [vmem:[#allocation5 + $0x640] sm:$0xff]
    %v499 = vld [vmem:[#allocation5 + $0x648] sm:$0xff]
    %v500 = vld [vmem:[#allocation5 + $0x650] sm:$0xff]
    %v501 = vld [vmem:[#allocation5 + $0x658] sm:$0xff]
    %v502 = vld [vmem:[#allocation5 + $0x660] sm:$0xff]
    %v503 = vld [vmem:[#allocation5 + $0x668] sm:$0xff]
    %v504 = vld [vmem:[#allocation5 + $0x670] sm:$0xff]
    %v505 = vld [vmem:[#allocation5 + $0x678] sm:$0xff]
    %v506 = vld [vmem:[#allocation5 + $0x680] sm:$0xff]
    %v507 = vld [vmem:[#allocation5 + $0x688] sm:$0xff]
    %v508 = vld [vmem:[#allocation5 + $0x690] sm:$0xff]
    %v509 = vld [vmem:[#allocation5 + $0x698] sm:$0xff]
    %v510 = vld [vmem:[#allocation5 + $0x6a0] sm:$0xff]
    %v511 = vld [vmem:[#allocation5 + $0x6a8] sm:$0xff]
    %v512 = vld [vmem:[#allocation5 + $0x6b0] sm:$0xff]
    %v513 = vld [vmem:[#allocation5 + $0x6b8] sm:$0xff]
    %v514 = vld [vmem:[#allocation5 + $0x6c0] sm:$0xff]
    %v515 = vld [vmem:[#allocation5 + $0x6c8] sm:$0xff]
    %v516 = vld [vmem:[#allocation5 + $0x6d0] sm:$0xff]
    %v517 = vld [vmem:[#allocation5 + $0x6d8] sm:$0xff]
    %v518 = vld [vmem:[#allocation5 + $0x6e0] sm:$0xff]
    %v519 = vld [vmem:[#allocation5 + $0x6e8] sm:$0xff]
    %v520 = vld [vmem:[#allocation5 + $0x6f0] sm:$0xff]
    %v521 = vld [vmem:[#allocation5 + $0x6f8] sm:$0xff]
    %v522 = vld [vmem:[#allocation5 + $0x700] sm:$0xff]
    %v523 = vld [vmem:[#allocation5 + $0x708] sm:$0xff]
    %v524 = vld [vmem:[#allocation5 + $0x710] sm:$0xff]
    %v525 = vld [vmem:[#allocation5 + $0x718] sm:$0xff]
    %v526 = vld [vmem:[#allocation5 + $0x720] sm:$0xff]
    %v527 = vld [vmem:[#allocation5 + $0x728] sm:$0xff]
    %v528 = vld [vmem:[#allocation5 + $0x730] sm:$0xff]
    %v529 = vld [vmem:[#allocation5 + $0x738] sm:$0xff]
    %v530 = vld [vmem:[#allocation5 + $0x740] sm:$0xff]
    %v531 = vld [vmem:[#allocation5 + $0x748] sm:$0xff]
    %v532 = vld [vmem:[#allocation5 + $0x750] sm:$0xff]
    %v533 = vld [vmem:[#allocation5 + $0x758] sm:$0xff]
    %v534 = vld [vmem:[#allocation5 + $0x760] sm:$0xff]
    %v535 = vld [vmem:[#allocation5 + $0x768] sm:$0xff]
    %v536 = vld [vmem:[#allocation5 + $0x770] sm:$0xff]
    %v537 = vld [vmem:[#allocation5 + $0x778] sm:$0xff]
    %v538 = vld [vmem:[#allocation5 + $0x780] sm:$0xff]
    %v539 = vld [vmem:[#allocation5 + $0x788] sm:$0xff]
    %v540 = vld [vmem:[#allocation5 + $0x790] sm:$0xff]
    %v541 = vld [vmem:[#allocation5 + $0x798] sm:$0xff]
    %v542 = vld [vmem:[#allocation5 + $0x7a0] sm:$0xff]
    %v543 = vld [vmem:[#allocation5 + $0x7a8] sm:$0xff]
    %v544 = vld [vmem:[#allocation5 + $0x7b0] sm:$0xff]
    %v545 = vld [vmem:[#allocation5 + $0x7b8] sm:$0xff]
    %v546 = vld [vmem:[#allocation5 + $0x7c0] sm:$0xff]
    %v547 = vld [vmem:[#allocation5 + $0x7c8] sm:$0xff]
    %v548 = vld [vmem:[#allocation5 + $0x7d0] sm:$0xff]
    %v549 = vld [vmem:[#allocation5 + $0x7d8] sm:$0xff]
    %v550 = vld [vmem:[#allocation5 + $0x7e0] sm:$0xff]
    %v551 = vld [vmem:[#allocation5 + $0x7e8] sm:$0xff]
    %v552 = vld [vmem:[#allocation5 + $0x7f0] sm:$0xff]
    %v553 = vld [vmem:[#allocation5 + $0x7f8] sm:$0xff]
    %v810 = vunpack.c.l.b16 %v298
    %v811 = vunpack.c.h.b16 %v298
    %v812 = vunpack.c.l.b16 %v299
    %v813 = vunpack.c.h.b16 %v299
    %v814 = vunpack.c.l.b16 %v300
    %v815 = vunpack.c.h.b16 %v300
    %v816 = vunpack.c.l.b16 %v301
    %v817 = vunpack.c.h.b16 %v301
    %v818 = vunpack.c.l.b16 %v302
    %v819 = vunpack.c.h.b16 %v302
    %v820 = vunpack.c.l.b16 %v303
    %v821 = vunpack.c.h.b16 %v303
    %v822 = vunpack.c.l.b16 %v304
    %v823 = vunpack.c.h.b16 %v304
    %v824 = vunpack.c.l.b16 %v305
    %v825 = vunpack.c.h.b16 %v305
    %v826 = vunpack.c.l.b16 %v306
    %v827 = vunpack.c.h.b16 %v306
    %v828 = vunpack.c.l.b16 %v307
    %v829 = vunpack.c.h.b16 %v307
    %v830 = vunpack.c.l.b16 %v308
    %v831 = vunpack.c.h.b16 %v308
    %v832 = vunpack.c.l.b16 %v309
    %v833 = vunpack.c.h.b16 %v309
    %v834 = vunpack.c.l.b16 %v310
    %v835 = vunpack.c.h.b16 %v310
    %v836 = vunpack.c.l.b16 %v311
    %v837 = vunpack.c.h.b16 %v311
    %v838 = vunpack.c.l.b16 %v312
    %v839 = vunpack.c.h.b16 %v312
    %v840 = vunpack.c.l.b16 %v313
    %v841 = vunpack.c.h.b16 %v313
    %v842 = vunpack.c.l.b16 %v314
    %v843 = vunpack.c.h.b16 %v314
    %v844 = vunpack.c.l.b16 %v315
    %v845 = vunpack.c.h.b16 %v315
    %v846 = vunpack.c.l.b16 %v316
    %v847 = vunpack.c.h.b16 %v316
    %v848 = vunpack.c.l.b16 %v317
    %v849 = vunpack.c.h.b16 %v317
    %v850 = vunpack.c.l.b16 %v318
    %v851 = vunpack.c.h.b16 %v318
    %v852 = vunpack.c.l.b16 %v319
    %v853 = vunpack.c.h.b16 %v319
    %v854 = vunpack.c.l.b16 %v320
    %v855 = vunpack.c.h.b16 %v320
    %v856 = vunpack.c.l.b16 %v321
    %v857 = vunpack.c.h.b16 %v321
    %v858 = vunpack.c.l.b16 %v322
    %v859 = vunpack.c.h.b16 %v322
    %v860 = vunpack.c.l.b16 %v323
    %v861 = vunpack.c.h.b16 %v323
    %v862 = vunpack.c.l.b16 %v324
    %v863 = vunpack.c.h.b16 %v324
    %v864 = vunpack.c.l.b16 %v325
    %v865 = vunpack.c.h.b16 %v325
    %v866 = vunpack.c.l.b16 %v326
    %v867 = vunpack.c.h.b16 %v326
    %v868 = vunpack.c.l.b16 %v327
    %v869 = vunpack.c.h.b16 %v327
    %v870 = vunpack.c.l.b16 %v328
    %v871 = vunpack.c.h.b16 %v328
    %v872 = vunpack.c.l.b16 %v329
    %v873 = vunpack.c.h.b16 %v329
    %v874 = vunpack.c.l.b16 %v330
    %v875 = vunpack.c.h.b16 %v330
    %v876 = vunpack.c.l.b16 %v331
    %v877 = vunpack.c.h.b16 %v331
    %v878 = vunpack.c.l.b16 %v332
    %v879 = vunpack.c.h.b16 %v332
    %v880 = vunpack.c.l.b16 %v333
    %v881 = vunpack.c.h.b16 %v333
    %v882 = vunpack.c.l.b16 %v334
    %v883 = vunpack.c.h.b16 %v334
    %v884 = vunpack.c.l.b16 %v335
    %v885 = vunpack.c.h.b16 %v335
    %v886 = vunpack.c.l.b16 %v336
    %v887 = vunpack.c.h.b16 %v336
    %v888 = vunpack.c.l.b16 %v337
    %v889 = vunpack.c.h.b16 %v337
    %v890 = vunpack.c.l.b16 %v338
    %v891 = vunpack.c.h.b16 %v338
    %v892 = vunpack.c.l.b16 %v339
    %v893 = vunpack.c.h.b16 %v339
    %v894 = vunpack.c.l.b16 %v340
    %v895 = vunpack.c.h.b16 %v340
    %v896 = vunpack.c.l.b16 %v341
    %v897 = vunpack.c.h.b16 %v341
    %v898 = vunpack.c.l.b16 %v342
    %v899 = vunpack.c.h.b16 %v342
    %v900 = vunpack.c.l.b16 %v343
    %v901 = vunpack.c.h.b16 %v343
    %v902 = vunpack.c.l.b16 %v344
    %v903 = vunpack.c.h.b16 %v344
    %v904 = vunpack.c.l.b16 %v345
    %v905 = vunpack.c.h.b16 %v345
    %v906 = vunpack.c.l.b16 %v346
    %v907 = vunpack.c.h.b16 %v346
    %v908 = vunpack.c.l.b16 %v347
    %v909 = vunpack.c.h.b16 %v347
    %v910 = vunpack.c.l.b16 %v348
    %v911 = vunpack.c.h.b16 %v348
    %v912 = vunpack.c.l.b16 %v349
    %v913 = vunpack.c.h.b16 %v349
    %v914 = vunpack.c.l.b16 %v350
    %v915 = vunpack.c.h.b16 %v350
    %v916 = vunpack.c.l.b16 %v351
    %v917 = vunpack.c.h.b16 %v351
    %v918 = vunpack.c.l.b16 %v352
    %v919 = vunpack.c.h.b16 %v352
    %v920 = vunpack.c.l.b16 %v353
    %v921 = vunpack.c.h.b16 %v353
    %v922 = vunpack.c.l.b16 %v354
    %v923 = vunpack.c.h.b16 %v354
    %v924 = vunpack.c.l.b16 %v355
    %v925 = vunpack.c.h.b16 %v355
    %v926 = vunpack.c.l.b16 %v356
    %v927 = vunpack.c.h.b16 %v356
    %v928 = vunpack.c.l.b16 %v357
    %v929 = vunpack.c.h.b16 %v357
    %v930 = vunpack.c.l.b16 %v358
    %v931 = vunpack.c.h.b16 %v358
    %v932 = vunpack.c.l.b16 %v359
    %v933 = vunpack.c.h.b16 %v359
    %v934 = vunpack.c.l.b16 %v360
    %v935 = vunpack.c.h.b16 %v360
    %v936 = vunpack.c.l.b16 %v361
    %v937 = vunpack.c.h.b16 %v361
    %v938 = vunpack.c.l.b16 %v362
    %v939 = vunpack.c.h.b16 %v362
    %v940 = vunpack.c.l.b16 %v363
    %v941 = vunpack.c.h.b16 %v363
    %v942 = vunpack.c.l.b16 %v364
    %v943 = vunpack.c.h.b16 %v364
    %v944 = vunpack.c.l.b16 %v365
    %v945 = vunpack.c.h.b16 %v365
    %v946 = vunpack.c.l.b16 %v366
    %v947 = vunpack.c.h.b16 %v366
    %v948 = vunpack.c.l.b16 %v367
    %v949 = vunpack.c.h.b16 %v367
    %v950 = vunpack.c.l.b16 %v368
    %v951 = vunpack.c.h.b16 %v368
    %v952 = vunpack.c.l.b16 %v369
    %v953 = vunpack.c.h.b16 %v369
    %v954 = vunpack.c.l.b16 %v370
    %v955 = vunpack.c.h.b16 %v370
    %v956 = vunpack.c.l.b16 %v371
    %v957 = vunpack.c.h.b16 %v371
    %v958 = vunpack.c.l.b16 %v372
    %v959 = vunpack.c.h.b16 %v372
    %v960 = vunpack.c.l.b16 %v373
    %v961 = vunpack.c.h.b16 %v373
    %v962 = vunpack.c.l.b16 %v374
    %v963 = vunpack.c.h.b16 %v374
    %v964 = vunpack.c.l.b16 %v375
    %v965 = vunpack.c.h.b16 %v375
    %v966 = vunpack.c.l.b16 %v376
    %v967 = vunpack.c.h.b16 %v376
    %v968 = vunpack.c.l.b16 %v377
    %v969 = vunpack.c.h.b16 %v377
    %v970 = vunpack.c.l.b16 %v378
    %v971 = vunpack.c.h.b16 %v378
    %v972 = vunpack.c.l.b16 %v379
    %v973 = vunpack.c.h.b16 %v379
    %v974 = vunpack.c.l.b16 %v380
    %v975 = vunpack.c.h.b16 %v380
    %v976 = vunpack.c.l.b16 %v381
    %v977 = vunpack.c.h.b16 %v381
    %v978 = vunpack.c.l.b16 %v382
    %v979 = vunpack.c.h.b16 %v382
    %v980 = vunpack.c.l.b16 %v383
    %v981 = vunpack.c.h.b16 %v383
    %v982 = vunpack.c.l.b16 %v384
    %v983 = vunpack.c.h.b16 %v384
    %v984 = vunpack.c.l.b16 %v385
    %v985 = vunpack.c.h.b16 %v385
    %v986 = vunpack.c.l.b16 %v386
    %v987 = vunpack.c.h.b16 %v386
    %v988 = vunpack.c.l.b16 %v387
    %v989 = vunpack.c.h.b16 %v387
    %v990 = vunpack.c.l.b16 %v388
    %v991 = vunpack.c.h.b16 %v388
    %v992 = vunpack.c.l.b16 %v389
    %v993 = vunpack.c.h.b16 %v389
    %v994 = vunpack.c.l.b16 %v390
    %v995 = vunpack.c.h.b16 %v390
    %v996 = vunpack.c.l.b16 %v391
    %v997 = vunpack.c.h.b16 %v391
    %v998 = vunpack.c.l.b16 %v392
    %v999 = vunpack.c.h.b16 %v392
    %v1000 = vunpack.c.l.b16 %v393
    %v1001 = vunpack.c.h.b16 %v393
    %v1002 = vunpack.c.l.b16 %v394
    %v1003 = vunpack.c.h.b16 %v394
    %v1004 = vunpack.c.l.b16 %v395
    %v1005 = vunpack.c.h.b16 %v395
    %v1006 = vunpack.c.l.b16 %v396
    %v1007 = vunpack.c.h.b16 %v396
    %v1008 = vunpack.c.l.b16 %v397
    %v1009 = vunpack.c.h.b16 %v397
    %v1010 = vunpack.c.l.b16 %v398
    %v1011 = vunpack.c.h.b16 %v398
    %v1012 = vunpack.c.l.b16 %v399
    %v1013 = vunpack.c.h.b16 %v399
    %v1014 = vunpack.c.l.b16 %v400
    %v1015 = vunpack.c.h.b16 %v400
    %v1016 = vunpack.c.l.b16 %v401
    %v1017 = vunpack.c.h.b16 %v401
    %v1018 = vunpack.c.l.b16 %v402
    %v1019 = vunpack.c.h.b16 %v402
    %v1020 = vunpack.c.l.b16 %v403
    %v1021 = vunpack.c.h.b16 %v403
    %v1022 = vunpack.c.l.b16 %v404
    %v1023 = vunpack.c.h.b16 %v404
    %v1024 = vunpack.c.l.b16 %v405
    %v1025 = vunpack.c.h.b16 %v405
    %v1026 = vunpack.c.l.b16 %v406
    %v1027 = vunpack.c.h.b16 %v406
    %v1028 = vunpack.c.l.b16 %v407
    %v1029 = vunpack.c.h.b16 %v407
    %v1030 = vunpack.c.l.b16 %v408
    %v1031 = vunpack.c.h.b16 %v408
    %v1032 = vunpack.c.l.b16 %v409
    %v1033 = vunpack.c.h.b16 %v409
    %v1034 = vunpack.c.l.b16 %v410
    %v1035 = vunpack.c.h.b16 %v410
    %v1036 = vunpack.c.l.b16 %v411
    %v1037 = vunpack.c.h.b16 %v411
    %v1038 = vunpack.c.l.b16 %v412
    %v1039 = vunpack.c.h.b16 %v412
    %v1040 = vunpack.c.l.b16 %v413
    %v1041 = vunpack.c.h.b16 %v413
    %v1042 = vunpack.c.l.b16 %v414
    %v1043 = vunpack.c.h.b16 %v414
    %v1044 = vunpack.c.l.b16 %v415
    %v1045 = vunpack.c.h.b16 %v415
    %v1046 = vunpack.c.l.b16 %v416
    %v1047 = vunpack.c.h.b16 %v416
    %v1048 = vunpack.c.l.b16 %v417
    %v1049 = vunpack.c.h.b16 %v417
    %v1050 = vunpack.c.l.b16 %v418
    %v1051 = vunpack.c.h.b16 %v418
    %v1052 = vunpack.c.l.b16 %v419
    %v1053 = vunpack.c.h.b16 %v419
    %v1054 = vunpack.c.l.b16 %v420
    %v1055 = vunpack.c.h.b16 %v420
    %v1056 = vunpack.c.l.b16 %v421
    %v1057 = vunpack.c.h.b16 %v421
    %v1058 = vunpack.c.l.b16 %v422
    %v1059 = vunpack.c.h.b16 %v422
    %v1060 = vunpack.c.l.b16 %v423
    %v1061 = vunpack.c.h.b16 %v423
    %v1062 = vunpack.c.l.b16 %v424
    %v1063 = vunpack.c.h.b16 %v424
    %v1064 = vunpack.c.l.b16 %v425
    %v1065 = vunpack.c.h.b16 %v425
    %v1066 = vunpack.c.l.b16 %v426
    %v1067 = vunpack.c.h.b16 %v426
    %v1068 = vunpack.c.l.b16 %v427
    %v1069 = vunpack.c.h.b16 %v427
    %v1070 = vunpack.c.l.b16 %v428
    %v1071 = vunpack.c.h.b16 %v428
    %v1072 = vunpack.c.l.b16 %v429
    %v1073 = vunpack.c.h.b16 %v429
    %v1074 = vunpack.c.l.b16 %v430
    %v1075 = vunpack.c.h.b16 %v430
    %v1076 = vunpack.c.l.b16 %v431
    %v1077 = vunpack.c.h.b16 %v431
    %v1078 = vunpack.c.l.b16 %v432
    %v1079 = vunpack.c.h.b16 %v432
    %v1080 = vunpack.c.l.b16 %v433
    %v1081 = vunpack.c.h.b16 %v433
    %v1082 = vunpack.c.l.b16 %v434
    %v1083 = vunpack.c.h.b16 %v434
    %v1084 = vunpack.c.l.b16 %v435
    %v1085 = vunpack.c.h.b16 %v435
    %v1086 = vunpack.c.l.b16 %v436
    %v1087 = vunpack.c.h.b16 %v436
    %v1088 = vunpack.c.l.b16 %v437
    %v1089 = vunpack.c.h.b16 %v437
    %v1090 = vunpack.c.l.b16 %v438
    %v1091 = vunpack.c.h.b16 %v438
    %v1092 = vunpack.c.l.b16 %v439
    %v1093 = vunpack.c.h.b16 %v439
    %v1094 = vunpack.c.l.b16 %v440
    %v1095 = vunpack.c.h.b16 %v440
    %v1096 = vunpack.c.l.b16 %v441
    %v1097 = vunpack.c.h.b16 %v441
    %v1098 = vunpack.c.l.b16 %v442
    %v1099 = vunpack.c.h.b16 %v442
    %v1100 = vunpack.c.l.b16 %v443
    %v1101 = vunpack.c.h.b16 %v443
    %v1102 = vunpack.c.l.b16 %v444
    %v1103 = vunpack.c.h.b16 %v444
    %v1104 = vunpack.c.l.b16 %v445
    %v1105 = vunpack.c.h.b16 %v445
    %v1106 = vunpack.c.l.b16 %v446
    %v1107 = vunpack.c.h.b16 %v446
    %v1108 = vunpack.c.l.b16 %v447
    %v1109 = vunpack.c.h.b16 %v447
    %v1110 = vunpack.c.l.b16 %v448
    %v1111 = vunpack.c.h.b16 %v448
    %v1112 = vunpack.c.l.b16 %v449
    %v1113 = vunpack.c.h.b16 %v449
    %v1114 = vunpack.c.l.b16 %v450
    %v1115 = vunpack.c.h.b16 %v450
    %v1116 = vunpack.c.l.b16 %v451
    %v1117 = vunpack.c.h.b16 %v451
    %v1118 = vunpack.c.l.b16 %v452
    %v1119 = vunpack.c.h.b16 %v452
    %v1120 = vunpack.c.l.b16 %v453
    %v1121 = vunpack.c.h.b16 %v453
    %v1122 = vunpack.c.l.b16 %v454
    %v1123 = vunpack.c.h.b16 %v454
    %v1124 = vunpack.c.l.b16 %v455
    %v1125 = vunpack.c.h.b16 %v455
    %v1126 = vunpack.c.l.b16 %v456
    %v1127 = vunpack.c.h.b16 %v456
    %v1128 = vunpack.c.l.b16 %v457
    %v1129 = vunpack.c.h.b16 %v457
    %v1130 = vunpack.c.l.b16 %v458
    %v1131 = vunpack.c.h.b16 %v458
    %v1132 = vunpack.c.l.b16 %v459
    %v1133 = vunpack.c.h.b16 %v459
    %v1134 = vunpack.c.l.b16 %v460
    %v1135 = vunpack.c.h.b16 %v460
    %v1136 = vunpack.c.l.b16 %v461
    %v1137 = vunpack.c.h.b16 %v461
    %v1138 = vunpack.c.l.b16 %v462
    %v1139 = vunpack.c.h.b16 %v462
    %v1140 = vunpack.c.l.b16 %v463
    %v1141 = vunpack.c.h.b16 %v463
    %v1142 = vunpack.c.l.b16 %v464
    %v1143 = vunpack.c.h.b16 %v464
    %v1144 = vunpack.c.l.b16 %v465
    %v1145 = vunpack.c.h.b16 %v465
    %v1146 = vunpack.c.l.b16 %v466
    %v1147 = vunpack.c.h.b16 %v466
    %v1148 = vunpack.c.l.b16 %v467
    %v1149 = vunpack.c.h.b16 %v467
    %v1150 = vunpack.c.l.b16 %v468
    %v1151 = vunpack.c.h.b16 %v468
    %v1152 = vunpack.c.l.b16 %v469
    %v1153 = vunpack.c.h.b16 %v469
    %v1154 = vunpack.c.l.b16 %v470
    %v1155 = vunpack.c.h.b16 %v470
    %v1156 = vunpack.c.l.b16 %v471
    %v1157 = vunpack.c.h.b16 %v471
    %v1158 = vunpack.c.l.b16 %v472
    %v1159 = vunpack.c.h.b16 %v472
    %v1160 = vunpack.c.l.b16 %v473
    %v1161 = vunpack.c.h.b16 %v473
    %v1162 = vunpack.c.l.b16 %v474
    %v1163 = vunpack.c.h.b16 %v474
    %v1164 = vunpack.c.l.b16 %v475
    %v1165 = vunpack.c.h.b16 %v475
    %v1166 = vunpack.c.l.b16 %v476
    %v1167 = vunpack.c.h.b16 %v476
    %v1168 = vunpack.c.l.b16 %v477
    %v1169 = vunpack.c.h.b16 %v477
    %v1170 = vunpack.c.l.b16 %v478
    %v1171 = vunpack.c.h.b16 %v478
    %v1172 = vunpack.c.l.b16 %v479
    %v1173 = vunpack.c.h.b16 %v479
    %v1174 = vunpack.c.l.b16 %v480
    %v1175 = vunpack.c.h.b16 %v480
    %v1176 = vunpack.c.l.b16 %v481
    %v1177 = vunpack.c.h.b16 %v481
    %v1178 = vunpack.c.l.b16 %v482
    %v1179 = vunpack.c.h.b16 %v482
    %v1180 = vunpack.c.l.b16 %v483
    %v1181 = vunpack.c.h.b16 %v483
    %v1182 = vunpack.c.l.b16 %v484
    %v1183 = vunpack.c.h.b16 %v484
    %v1184 = vunpack.c.l.b16 %v485
    %v1185 = vunpack.c.h.b16 %v485
    %v1186 = vunpack.c.l.b16 %v486
    %v1187 = vunpack.c.h.b16 %v486
    %v1188 = vunpack.c.l.b16 %v487
    %v1189 = vunpack.c.h.b16 %v487
    %v1190 = vunpack.c.l.b16 %v488
    %v1191 = vunpack.c.h.b16 %v488
    %v1192 = vunpack.c.l.b16 %v489
    %v1193 = vunpack.c.h.b16 %v489
    %v1194 = vunpack.c.l.b16 %v490
    %v1195 = vunpack.c.h.b16 %v490
    %v1196 = vunpack.c.l.b16 %v491
    %v1197 = vunpack.c.h.b16 %v491
    %v1198 = vunpack.c.l.b16 %v492
    %v1199 = vunpack.c.h.b16 %v492
    %v1200 = vunpack.c.l.b16 %v493
    %v1201 = vunpack.c.h.b16 %v493
    %v1202 = vunpack.c.l.b16 %v494
    %v1203 = vunpack.c.h.b16 %v494
    %v1204 = vunpack.c.l.b16 %v495
    %v1205 = vunpack.c.h.b16 %v495
    %v1206 = vunpack.c.l.b16 %v496
    %v1207 = vunpack.c.h.b16 %v496
    %v1208 = vunpack.c.l.b16 %v497
    %v1209 = vunpack.c.h.b16 %v497
    %v1210 = vunpack.c.l.b16 %v498
    %v1211 = vunpack.c.h.b16 %v498
    %v1212 = vunpack.c.l.b16 %v499
    %v1213 = vunpack.c.h.b16 %v499
    %v1214 = vunpack.c.l.b16 %v500
    %v1215 = vunpack.c.h.b16 %v500
    %v1216 = vunpack.c.l.b16 %v501
    %v1217 = vunpack.c.h.b16 %v501
    %v1218 = vunpack.c.l.b16 %v502
    %v1219 = vunpack.c.h.b16 %v502
    %v1220 = vunpack.c.l.b16 %v503
    %v1221 = vunpack.c.h.b16 %v503
    %v1222 = vunpack.c.l.b16 %v504
    %v1223 = vunpack.c.h.b16 %v504
    %v1224 = vunpack.c.l.b16 %v505
    %v1225 = vunpack.c.h.b16 %v505
    %v1226 = vunpack.c.l.b16 %v506
    %v1227 = vunpack.c.h.b16 %v506
    %v1228 = vunpack.c.l.b16 %v507
    %v1229 = vunpack.c.h.b16 %v507
    %v1230 = vunpack.c.l.b16 %v508
    %v1231 = vunpack.c.h.b16 %v508
    %v1232 = vunpack.c.l.b16 %v509
    %v1233 = vunpack.c.h.b16 %v509
    %v1234 = vunpack.c.l.b16 %v510
    %v1235 = vunpack.c.h.b16 %v510
    %v1236 = vunpack.c.l.b16 %v511
    %v1237 = vunpack.c.h.b16 %v511
    %v1238 = vunpack.c.l.b16 %v512
    %v1239 = vunpack.c.h.b16 %v512
    %v1240 = vunpack.c.l.b16 %v513
    %v1241 = vunpack.c.h.b16 %v513
    %v1242 = vunpack.c.l.b16 %v514
    %v1243 = vunpack.c.h.b16 %v514
    %v1244 = vunpack.c.l.b16 %v515
    %v1245 = vunpack.c.h.b16 %v515
    %v1246 = vunpack.c.l.b16 %v516
    %v1247 = vunpack.c.h.b16 %v516
    %v1248 = vunpack.c.l.b16 %v517
    %v1249 = vunpack.c.h.b16 %v517
    %v1250 = vunpack.c.l.b16 %v518
    %v1251 = vunpack.c.h.b16 %v518
    %v1252 = vunpack.c.l.b16 %v519
    %v1253 = vunpack.c.h.b16 %v519
    %v1254 = vunpack.c.l.b16 %v520
    %v1255 = vunpack.c.h.b16 %v520
    %v1256 = vunpack.c.l.b16 %v521
    %v1257 = vunpack.c.h.b16 %v521
    %v1258 = vunpack.c.l.b16 %v522
    %v1259 = vunpack.c.h.b16 %v522
    %v1260 = vunpack.c.l.b16 %v523
    %v1261 = vunpack.c.h.b16 %v523
    %v1262 = vunpack.c.l.b16 %v524
    %v1263 = vunpack.c.h.b16 %v524
    %v1264 = vunpack.c.l.b16 %v525
    %v1265 = vunpack.c.h.b16 %v525
    %v1266 = vunpack.c.l.b16 %v526
    %v1267 = vunpack.c.h.b16 %v526
    %v1268 = vunpack.c.l.b16 %v527
    %v1269 = vunpack.c.h.b16 %v527
    %v1270 = vunpack.c.l.b16 %v528
    %v1271 = vunpack.c.h.b16 %v528
    %v1272 = vunpack.c.l.b16 %v529
    %v1273 = vunpack.c.h.b16 %v529
    %v1274 = vunpack.c.l.b16 %v530
    %v1275 = vunpack.c.h.b16 %v530
    %v1276 = vunpack.c.l.b16 %v531
    %v1277 = vunpack.c.h.b16 %v531
    %v1278 = vunpack.c.l.b16 %v532
    %v1279 = vunpack.c.h.b16 %v532
    %v1280 = vunpack.c.l.b16 %v533
    %v1281 = vunpack.c.h.b16 %v533
    %v1282 = vunpack.c.l.b16 %v534
    %v1283 = vunpack.c.h.b16 %v534
    %v1284 = vunpack.c.l.b16 %v535
    %v1285 = vunpack.c.h.b16 %v535
    %v1286 = vunpack.c.l.b16 %v536
    %v1287 = vunpack.c.h.b16 %v536
    %v1288 = vunpack.c.l.b16 %v537
    %v1289 = vunpack.c.h.b16 %v537
    %v1290 = vunpack.c.l.b16 %v538
    %v1291 = vunpack.c.h.b16 %v538
    %v1292 = vunpack.c.l.b16 %v539
    %v1293 = vunpack.c.h.b16 %v539
    %v1294 = vunpack.c.l.b16 %v540
    %v1295 = vunpack.c.h.b16 %v540
    %v1296 = vunpack.c.l.b16 %v541
    %v1297 = vunpack.c.h.b16 %v541
    %v1298 = vunpack.c.l.b16 %v542
    %v1299 = vunpack.c.h.b16 %v542
    %v1300 = vunpack.c.l.b16 %v543
    %v1301 = vunpack.c.h.b16 %v543
    %v1302 = vunpack.c.l.b16 %v544
    %v1303 = vunpack.c.h.b16 %v544
    %v1304 = vunpack.c.l.b16 %v545
    %v1305 = vunpack.c.h.b16 %v545
    %v1306 = vunpack.c.l.b16 %v546
    %v1307 = vunpack.c.h.b16 %v546
    %v1308 = vunpack.c.l.b16 %v547
    %v1309 = vunpack.c.h.b16 %v547
    %v1310 = vunpack.c.l.b16 %v548
    %v1311 = vunpack.c.h.b16 %v548
    %v1312 = vunpack.c.l.b16 %v549
    %v1313 = vunpack.c.h.b16 %v549
    %v1314 = vunpack.c.l.b16 %v550
    %v1315 = vunpack.c.h.b16 %v550
    %v1316 = vunpack.c.l.b16 %v551
    %v1317 = vunpack.c.h.b16 %v551
    %v1318 = vunpack.c.l.b16 %v552
    %v1319 = vunpack.c.h.b16 %v552
    %v1320 = vunpack.c.l.b16 %v553
    %v1321 = vunpack.c.h.b16 %v553
    %v1322 = vpack.c.b16 %v818, %v810
    %v1323 = vpack.c.b16 %v819, %v811
    %v1324 = vpack.c.b16 %v820, %v812
    %v1325 = vpack.c.b16 %v821, %v813
    %v1326 = vpack.c.b16 %v822, %v814
    %v1327 = vpack.c.b16 %v823, %v815
    %v1328 = vpack.c.b16 %v824, %v816
    %v1329 = vpack.c.b16 %v825, %v817
    %v1330 = vpack.c.b16 %v834, %v826
    %v1331 = vpack.c.b16 %v835, %v827
    %v1332 = vpack.c.b16 %v836, %v828
    %v1333 = vpack.c.b16 %v837, %v829
    %v1334 = vpack.c.b16 %v838, %v830
    %v1335 = vpack.c.b16 %v839, %v831
    %v1336 = vpack.c.b16 %v840, %v832
    %v1337 = vpack.c.b16 %v841, %v833
    %v1338 = vpack.c.b16 %v850, %v842
    %v1339 = vpack.c.b16 %v851, %v843
    %v1340 = vpack.c.b16 %v852, %v844
    %v1341 = vpack.c.b16 %v853, %v845
    %v1342 = vpack.c.b16 %v854, %v846
    %v1343 = vpack.c.b16 %v855, %v847
    %v1344 = vpack.c.b16 %v856, %v848
    %v1345 = vpack.c.b16 %v857, %v849
    %v1346 = vpack.c.b16 %v866, %v858
    %v1347 = vpack.c.b16 %v867, %v859
    %v1348 = vpack.c.b16 %v868, %v860
    %v1349 = vpack.c.b16 %v869, %v861
    %v1350 = vpack.c.b16 %v870, %v862
    %v1351 = vpack.c.b16 %v871, %v863
    %v1352 = vpack.c.b16 %v872, %v864
    %v1353 = vpack.c.b16 %v873, %v865
    %v1354 = vpack.c.b16 %v882, %v874
    %v1355 = vpack.c.b16 %v883, %v875
    %v1356 = vpack.c.b16 %v884, %v876
    %v1357 = vpack.c.b16 %v885, %v877
    %v1358 = vpack.c.b16 %v886, %v878
    %v1359 = vpack.c.b16 %v887, %v879
    %v1360 = vpack.c.b16 %v888, %v880
    %v1361 = vpack.c.b16 %v889, %v881
    %v1362 = vpack.c.b16 %v898, %v890
    %v1363 = vpack.c.b16 %v899, %v891
    %v1364 = vpack.c.b16 %v900, %v892
    %v1365 = vpack.c.b16 %v901, %v893
    %v1366 = vpack.c.b16 %v902, %v894
    %v1367 = vpack.c.b16 %v903, %v895
    %v1368 = vpack.c.b16 %v904, %v896
    %v1369 = vpack.c.b16 %v905, %v897
    %v1370 = vpack.c.b16 %v914, %v906
    %v1371 = vpack.c.b16 %v915, %v907
    %v1372 = vpack.c.b16 %v916, %v908
    %v1373 = vpack.c.b16 %v917, %v909
    %v1374 = vpack.c.b16 %v918, %v910
    %v1375 = vpack.c.b16 %v919, %v911
    %v1376 = vpack.c.b16 %v920, %v912
    %v1377 = vpack.c.b16 %v921, %v913
    %v1378 = vpack.c.b16 %v930, %v922
    %v1379 = vpack.c.b16 %v931, %v923
    %v1380 = vpack.c.b16 %v932, %v924
    %v1381 = vpack.c.b16 %v933, %v925
    %v1382 = vpack.c.b16 %v934, %v926
    %v1383 = vpack.c.b16 %v935, %v927
    %v1384 = vpack.c.b16 %v936, %v928
    %v1385 = vpack.c.b16 %v937, %v929
    %v1386 = vpack.c.b16 %v946, %v938
    %v1387 = vpack.c.b16 %v947, %v939
    %v1388 = vpack.c.b16 %v948, %v940
    %v1389 = vpack.c.b16 %v949, %v941
    %v1390 = vpack.c.b16 %v950, %v942
    %v1391 = vpack.c.b16 %v951, %v943
    %v1392 = vpack.c.b16 %v952, %v944
    %v1393 = vpack.c.b16 %v953, %v945
    %v1394 = vpack.c.b16 %v962, %v954
    %v1395 = vpack.c.b16 %v963, %v955
    %v1396 = vpack.c.b16 %v964, %v956
    %v1397 = vpack.c.b16 %v965, %v957
    %v1398 = vpack.c.b16 %v966, %v958
    %v1399 = vpack.c.b16 %v967, %v959
    %v1400 = vpack.c.b16 %v968, %v960
    %v1401 = vpack.c.b16 %v969, %v961
    %v1402 = vpack.c.b16 %v978, %v970
    %v1403 = vpack.c.b16 %v979, %v971
    %v1404 = vpack.c.b16 %v980, %v972
    %v1405 = vpack.c.b16 %v981, %v973
    %v1406 = vpack.c.b16 %v982, %v974
    %v1407 = vpack.c.b16 %v983, %v975
    %v1408 = vpack.c.b16 %v984, %v976
    %v1409 = vpack.c.b16 %v985, %v977
    %v1410 = vpack.c.b16 %v994, %v986
    %v1411 = vpack.c.b16 %v995, %v987
    %v1412 = vpack.c.b16 %v996, %v988
    %v1413 = vpack.c.b16 %v997, %v989
    %v1414 = vpack.c.b16 %v998, %v990
    %v1415 = vpack.c.b16 %v999, %v991
    %v1416 = vpack.c.b16 %v1000, %v992
    %v1417 = vpack.c.b16 %v1001, %v993
    %v1418 = vpack.c.b16 %v1010, %v1002
    %v1419 = vpack.c.b16 %v1011, %v1003
    %v1420 = vpack.c.b16 %v1012, %v1004
    %v1421 = vpack.c.b16 %v1013, %v1005
    %v1422 = vpack.c.b16 %v1014, %v1006
    %v1423 = vpack.c.b16 %v1015, %v1007
    %v1424 = vpack.c.b16 %v1016, %v1008
    %v1425 = vpack.c.b16 %v1017, %v1009
    %v1426 = vpack.c.b16 %v1026, %v1018
    %v1427 = vpack.c.b16 %v1027, %v1019
    %v1428 = vpack.c.b16 %v1028, %v1020
    %v1429 = vpack.c.b16 %v1029, %v1021
    %v1430 = vpack.c.b16 %v1030, %v1022
    %v1431 = vpack.c.b16 %v1031, %v1023
    %v1432 = vpack.c.b16 %v1032, %v1024
    %v1433 = vpack.c.b16 %v1033, %v1025
    %v1434 = vpack.c.b16 %v1042, %v1034
    %v1435 = vpack.c.b16 %v1043, %v1035
    %v1436 = vpack.c.b16 %v1044, %v1036
    %v1437 = vpack.c.b16 %v1045, %v1037
    %v1438 = vpack.c.b16 %v1046, %v1038
    %v1439 = vpack.c.b16 %v1047, %v1039
    %v1440 = vpack.c.b16 %v1048, %v1040
    %v1441 = vpack.c.b16 %v1049, %v1041
    %v1442 = vpack.c.b16 %v1058, %v1050
    %v1443 = vpack.c.b16 %v1059, %v1051
    %v1444 = vpack.c.b16 %v1060, %v1052
    %v1445 = vpack.c.b16 %v1061, %v1053
    %v1446 = vpack.c.b16 %v1062, %v1054
    %v1447 = vpack.c.b16 %v1063, %v1055
    %v1448 = vpack.c.b16 %v1064, %v1056
    %v1449 = vpack.c.b16 %v1065, %v1057
    %v1450 = vpack.c.b16 %v1074, %v1066
    %v1451 = vpack.c.b16 %v1075, %v1067
    %v1452 = vpack.c.b16 %v1076, %v1068
    %v1453 = vpack.c.b16 %v1077, %v1069
    %v1454 = vpack.c.b16 %v1078, %v1070
    %v1455 = vpack.c.b16 %v1079, %v1071
    %v1456 = vpack.c.b16 %v1080, %v1072
    %v1457 = vpack.c.b16 %v1081, %v1073
    %v1458 = vpack.c.b16 %v1090, %v1082
    %v1459 = vpack.c.b16 %v1091, %v1083
    %v1460 = vpack.c.b16 %v1092, %v1084
    %v1461 = vpack.c.b16 %v1093, %v1085
    %v1462 = vpack.c.b16 %v1094, %v1086
    %v1463 = vpack.c.b16 %v1095, %v1087
    %v1464 = vpack.c.b16 %v1096, %v1088
    %v1465 = vpack.c.b16 %v1097, %v1089
    %v1466 = vpack.c.b16 %v1106, %v1098
    %v1467 = vpack.c.b16 %v1107, %v1099
    %v1468 = vpack.c.b16 %v1108, %v1100
    %v1469 = vpack.c.b16 %v1109, %v1101
    %v1470 = vpack.c.b16 %v1110, %v1102
    %v1471 = vpack.c.b16 %v1111, %v1103
    %v1472 = vpack.c.b16 %v1112, %v1104
    %v1473 = vpack.c.b16 %v1113, %v1105
    %v1474 = vpack.c.b16 %v1122, %v1114
    %v1475 = vpack.c.b16 %v1123, %v1115
    %v1476 = vpack.c.b16 %v1124, %v1116
    %v1477 = vpack.c.b16 %v1125, %v1117
    %v1478 = vpack.c.b16 %v1126, %v1118
    %v1479 = vpack.c.b16 %v1127, %v1119
    %v1480 = vpack.c.b16 %v1128, %v1120
    %v1481 = vpack.c.b16 %v1129, %v1121
    %v1482 = vpack.c.b16 %v1138, %v1130
    %v1483 = vpack.c.b16 %v1139, %v1131
    %v1484 = vpack.c.b16 %v1140, %v1132
    %v1485 = vpack.c.b16 %v1141, %v1133
    %v1486 = vpack.c.b16 %v1142, %v1134
    %v1487 = vpack.c.b16 %v1143, %v1135
    %v1488 = vpack.c.b16 %v1144, %v1136
    %v1489 = vpack.c.b16 %v1145, %v1137
    %v1490 = vpack.c.b16 %v1154, %v1146
    %v1491 = vpack.c.b16 %v1155, %v1147
    %v1492 = vpack.c.b16 %v1156, %v1148
    %v1493 = vpack.c.b16 %v1157, %v1149
    %v1494 = vpack.c.b16 %v1158, %v1150
    %v1495 = vpack.c.b16 %v1159, %v1151
    %v1496 = vpack.c.b16 %v1160, %v1152
    %v1497 = vpack.c.b16 %v1161, %v1153
    %v1498 = vpack.c.b16 %v1170, %v1162
    %v1499 = vpack.c.b16 %v1171, %v1163
    %v1500 = vpack.c.b16 %v1172, %v1164
    %v1501 = vpack.c.b16 %v1173, %v1165
    %v1502 = vpack.c.b16 %v1174, %v1166
    %v1503 = vpack.c.b16 %v1175, %v1167
    %v1504 = vpack.c.b16 %v1176, %v1168
    %v1505 = vpack.c.b16 %v1177, %v1169
    %v1506 = vpack.c.b16 %v1186, %v1178
    %v1507 = vpack.c.b16 %v1187, %v1179
    %v1508 = vpack.c.b16 %v1188, %v1180
    %v1509 = vpack.c.b16 %v1189, %v1181
    %v1510 = vpack.c.b16 %v1190, %v1182
    %v1511 = vpack.c.b16 %v1191, %v1183
    %v1512 = vpack.c.b16 %v1192, %v1184
    %v1513 = vpack.c.b16 %v1193, %v1185
    %v1514 = vpack.c.b16 %v1202, %v1194
    %v1515 = vpack.c.b16 %v1203, %v1195
    %v1516 = vpack.c.b16 %v1204, %v1196
    %v1517 = vpack.c.b16 %v1205, %v1197
    %v1518 = vpack.c.b16 %v1206, %v1198
    %v1519 = vpack.c.b16 %v1207, %v1199
    %v1520 = vpack.c.b16 %v1208, %v1200
    %v1521 = vpack.c.b16 %v1209, %v1201
    %v1522 = vpack.c.b16 %v1218, %v1210
    %v1523 = vpack.c.b16 %v1219, %v1211
    %v1524 = vpack.c.b16 %v1220, %v1212
    %v1525 = vpack.c.b16 %v1221, %v1213
    %v1526 = vpack.c.b16 %v1222, %v1214
    %v1527 = vpack.c.b16 %v1223, %v1215
    %v1528 = vpack.c.b16 %v1224, %v1216
    %v1529 = vpack.c.b16 %v1225, %v1217
    %v1530 = vpack.c.b16 %v1234, %v1226
    %v1531 = vpack.c.b16 %v1235, %v1227
    %v1532 = vpack.c.b16 %v1236, %v1228
    %v1533 = vpack.c.b16 %v1237, %v1229
    %v1534 = vpack.c.b16 %v1238, %v1230
    %v1535 = vpack.c.b16 %v1239, %v1231
    %v1536 = vpack.c.b16 %v1240, %v1232
    %v1537 = vpack.c.b16 %v1241, %v1233
    %v1538 = vpack.c.b16 %v1250, %v1242
    %v1539 = vpack.c.b16 %v1251, %v1243
    %v1540 = vpack.c.b16 %v1252, %v1244
    %v1541 = vpack.c.b16 %v1253, %v1245
    %v1542 = vpack.c.b16 %v1254, %v1246
    %v1543 = vpack.c.b16 %v1255, %v1247
    %v1544 = vpack.c.b16 %v1256, %v1248
    %v1545 = vpack.c.b16 %v1257, %v1249
    %v1546 = vpack.c.b16 %v1266, %v1258
    %v1547 = vpack.c.b16 %v1267, %v1259
    %v1548 = vpack.c.b16 %v1268, %v1260
    %v1549 = vpack.c.b16 %v1269, %v1261
    %v1550 = vpack.c.b16 %v1270, %v1262
    %v1551 = vpack.c.b16 %v1271, %v1263
    %v1552 = vpack.c.b16 %v1272, %v1264
    %v1553 = vpack.c.b16 %v1273, %v1265
    %v1554 = vpack.c.b16 %v1282, %v1274
    %v1555 = vpack.c.b16 %v1283, %v1275
    %v1556 = vpack.c.b16 %v1284, %v1276
    %v1557 = vpack.c.b16 %v1285, %v1277
    %v1558 = vpack.c.b16 %v1286, %v1278
    %v1559 = vpack.c.b16 %v1287, %v1279
    %v1560 = vpack.c.b16 %v1288, %v1280
    %v1561 = vpack.c.b16 %v1289, %v1281
    %v1562 = vpack.c.b16 %v1298, %v1290
    %v1563 = vpack.c.b16 %v1299, %v1291
    %v1564 = vpack.c.b16 %v1300, %v1292
    %v1565 = vpack.c.b16 %v1301, %v1293
    %v1566 = vpack.c.b16 %v1302, %v1294
    %v1567 = vpack.c.b16 %v1303, %v1295
    %v1568 = vpack.c.b16 %v1304, %v1296
    %v1569 = vpack.c.b16 %v1305, %v1297
    %v1570 = vpack.c.b16 %v1314, %v1306
    %v1571 = vpack.c.b16 %v1315, %v1307
    %v1572 = vpack.c.b16 %v1316, %v1308
    %v1573 = vpack.c.b16 %v1317, %v1309
    %v1574 = vpack.c.b16 %v1318, %v1310
    %v1575 = vpack.c.b16 %v1319, %v1311
    %v1576 = vpack.c.b16 %v1320, %v1312
    %v1577 = vpack.c.b16 %v1321, %v1313
    %1834 = vmatprep.subr.bf16.mxu0 %v1379
    %1835 = vmatpush1.bf16.msra.mxu0 %v1378
    %1836 = vmatprep.subr.bf16.mxu0 %v1371
    %1837 = vmatpush1.bf16.msra.mxu0 %v1370
    %1838 = vmatprep.subr.bf16.mxu0 %v1363
    %1839 = vmatpush1.bf16.msra.mxu0 %v1362
    %1840 = vmatprep.subr.bf16.mxu0 %v1355
    %1841 = vmatpush1.bf16.msra.mxu0 %v1354
    %1842 = vmatprep.subr.bf16.mxu0 %v1347
    %1843 = vmatpush1.bf16.msra.mxu0 %v1346
    %1844 = vmatprep.subr.bf16.mxu0 %v1339
    %1845 = vmatpush1.bf16.msra.mxu0 %v1338
    %1846 = vmatprep.subr.bf16.mxu0 %v1331
    %1847 = vmatpush1.bf16.msra.mxu0 %v1330
    %1848 = vmatprep.subr.bf16.mxu0 %v1323
    %1849 = vmatpush1.bf16.msra.mxu0 %v1322
    %1850 = vmatprep.subr.bf16.mxu0 %v1443
    %1851 = vmatpush2.bf16.msra.mxu0 %v1442
    %1852 = vmatprep.subr.bf16.mxu0 %v1435
    %1853 = vmatpush2.bf16.msra.mxu0 %v1434
    %1854 = vmatprep.subr.bf16.mxu0 %v1427
    %1855 = vmatpush2.bf16.msra.mxu0 %v1426
    %1856 = vmatprep.subr.bf16.mxu0 %v1419
    %1857 = vmatpush2.bf16.msra.mxu0 %v1418
    %1858 = vmatprep.subr.bf16.mxu0 %v1411
    %1859 = vmatpush2.bf16.msra.mxu0 %v1410
    %1860 = vmatprep.subr.bf16.mxu0 %v1403
    %1861 = vmatpush2.bf16.msra.mxu0 %v1402
    %1862 = vmatprep.subr.bf16.mxu0 %v1395
    %1863 = vmatpush2.bf16.msra.mxu0 %v1394
    %1864 = vmatprep.subr.bf16.mxu0 %v1387
    %1865 = vmatpush2.bf16.msra.mxu0 %v1386
    %1866 = vmatprep.mubr.bf16.mxu0 %v291
    %1867 = vmatmul.mubr.bf16.gmra.mxu0 %v290
    %v1868 = vpop.f32.mrf.mxu0
    %v1869 = vadd.f32 0.0, %v1868
    %v1870 = vpop.f32.mrf.mxu0
    %v1871 = vadd.f32 0.0, %v1870
    %v1872 = vpop.f32.mrf.mxu0
    %v1873 = vadd.f32 0.0, %v1872
    %v1874 = vpop.f32.mrf.mxu0
    %v1875 = vadd.f32 0.0, %v1874
    %1876 = vmatprep.mubr.bf16.mxu0 %v295
    %1877 = vmatmul.mubr.bf16.gmra.mxu0 %v294
    %v1878 = vpop.f32.mrf.mxu0
    %v1879 = vadd.f32 0.0, %v1878
    %v1880 = vpop.f32.mrf.mxu0
    %v1881 = vadd.f32 0.0, %v1880
    %v1882 = vpop.f32.mrf.mxu0
    %v1883 = vadd.f32 0.0, %v1882
    %v1884 = vpop.f32.mrf.mxu0
    %v1885 = vadd.f32 0.0, %v1884
    %1886 = vdwg.mxu0
    %1887 = vmatprep.subr.bf16.mxu0 %v1507
    %1888 = vmatpush1.bf16.msra.mxu0 %v1506
    %1889 = vmatprep.subr.bf16.mxu0 %v1499
    %1890 = vmatpush1.bf16.msra.mxu0 %v1498
    %1891 = vmatprep.subr.bf16.mxu0 %v1491
    %1892 = vmatpush1.bf16.msra.mxu0 %v1490
    %1893 = vmatprep.subr.bf16.mxu0 %v1483
    %1894 = vmatpush1.bf16.msra.mxu0 %v1482
    %1895 = vmatprep.subr.bf16.mxu0 %v1475
    %1896 = vmatpush1.bf16.msra.mxu0 %v1474
    %1897 = vmatprep.subr.bf16.mxu0 %v1467
    %1898 = vmatpush1.bf16.msra.mxu0 %v1466
    %1899 = vmatprep.subr.bf16.mxu0 %v1459
    %1900 = vmatpush1.bf16.msra.mxu0 %v1458
    %1901 = vmatprep.subr.bf16.mxu0 %v1451
    %1902 = vmatpush1.bf16.msra.mxu0 %v1450
    %1903 = vmatprep.subr.bf16.mxu0 %v1571
    %1904 = vmatpush2.bf16.msra.mxu0 %v1570
    %1905 = vmatprep.subr.bf16.mxu0 %v1563
    %1906 = vmatpush2.bf16.msra.mxu0 %v1562
    %1907 = vmatprep.subr.bf16.mxu0 %v1555
    %1908 = vmatpush2.bf16.msra.mxu0 %v1554
    %1909 = vmatprep.subr.bf16.mxu0 %v1547
    %1910 = vmatpush2.bf16.msra.mxu0 %v1546
    %1911 = vmatprep.subr.bf16.mxu0 %v1539
    %1912 = vmatpush2.bf16.msra.mxu0 %v1538
    %1913 = vmatprep.subr.bf16.mxu0 %v1531
    %1914 = vmatpush2.bf16.msra.mxu0 %v1530
    %1915 = vmatprep.subr.bf16.mxu0 %v1523
    %1916 = vmatpush2.bf16.msra.mxu0 %v1522
    %1917 = vmatprep.subr.bf16.mxu0 %v1515
    %1918 = vmatpush2.bf16.msra.mxu0 %v1514
    %1919 = vmatprep.mubr.bf16.mxu0 %v293
    %1920 = vmatmul.mubr.bf16.gmra.mxu0 %v292
    %v1921 = vpop.f32.mrf.mxu0
    %v1922 = vadd.f32 %v1869, %v1921
    %v1923 = vpop.f32.mrf.mxu0
    %v1924 = vadd.f32 %v1871, %v1923
    %v1925 = vpop.f32.mrf.mxu0
    %v1926 = vadd.f32 %v1873, %v1925
    %v1927 = vpop.f32.mrf.mxu0
    %v1928 = vadd.f32 %v1875, %v1927
    %1929 = vmatprep.mubr.bf16.mxu0 %v297
    %1930 = vmatmul.mubr.bf16.gmra.mxu0 %v296
    %v1931 = vpop.f32.mrf.mxu0
    %v1932 = vadd.f32 %v1879, %v1931
    %v1933 = vpop.f32.mrf.mxu0
    %v1934 = vadd.f32 %v1881, %v1933
    %v1935 = vpop.f32.mrf.mxu0
    %v1936 = vadd.f32 %v1883, %v1935
    %v1937 = vpop.f32.mrf.mxu0
    %v1938 = vadd.f32 %v1885, %v1937
    %1939 = vdwg.mxu0
    %1940 = vmatprep.subr.bf16.mxu0 %v1381
    %1941 = vmatpush1.bf16.msra.mxu0 %v1380
    %1942 = vmatprep.subr.bf16.mxu0 %v1373
    %1943 = vmatpush1.bf16.msra.mxu0 %v1372
    %1944 = vmatprep.subr.bf16.mxu0 %v1365
    %1945 = vmatpush1.bf16.msra.mxu0 %v1364
    %1946 = vmatprep.subr.bf16.mxu0 %v1357
    %1947 = vmatpush1.bf16.msra.mxu0 %v1356
    %1948 = vmatprep.subr.bf16.mxu0 %v1349
    %1949 = vmatpush1.bf16.msra.mxu0 %v1348
    %1950 = vmatprep.subr.bf16.mxu0 %v1341
    %1951 = vmatpush1.bf16.msra.mxu0 %v1340
    %1952 = vmatprep.subr.bf16.mxu0 %v1333
    %1953 = vmatpush1.bf16.msra.mxu0 %v1332
    %1954 = vmatprep.subr.bf16.mxu0 %v1325
    %1955 = vmatpush1.bf16.msra.mxu0 %v1324
    %1956 = vmatprep.subr.bf16.mxu0 %v1445
    %1957 = vmatpush2.bf16.msra.mxu0 %v1444
    %1958 = vmatprep.subr.bf16.mxu0 %v1437
    %1959 = vmatpush2.bf16.msra.mxu0 %v1436
    %1960 = vmatprep.subr.bf16.mxu0 %v1429
    %1961 = vmatpush2.bf16.msra.mxu0 %v1428
    %1962 = vmatprep.subr.bf16.mxu0 %v1421
    %1963 = vmatpush2.bf16.msra.mxu0 %v1420
    %1964 = vmatprep.subr.bf16.mxu0 %v1413
    %1965 = vmatpush2.bf16.msra.mxu0 %v1412
    %1966 = vmatprep.subr.bf16.mxu0 %v1405
    %1967 = vmatpush2.bf16.msra.mxu0 %v1404
    %1968 = vmatprep.subr.bf16.mxu0 %v1397
    %1969 = vmatpush2.bf16.msra.mxu0 %v1396
    %1970 = vmatprep.subr.bf16.mxu0 %v1389
    %1971 = vmatpush2.bf16.msra.mxu0 %v1388
    %1972 = vmatprep.mubr.bf16.mxu0 %v291
    %1973 = vmatmul.mubr.bf16.gmra.mxu0 %v290
    %v1974 = vpop.f32.mrf.mxu0
    %v1975 = vadd.f32 0.0, %v1974
    %v1976 = vpop.f32.mrf.mxu0
    %v1977 = vadd.f32 0.0, %v1976
    %v1978 = vpop.f32.mrf.mxu0
    %v1979 = vadd.f32 0.0, %v1978
    %v1980 = vpop.f32.mrf.mxu0
    %v1981 = vadd.f32 0.0, %v1980
    %1982 = vmatprep.mubr.bf16.mxu0 %v295
    %1983 = vmatmul.mubr.bf16.gmra.mxu0 %v294
    %v1984 = vpop.f32.mrf.mxu0
    %v1985 = vadd.f32 0.0, %v1984
    %v1986 = vpop.f32.mrf.mxu0
    %v1987 = vadd.f32 0.0, %v1986
    %v1988 = vpop.f32.mrf.mxu0
    %v1989 = vadd.f32 0.0, %v1988
    %v1990 = vpop.f32.mrf.mxu0
    %v1991 = vadd.f32 0.0, %v1990
    %1992 = vdwg.mxu0
    %1993 = vmatprep.subr.bf16.mxu0 %v1509
    %1994 = vmatpush1.bf16.msra.mxu0 %v1508
    %1995 = vmatprep.subr.bf16.mxu0 %v1501
    %1996 = vmatpush1.bf16.msra.mxu0 %v1500
    %1997 = vmatprep.subr.bf16.mxu0 %v1493
    %1998 = vmatpush1.bf16.msra.mxu0 %v1492
    %1999 = vmatprep.subr.bf16.mxu0 %v1485
    %2000 = vmatpush1.bf16.msra.mxu0 %v1484
    %2001 = vmatprep.subr.bf16.mxu0 %v1477
    %2002 = vmatpush1.bf16.msra.mxu0 %v1476
    %2003 = vmatprep.subr.bf16.mxu0 %v1469
    %2004 = vmatpush1.bf16.msra.mxu0 %v1468
    %2005 = vmatprep.subr.bf16.mxu0 %v1461
    %2006 = vmatpush1.bf16.msra.mxu0 %v1460
    %2007 = vmatprep.subr.bf16.mxu0 %v1453
    %2008 = vmatpush1.bf16.msra.mxu0 %v1452
    %2009 = vmatprep.subr.bf16.mxu0 %v1573
    %2010 = vmatpush2.bf16.msra.mxu0 %v1572
    %2011 = vmatprep.subr.bf16.mxu0 %v1565
    %2012 = vmatpush2.bf16.msra.mxu0 %v1564
    %2013 = vmatprep.subr.bf16.mxu0 %v1557
    %2014 = vmatpush2.bf16.msra.mxu0 %v1556
    %2015 = vmatprep.subr.bf16.mxu0 %v1549
    %2016 = vmatpush2.bf16.msra.mxu0 %v1548
    %2017 = vmatprep.subr.bf16.mxu0 %v1541
    %2018 = vmatpush2.bf16.msra.mxu0 %v1540
    %2019 = vmatprep.subr.bf16.mxu0 %v1533
    %2020 = vmatpush2.bf16.msra.mxu0 %v1532
    %2021 = vmatprep.subr.bf16.mxu0 %v1525
    %2022 = vmatpush2.bf16.msra.mxu0 %v1524
    %2023 = vmatprep.subr.bf16.mxu0 %v1517
    %2024 = vmatpush2.bf16.msra.mxu0 %v1516
    %2025 = vmatprep.mubr.bf16.mxu0 %v293
    %2026 = vmatmul.mubr.bf16.gmra.mxu0 %v292
    %v2027 = vpop.f32.mrf.mxu0
    %v2028 = vadd.f32 %v1975, %v2027
    %v2029 = vpop.f32.mrf.mxu0
    %v2030 = vadd.f32 %v1977, %v2029
    %v2031 = vpop.f32.mrf.mxu0
    %v2032 = vadd.f32 %v1979, %v2031
    %v2033 = vpop.f32.mrf.mxu0
    %v2034 = vadd.f32 %v1981, %v2033
    %2035 = vmatprep.mubr.bf16.mxu0 %v297
    %2036 = vmatmul.mubr.bf16.gmra.mxu0 %v296
    %v2037 = vpop.f32.mrf.mxu0
    %v2038 = vadd.f32 %v1985, %v2037
    %v2039 = vpop.f32.mrf.mxu0
    %v2040 = vadd.f32 %v1987, %v2039
    %v2041 = vpop.f32.mrf.mxu0
    %v2042 = vadd.f32 %v1989, %v2041
    %v2043 = vpop.f32.mrf.mxu0
    %v2044 = vadd.f32 %v1991, %v2043
    %2045 = vdwg.mxu0
    %2046 = vmatprep.subr.bf16.mxu0 %v1383
    %2047 = vmatpush1.bf16.msra.mxu0 %v1382
    %2048 = vmatprep.subr.bf16.mxu0 %v1375
    %2049 = vmatpush1.bf16.msra.mxu0 %v1374
    %2050 = vmatprep.subr.bf16.mxu0 %v1367
    %2051 = vmatpush1.bf16.msra.mxu0 %v1366
    %2052 = vmatprep.subr.bf16.mxu0 %v1359
    %2053 = vmatpush1.bf16.msra.mxu0 %v1358
    %2054 = vmatprep.subr.bf16.mxu0 %v1351
    %2055 = vmatpush1.bf16.msra.mxu0 %v1350
    %2056 = vmatprep.subr.bf16.mxu0 %v1343
    %2057 = vmatpush1.bf16.msra.mxu0 %v1342
    %2058 = vmatprep.subr.bf16.mxu0 %v1335
    %2059 = vmatpush1.bf16.msra.mxu0 %v1334
    %2060 = vmatprep.subr.bf16.mxu0 %v1327
    %2061 = vmatpush1.bf16.msra.mxu0 %v1326
    %2062 = vmatprep.subr.bf16.mxu0 %v1447
    %2063 = vmatpush2.bf16.msra.mxu0 %v1446
    %2064 = vmatprep.subr.bf16.mxu0 %v1439
    %2065 = vmatpush2.bf16.msra.mxu0 %v1438
    %2066 = vmatprep.subr.bf16.mxu0 %v1431
    %2067 = vmatpush2.bf16.msra.mxu0 %v1430
    %2068 = vmatprep.subr.bf16.mxu0 %v1423
    %2069 = vmatpush2.bf16.msra.mxu0 %v1422
    %2070 = vmatprep.subr.bf16.mxu0 %v1415
    %2071 = vmatpush2.bf16.msra.mxu0 %v1414
    %2072 = vmatprep.subr.bf16.mxu0 %v1407
    %2073 = vmatpush2.bf16.msra.mxu0 %v1406
    %2074 = vmatprep.subr.bf16.mxu0 %v1399
    %2075 = vmatpush2.bf16.msra.mxu0 %v1398
    %2076 = vmatprep.subr.bf16.mxu0 %v1391
    %2077 = vmatpush2.bf16.msra.mxu0 %v1390
    %2078 = vmatprep.mubr.bf16.mxu0 %v291
    %2079 = vmatmul.mubr.bf16.gmra.mxu0 %v290
    %v2080 = vpop.f32.mrf.mxu0
    %v2081 = vadd.f32 0.0, %v2080
    %v2082 = vpop.f32.mrf.mxu0
    %v2083 = vadd.f32 0.0, %v2082
    %v2084 = vpop.f32.mrf.mxu0
    %v2085 = vadd.f32 0.0, %v2084
    %v2086 = vpop.f32.mrf.mxu0
    %v2087 = vadd.f32 0.0, %v2086
    %2088 = vmatprep.mubr.bf16.mxu0 %v295
    %2089 = vmatmul.mubr.bf16.gmra.mxu0 %v294
    %v2090 = vpop.f32.mrf.mxu0
    %v2091 = vadd.f32 0.0, %v2090
    %v2092 = vpop.f32.mrf.mxu0
    %v2093 = vadd.f32 0.0, %v2092
    %v2094 = vpop.f32.mrf.mxu0
    %v2095 = vadd.f32 0.0, %v2094
    %v2096 = vpop.f32.mrf.mxu0
    %v2097 = vadd.f32 0.0, %v2096
    %2098 = vdwg.mxu0
    %2099 = vmatprep.subr.bf16.mxu0 %v1511
    %2100 = vmatpush1.bf16.msra.mxu0 %v1510
    %2101 = vmatprep.subr.bf16.mxu0 %v1503
    %2102 = vmatpush1.bf16.msra.mxu0 %v1502
    %2103 = vmatprep.subr.bf16.mxu0 %v1495
    %2104 = vmatpush1.bf16.msra.mxu0 %v1494
    %2105 = vmatprep.subr.bf16.mxu0 %v1487
    %2106 = vmatpush1.bf16.msra.mxu0 %v1486
    %2107 = vmatprep.subr.bf16.mxu0 %v1479
    %2108 = vmatpush1.bf16.msra.mxu0 %v1478
    %2109 = vmatprep.subr.bf16.mxu0 %v1471
    %2110 = vmatpush1.bf16.msra.mxu0 %v1470
    %2111 = vmatprep.subr.bf16.mxu0 %v1463
    %2112 = vmatpush1.bf16.msra.mxu0 %v1462
    %2113 = vmatprep.subr.bf16.mxu0 %v1455
    %2114 = vmatpush1.bf16.msra.mxu0 %v1454
    %2115 = vmatprep.subr.bf16.mxu0 %v1575
    %2116 = vmatpush2.bf16.msra.mxu0 %v1574
    %2117 = vmatprep.subr.bf16.mxu0 %v1567
    %2118 = vmatpush2.bf16.msra.mxu0 %v1566
    %2119 = vmatprep.subr.bf16.mxu0 %v1559
    %2120 = vmatpush2.bf16.msra.mxu0 %v1558
    %2121 = vmatprep.subr.bf16.mxu0 %v1551
    %2122 = vmatpush2.bf16.msra.mxu0 %v1550
    %2123 = vmatprep.subr.bf16.mxu0 %v1543
    %2124 = vmatpush2.bf16.msra.mxu0 %v1542
    %2125 = vmatprep.subr.bf16.mxu0 %v1535
    %2126 = vmatpush2.bf16.msra.mxu0 %v1534
    %2127 = vmatprep.subr.bf16.mxu0 %v1527
    %2128 = vmatpush2.bf16.msra.mxu0 %v1526
    %2129 = vmatprep.subr.bf16.mxu0 %v1519
    %2130 = vmatpush2.bf16.msra.mxu0 %v1518
    %2131 = vmatprep.mubr.bf16.mxu0 %v293
    %2132 = vmatmul.mubr.bf16.gmra.mxu0 %v292
    %v2133 = vpop.f32.mrf.mxu0
    %v2134 = vadd.f32 %v2081, %v2133
    %v2135 = vpop.f32.mrf.mxu0
    %v2136 = vadd.f32 %v2083, %v2135
    %v2137 = vpop.f32.mrf.mxu0
    %v2138 = vadd.f32 %v2085, %v2137
    %v2139 = vpop.f32.mrf.mxu0
    %v2140 = vadd.f32 %v2087, %v2139
    %2141 = vmatprep.mubr.bf16.mxu0 %v297
    %2142 = vmatmul.mubr.bf16.gmra.mxu0 %v296
    %v2143 = vpop.f32.mrf.mxu0
    %v2144 = vadd.f32 %v2091, %v2143
    %v2145 = vpop.f32.mrf.mxu0
    %v2146 = vadd.f32 %v2093, %v2145
    %v2147 = vpop.f32.mrf.mxu0
    %v2148 = vadd.f32 %v2095, %v2147
    %v2149 = vpop.f32.mrf.mxu0
    %v2150 = vadd.f32 %v2097, %v2149
    %2151 = vdwg.mxu0
    %2152 = vmatprep.subr.bf16.mxu0 %v1385
    %2153 = vmatpush1.bf16.msra.mxu0 %v1384
    %2154 = vmatprep.subr.bf16.mxu0 %v1377
    %2155 = vmatpush1.bf16.msra.mxu0 %v1376
    %2156 = vmatprep.subr.bf16.mxu0 %v1369
    %2157 = vmatpush1.bf16.msra.mxu0 %v1368
    %2158 = vmatprep.subr.bf16.mxu0 %v1361
    %2159 = vmatpush1.bf16.msra.mxu0 %v1360
    %2160 = vmatprep.subr.bf16.mxu0 %v1353
    %2161 = vmatpush1.bf16.msra.mxu0 %v1352
    %2162 = vmatprep.subr.bf16.mxu0 %v1345
    %2163 = vmatpush1.bf16.msra.mxu0 %v1344
    %2164 = vmatprep.subr.bf16.mxu0 %v1337
    %2165 = vmatpush1.bf16.msra.mxu0 %v1336
    %2166 = vmatprep.subr.bf16.mxu0 %v1329
    %2167 = vmatpush1.bf16.msra.mxu0 %v1328
    %2168 = vmatprep.subr.bf16.mxu0 %v1449
    %2169 = vmatpush2.bf16.msra.mxu0 %v1448
    %2170 = vmatprep.subr.bf16.mxu0 %v1441
    %2171 = vmatpush2.bf16.msra.mxu0 %v1440
    %2172 = vmatprep.subr.bf16.mxu0 %v1433
    %2173 = vmatpush2.bf16.msra.mxu0 %v1432
    %2174 = vmatprep.subr.bf16.mxu0 %v1425
    %2175 = vmatpush2.bf16.msra.mxu0 %v1424
    %2176 = vmatprep.subr.bf16.mxu0 %v1417
    %2177 = vmatpush2.bf16.msra.mxu0 %v1416
    %2178 = vmatprep.subr.bf16.mxu0 %v1409
    %2179 = vmatpush2.bf16.msra.mxu0 %v1408
    %2180 = vmatprep.subr.bf16.mxu0 %v1401
    %2181 = vmatpush2.bf16.msra.mxu0 %v1400
    %2182 = vmatprep.subr.bf16.mxu0 %v1393
    %2183 = vmatpush2.bf16.msra.mxu0 %v1392
    %2184 = vmatprep.mubr.bf16.mxu0 %v291
    %2185 = vmatmul.mubr.bf16.gmra.mxu0 %v290
    %v2186 = vpop.f32.mrf.mxu0
    %v2187 = vadd.f32 0.0, %v2186
    %v2188 = vpop.f32.mrf.mxu0
    %v2189 = vadd.f32 0.0, %v2188
    %v2190 = vpop.f32.mrf.mxu0
    %v2191 = vadd.f32 0.0, %v2190
    %v2192 = vpop.f32.mrf.mxu0
    %v2193 = vadd.f32 0.0, %v2192
    %2194 = vmatprep.mubr.bf16.mxu0 %v295
    %2195 = vmatmul.mubr.bf16.gmra.mxu0 %v294
    %v2196 = vpop.f32.mrf.mxu0
    %v2197 = vadd.f32 0.0, %v2196
    %v2198 = vpop.f32.mrf.mxu0
    %v2199 = vadd.f32 0.0, %v2198
    %v2200 = vpop.f32.mrf.mxu0
    %v2201 = vadd.f32 0.0, %v2200
    %v2202 = vpop.f32.mrf.mxu0
    %v2203 = vadd.f32 0.0, %v2202
    %2204 = vdwg.mxu0
    %2205 = vmatprep.subr.bf16.mxu0 %v1513
    %2206 = vmatpush1.bf16.msra.mxu0 %v1512
    %2207 = vmatprep.subr.bf16.mxu0 %v1505
    %2208 = vmatpush1.bf16.msra.mxu0 %v1504
    %2209 = vmatprep.subr.bf16.mxu0 %v1497
    %2210 = vmatpush1.bf16.msra.mxu0 %v1496
    %2211 = vmatprep.subr.bf16.mxu0 %v1489
    %2212 = vmatpush1.bf16.msra.mxu0 %v1488
    %2213 = vmatprep.subr.bf16.mxu0 %v1481
    %2214 = vmatpush1.bf16.msra.mxu0 %v1480
    %2215 = vmatprep.subr.bf16.mxu0 %v1473
    %2216 = vmatpush1.bf16.msra.mxu0 %v1472
    %2217 = vmatprep.subr.bf16.mxu0 %v1465
    %2218 = vmatpush1.bf16.msra.mxu0 %v1464
    %2219 = vmatprep.subr.bf16.mxu0 %v1457
    %2220 = vmatpush1.bf16.msra.mxu0 %v1456
    %2221 = vmatprep.subr.bf16.mxu0 %v1577
    %2222 = vmatpush2.bf16.msra.mxu0 %v1576
    %2223 = vmatprep.subr.bf16.mxu0 %v1569
    %2224 = vmatpush2.bf16.msra.mxu0 %v1568
    %2225 = vmatprep.subr.bf16.mxu0 %v1561
    %2226 = vmatpush2.bf16.msra.mxu0 %v1560
    %2227 = vmatprep.subr.bf16.mxu0 %v1553
    %2228 = vmatpush2.bf16.msra.mxu0 %v1552
    %2229 = vmatprep.subr.bf16.mxu0 %v1545
    %2230 = vmatpush2.bf16.msra.mxu0 %v1544
    %2231 = vmatprep.subr.bf16.mxu0 %v1537
    %2232 = vmatpush2.bf16.msra.mxu0 %v1536
    %2233 = vmatprep.subr.bf16.mxu0 %v1529
    %2234 = vmatpush2.bf16.msra.mxu0 %v1528
    %2235 = vmatprep.subr.bf16.mxu0 %v1521
    %2236 = vmatpush2.bf16.msra.mxu0 %v1520
    %2237 = vmatprep.mubr.bf16.mxu0 %v293
    %2238 = vmatmul.mubr.bf16.gmra.mxu0 %v292
    %v2239 = vpop.f32.mrf.mxu0
    %v2240 = vadd.f32 %v2187, %v2239
    %v2241 = vpop.f32.mrf.mxu0
    %v2242 = vadd.f32 %v2189, %v2241
    %v2243 = vpop.f32.mrf.mxu0
    %v2244 = vadd.f32 %v2191, %v2243
    %v2245 = vpop.f32.mrf.mxu0
    %v2246 = vadd.f32 %v2193, %v2245
    %2247 = vmatprep.mubr.bf16.mxu0 %v297
    %2248 = vmatmul.mubr.bf16.gmra.mxu0 %v296
    %v2249 = vpop.f32.mrf.mxu0
    %v2250 = vadd.f32 %v2197, %v2249
    %v2251 = vpop.f32.mrf.mxu0
    %v2252 = vadd.f32 %v2199, %v2251
    %v2253 = vpop.f32.mrf.mxu0
    %v2254 = vadd.f32 %v2201, %v2253
    %v2255 = vpop.f32.mrf.mxu0
    %v2256 = vadd.f32 %v2203, %v2255
    %2257 = vdwg.mxu0
    %v2258 = vpack.c.bf16 %v1926, %v1922
    %v2259 = vpack.c.bf16 %v1928, %v1924
    %v2260 = vpack.c.bf16 %v2032, %v2028
    %v2261 = vpack.c.bf16 %v2034, %v2030
    %v2262 = vpack.c.bf16 %v2138, %v2134
    %v2263 = vpack.c.bf16 %v2140, %v2136
    %v2264 = vpack.c.bf16 %v2244, %v2240
    %v2265 = vpack.c.bf16 %v2246, %v2242
    %v2266 = vpack.c.bf16 %v1936, %v1932
    %v2267 = vpack.c.bf16 %v1938, %v1934
    %v2268 = vpack.c.bf16 %v2042, %v2038
    %v2269 = vpack.c.bf16 %v2044, %v2040
    %v2270 = vpack.c.bf16 %v2148, %v2144
    %v2271 = vpack.c.bf16 %v2150, %v2146
    %v2272 = vpack.c.bf16 %v2254, %v2250
    %v2273 = vpack.c.bf16 %v2256, %v2252
    %v2274 = vld [vmem:[%s4] sm:$0xff]
    %v2276 = vcombine.high %v2274, %v2274
    %v2278 = vunpack.c.l.s4 1966171168
    %v2279 = vunpack.c.0.s8 %v2278
    %v2280 = vlaneseq
    %v2281 = vshrl.u32 %v2280, 7
    %v2282 = vsub.s32 %v2279, %v2281
    %v2283 = vrot.slane %v2274, %v2282
    %v2285 = vunpack.c.l.s4 1966171168
    %v2286 = vunpack.c.0.s8 %v2285
    %v2287 = vlaneseq
    %v2288 = vshrl.u32 %v2287, 7
    %v2289 = vsub.s32 %v2286, %v2288
    %v2290 = vrot.slane %v2276, %v2289
    %v2291 = vcombine.high %v2283, %v2283
    %v2292 = vcombine.high %v2290, %v2290
    %v2294 = vunpack.c.l.s4 1966171168
    %v2295 = vunpack.c.0.s8 %v2294
    %v2296 = vlaneseq
    %v2297 = vshrl.u32 %v2296, 7
    %v2298 = vsub.s32 %v2295, %v2297
    %v2299 = vrot.slane %v2283, %v2298
    %v2301 = vunpack.c.l.s4 1966171168
    %v2302 = vunpack.c.0.s8 %v2301
    %v2303 = vlaneseq
    %v2304 = vshrl.u32 %v2303, 7
    %v2305 = vsub.s32 %v2302, %v2304
    %v2306 = vrot.slane %v2290, %v2305
    %v2308 = vunpack.c.l.s4 1966171168
    %v2309 = vunpack.c.0.s8 %v2308
    %v2310 = vlaneseq
    %v2311 = vshrl.u32 %v2310, 7
    %v2312 = vsub.s32 %v2309, %v2311
    %v2313 = vrot.slane %v2291, %v2312
    %v2315 = vunpack.c.l.s4 1966171168
    %v2316 = vunpack.c.0.s8 %v2315
    %v2317 = vlaneseq
    %v2318 = vshrl.u32 %v2317, 7
    %v2319 = vsub.s32 %v2316, %v2318
    %v2320 = vrot.slane %v2292, %v2319
    %v2321 = vcombine.high %v2299, %v2299
    %v2322 = vcombine.high %v2306, %v2306
    %v2323 = vcombine.high %v2313, %v2313
    %v2324 = vcombine.high %v2320, %v2320
    %v2326 = vpack.i.b16 %v2299, %v2299
    %v2328 = vlaneseq
    %v2329 = vshrl.u32 %v2328, 7
    %v2330 = vsub.s32 0, %v2329
    %v2331 = vrot.slane %v2326, %v2330
    %v2333 = vpack.i.b16 %v2313, %v2313
    %v2335 = vlaneseq
    %v2336 = vshrl.u32 %v2335, 7
    %v2337 = vsub.s32 0, %v2336
    %v2338 = vrot.slane %v2333, %v2337
    %v2340 = vpack.i.b16 %v2321, %v2321
    %v2342 = vlaneseq
    %v2343 = vshrl.u32 %v2342, 7
    %v2344 = vsub.s32 0, %v2343
    %v2345 = vrot.slane %v2340, %v2344
    %v2347 = vpack.i.b16 %v2323, %v2323
    %v2349 = vlaneseq
    %v2350 = vshrl.u32 %v2349, 7
    %v2351 = vsub.s32 0, %v2350
    %v2352 = vrot.slane %v2347, %v2351
    %v2354 = vpack.i.b16 %v2306, %v2306
    %v2356 = vlaneseq
    %v2357 = vshrl.u32 %v2356, 7
    %v2358 = vsub.s32 0, %v2357
    %v2359 = vrot.slane %v2354, %v2358
    %v2361 = vpack.i.b16 %v2320, %v2320
    %v2363 = vlaneseq
    %v2364 = vshrl.u32 %v2363, 7
    %v2365 = vsub.s32 0, %v2364
    %v2366 = vrot.slane %v2361, %v2365
    %v2368 = vpack.i.b16 %v2322, %v2322
    %v2370 = vlaneseq
    %v2371 = vshrl.u32 %v2370, 7
    %v2372 = vsub.s32 0, %v2371
    %v2373 = vrot.slane %v2368, %v2372
    %v2375 = vpack.i.b16 %v2324, %v2324
    %v2377 = vlaneseq
    %v2378 = vshrl.u32 %v2377, 7
    %v2379 = vsub.s32 0, %v2378
    %v2380 = vrot.slane %v2375, %v2379
    %v2381 = vadd.bf16 %v2258, %v2331
    %v2382 = vadd.bf16 %v2259, %v2338
    %v2383 = vadd.bf16 %v2260, %v2345
    %v2384 = vadd.bf16 %v2261, %v2352
    %v2385 = vadd.bf16 %v2262, %v2359
    %v2386 = vadd.bf16 %v2263, %v2366
    %v2387 = vadd.bf16 %v2264, %v2373
    %v2388 = vadd.bf16 %v2265, %v2380
    %v2389 = vadd.bf16 %v2266, %v2331
    %v2390 = vadd.bf16 %v2267, %v2338
    %v2391 = vadd.bf16 %v2268, %v2345
    %v2392 = vadd.bf16 %v2269, %v2352
    %v2393 = vadd.bf16 %v2270, %v2359
    %v2394 = vadd.bf16 %v2271, %v2366
    %v2395 = vadd.bf16 %v2272, %v2373
    %v2396 = vadd.bf16 %v2273, %v2380
    %v2397 = vmax.bf16 %v2381, 0
    %v2398 = vmax.bf16 %v2382, 0
    %v2399 = vmax.bf16 %v2383, 0
    %v2400 = vmax.bf16 %v2384, 0
    %v2401 = vmax.bf16 %v2385, 0
    %v2402 = vmax.bf16 %v2386, 0
    %v2403 = vmax.bf16 %v2387, 0
    %v2404 = vmax.bf16 %v2388, 0
    %v2405 = vmax.bf16 %v2389, 0
    %v2406 = vmax.bf16 %v2390, 0
    %v2407 = vmax.bf16 %v2391, 0
    %v2408 = vmax.bf16 %v2392, 0
    %v2409 = vmax.bf16 %v2393, 0
    %v2410 = vmax.bf16 %v2394, 0
    %v2411 = vmax.bf16 %v2395, 0
    %v2412 = vmax.bf16 %v2396, 0
    %v2413 = vld [vmem:[#allocation7] sm:$0xff]
    %v2414 = vld [vmem:[#allocation7 + $0x8] sm:$0xff]
    %v2415 = vld [vmem:[#allocation7 + $0x10] sm:$0xff]
    %v2416 = vld [vmem:[#allocation7 + $0x18] sm:$0xff]
    %v2417 = vld [vmem:[#allocation7 + $0x20] sm:$0xff]
    %v2418 = vld [vmem:[#allocation7 + $0x28] sm:$0xff]
    %v2419 = vld [vmem:[#allocation7 + $0x30] sm:$0xff]
    %v2420 = vld [vmem:[#allocation7 + $0x38] sm:$0xff]
    %v2421 = vld [vmem:[#allocation7 + $0x40] sm:$0xff]
    %v2422 = vld [vmem:[#allocation7 + $0x48] sm:$0xff]
    %v2423 = vld [vmem:[#allocation7 + $0x50] sm:$0xff]
    %v2424 = vld [vmem:[#allocation7 + $0x58] sm:$0xff]
    %v2425 = vld [vmem:[#allocation7 + $0x60] sm:$0xff]
    %v2426 = vld [vmem:[#allocation7 + $0x68] sm:$0xff]
    %v2427 = vld [vmem:[#allocation7 + $0x70] sm:$0xff]
    %v2428 = vld [vmem:[#allocation7 + $0x78] sm:$0xff]
    %v2429 = vld [vmem:[#allocation7 + $0x80] sm:$0xff]
    %v2430 = vld [vmem:[#allocation7 + $0x88] sm:$0xff]
    %v2431 = vld [vmem:[#allocation7 + $0x90] sm:$0xff]
    %v2432 = vld [vmem:[#allocation7 + $0x98] sm:$0xff]
    %v2433 = vld [vmem:[#allocation7 + $0xa0] sm:$0xff]
    %v2434 = vld [vmem:[#allocation7 + $0xa8] sm:$0xff]
    %v2435 = vld [vmem:[#allocation7 + $0xb0] sm:$0xff]
    %v2436 = vld [vmem:[#allocation7 + $0xb8] sm:$0xff]
    %v2437 = vld [vmem:[#allocation7 + $0xc0] sm:$0xff]
    %v2438 = vld [vmem:[#allocation7 + $0xc8] sm:$0xff]
    %v2439 = vld [vmem:[#allocation7 + $0xd0] sm:$0xff]
    %v2440 = vld [vmem:[#allocation7 + $0xd8] sm:$0xff]
    %v2441 = vld [vmem:[#allocation7 + $0xe0] sm:$0xff]
    %v2442 = vld [vmem:[#allocation7 + $0xe8] sm:$0xff]
    %v2443 = vld [vmem:[#allocation7 + $0xf0] sm:$0xff]
    %v2444 = vld [vmem:[#allocation7 + $0xf8] sm:$0xff]
    %v2445 = vld [vmem:[#allocation7 + $0x100] sm:$0xff]
    %v2446 = vld [vmem:[#allocation7 + $0x108] sm:$0xff]
    %v2447 = vld [vmem:[#allocation7 + $0x110] sm:$0xff]
    %v2448 = vld [vmem:[#allocation7 + $0x118] sm:$0xff]
    %v2449 = vld [vmem:[#allocation7 + $0x120] sm:$0xff]
    %v2450 = vld [vmem:[#allocation7 + $0x128] sm:$0xff]
    %v2451 = vld [vmem:[#allocation7 + $0x130] sm:$0xff]
    %v2452 = vld [vmem:[#allocation7 + $0x138] sm:$0xff]
    %v2453 = vld [vmem:[#allocation7 + $0x140] sm:$0xff]
    %v2454 = vld [vmem:[#allocation7 + $0x148] sm:$0xff]
    %v2455 = vld [vmem:[#allocation7 + $0x150] sm:$0xff]
    %v2456 = vld [vmem:[#allocation7 + $0x158] sm:$0xff]
    %v2457 = vld [vmem:[#allocation7 + $0x160] sm:$0xff]
    %v2458 = vld [vmem:[#allocation7 + $0x168] sm:$0xff]
    %v2459 = vld [vmem:[#allocation7 + $0x170] sm:$0xff]
    %v2460 = vld [vmem:[#allocation7 + $0x178] sm:$0xff]
    %v2461 = vld [vmem:[#allocation7 + $0x180] sm:$0xff]
    %v2462 = vld [vmem:[#allocation7 + $0x188] sm:$0xff]
    %v2463 = vld [vmem:[#allocation7 + $0x190] sm:$0xff]
    %v2464 = vld [vmem:[#allocation7 + $0x198] sm:$0xff]
    %v2465 = vld [vmem:[#allocation7 + $0x1a0] sm:$0xff]
    %v2466 = vld [vmem:[#allocation7 + $0x1a8] sm:$0xff]
    %v2467 = vld [vmem:[#allocation7 + $0x1b0] sm:$0xff]
    %v2468 = vld [vmem:[#allocation7 + $0x1b8] sm:$0xff]
    %v2469 = vld [vmem:[#allocation7 + $0x1c0] sm:$0xff]
    %v2470 = vld [vmem:[#allocation7 + $0x1c8] sm:$0xff]
    %v2471 = vld [vmem:[#allocation7 + $0x1d0] sm:$0xff]
    %v2472 = vld [vmem:[#allocation7 + $0x1d8] sm:$0xff]
    %v2473 = vld [vmem:[#allocation7 + $0x1e0] sm:$0xff]
    %v2474 = vld [vmem:[#allocation7 + $0x1e8] sm:$0xff]
    %v2475 = vld [vmem:[#allocation7 + $0x1f0] sm:$0xff]
    %v2476 = vld [vmem:[#allocation7 + $0x1f8] sm:$0xff]
    %v2477 = vld [vmem:[#allocation7 + $0x200] sm:$0xff]
    %v2478 = vld [vmem:[#allocation7 + $0x208] sm:$0xff]
    %v2479 = vld [vmem:[#allocation7 + $0x210] sm:$0xff]
    %v2480 = vld [vmem:[#allocation7 + $0x218] sm:$0xff]
    %v2481 = vld [vmem:[#allocation7 + $0x220] sm:$0xff]
    %v2482 = vld [vmem:[#allocation7 + $0x228] sm:$0xff]
    %v2483 = vld [vmem:[#allocation7 + $0x230] sm:$0xff]
    %v2484 = vld [vmem:[#allocation7 + $0x238] sm:$0xff]
    %v2485 = vld [vmem:[#allocation7 + $0x240] sm:$0xff]
    %v2486 = vld [vmem:[#allocation7 + $0x248] sm:$0xff]
    %v2487 = vld [vmem:[#allocation7 + $0x250] sm:$0xff]
    %v2488 = vld [vmem:[#allocation7 + $0x258] sm:$0xff]
    %v2489 = vld [vmem:[#allocation7 + $0x260] sm:$0xff]
    %v2490 = vld [vmem:[#allocation7 + $0x268] sm:$0xff]
    %v2491 = vld [vmem:[#allocation7 + $0x270] sm:$0xff]
    %v2492 = vld [vmem:[#allocation7 + $0x278] sm:$0xff]
    %v2493 = vld [vmem:[#allocation7 + $0x280] sm:$0xff]
    %v2494 = vld [vmem:[#allocation7 + $0x288] sm:$0xff]
    %v2495 = vld [vmem:[#allocation7 + $0x290] sm:$0xff]
    %v2496 = vld [vmem:[#allocation7 + $0x298] sm:$0xff]
    %v2497 = vld [vmem:[#allocation7 + $0x2a0] sm:$0xff]
    %v2498 = vld [vmem:[#allocation7 + $0x2a8] sm:$0xff]
    %v2499 = vld [vmem:[#allocation7 + $0x2b0] sm:$0xff]
    %v2500 = vld [vmem:[#allocation7 + $0x2b8] sm:$0xff]
    %v2501 = vld [vmem:[#allocation7 + $0x2c0] sm:$0xff]
    %v2502 = vld [vmem:[#allocation7 + $0x2c8] sm:$0xff]
    %v2503 = vld [vmem:[#allocation7 + $0x2d0] sm:$0xff]
    %v2504 = vld [vmem:[#allocation7 + $0x2d8] sm:$0xff]
    %v2505 = vld [vmem:[#allocation7 + $0x2e0] sm:$0xff]
    %v2506 = vld [vmem:[#allocation7 + $0x2e8] sm:$0xff]
    %v2507 = vld [vmem:[#allocation7 + $0x2f0] sm:$0xff]
    %v2508 = vld [vmem:[#allocation7 + $0x2f8] sm:$0xff]
    %v2509 = vld [vmem:[#allocation7 + $0x300] sm:$0xff]
    %v2510 = vld [vmem:[#allocation7 + $0x308] sm:$0xff]
    %v2511 = vld [vmem:[#allocation7 + $0x310] sm:$0xff]
    %v2512 = vld [vmem:[#allocation7 + $0x318] sm:$0xff]
    %v2513 = vld [vmem:[#allocation7 + $0x320] sm:$0xff]
    %v2514 = vld [vmem:[#allocation7 + $0x328] sm:$0xff]
    %v2515 = vld [vmem:[#allocation7 + $0x330] sm:$0xff]
    %v2516 = vld [vmem:[#allocation7 + $0x338] sm:$0xff]
    %v2517 = vld [vmem:[#allocation7 + $0x340] sm:$0xff]
    %v2518 = vld [vmem:[#allocation7 + $0x348] sm:$0xff]
    %v2519 = vld [vmem:[#allocation7 + $0x350] sm:$0xff]
    %v2520 = vld [vmem:[#allocation7 + $0x358] sm:$0xff]
    %v2521 = vld [vmem:[#allocation7 + $0x360] sm:$0xff]
    %v2522 = vld [vmem:[#allocation7 + $0x368] sm:$0xff]
    %v2523 = vld [vmem:[#allocation7 + $0x370] sm:$0xff]
    %v2524 = vld [vmem:[#allocation7 + $0x378] sm:$0xff]
    %v2525 = vld [vmem:[#allocation7 + $0x380] sm:$0xff]
    %v2526 = vld [vmem:[#allocation7 + $0x388] sm:$0xff]
    %v2527 = vld [vmem:[#allocation7 + $0x390] sm:$0xff]
    %v2528 = vld [vmem:[#allocation7 + $0x398] sm:$0xff]
    %v2529 = vld [vmem:[#allocation7 + $0x3a0] sm:$0xff]
    %v2530 = vld [vmem:[#allocation7 + $0x3a8] sm:$0xff]
    %v2531 = vld [vmem:[#allocation7 + $0x3b0] sm:$0xff]
    %v2532 = vld [vmem:[#allocation7 + $0x3b8] sm:$0xff]
    %v2533 = vld [vmem:[#allocation7 + $0x3c0] sm:$0xff]
    %v2534 = vld [vmem:[#allocation7 + $0x3c8] sm:$0xff]
    %v2535 = vld [vmem:[#allocation7 + $0x3d0] sm:$0xff]
    %v2536 = vld [vmem:[#allocation7 + $0x3d8] sm:$0xff]
    %v2537 = vld [vmem:[#allocation7 + $0x3e0] sm:$0xff]
    %v2538 = vld [vmem:[#allocation7 + $0x3e8] sm:$0xff]
    %v2539 = vld [vmem:[#allocation7 + $0x3f0] sm:$0xff]
    %v2540 = vld [vmem:[#allocation7 + $0x3f8] sm:$0xff]
    %v2541 = vld [vmem:[%s6] sm:$0x3]
    %v2543 = vlaneseq
    %v2544 = vshrl.u32 %v2543, 7
    %v2545 = vsub.s32 0, %v2544
    %v2546 = vrot.slane %v2541, %v2545
    %v2547 = vlaneseq
    %v2548 = vshrl.u32 %v2547, 7
    %v2549 = vsub.s32 1, %v2548
    %v2550 = vrot.slane %v2541, %v2549
    %v2681 = vunpack.c.l.b16 %v2413
    %v2682 = vunpack.c.h.b16 %v2413
    %v2683 = vunpack.c.l.b16 %v2414
    %v2684 = vunpack.c.h.b16 %v2414
    %v2685 = vunpack.c.l.b16 %v2415
    %v2686 = vunpack.c.h.b16 %v2415
    %v2687 = vunpack.c.l.b16 %v2416
    %v2688 = vunpack.c.h.b16 %v2416
    %v2689 = vunpack.c.l.b16 %v2417
    %v2690 = vunpack.c.h.b16 %v2417
    %v2691 = vunpack.c.l.b16 %v2418
    %v2692 = vunpack.c.h.b16 %v2418
    %v2693 = vunpack.c.l.b16 %v2419
    %v2694 = vunpack.c.h.b16 %v2419
    %v2695 = vunpack.c.l.b16 %v2420
    %v2696 = vunpack.c.h.b16 %v2420
    %v2697 = vunpack.c.l.b16 %v2421
    %v2698 = vunpack.c.h.b16 %v2421
    %v2699 = vunpack.c.l.b16 %v2422
    %v2700 = vunpack.c.h.b16 %v2422
    %v2701 = vunpack.c.l.b16 %v2423
    %v2702 = vunpack.c.h.b16 %v2423
    %v2703 = vunpack.c.l.b16 %v2424
    %v2704 = vunpack.c.h.b16 %v2424
    %v2705 = vunpack.c.l.b16 %v2425
    %v2706 = vunpack.c.h.b16 %v2425
    %v2707 = vunpack.c.l.b16 %v2426
    %v2708 = vunpack.c.h.b16 %v2426
    %v2709 = vunpack.c.l.b16 %v2427
    %v2710 = vunpack.c.h.b16 %v2427
    %v2711 = vunpack.c.l.b16 %v2428
    %v2712 = vunpack.c.h.b16 %v2428
    %v2713 = vunpack.c.l.b16 %v2429
    %v2714 = vunpack.c.h.b16 %v2429
    %v2715 = vunpack.c.l.b16 %v2430
    %v2716 = vunpack.c.h.b16 %v2430
    %v2717 = vunpack.c.l.b16 %v2431
    %v2718 = vunpack.c.h.b16 %v2431
    %v2719 = vunpack.c.l.b16 %v2432
    %v2720 = vunpack.c.h.b16 %v2432
    %v2721 = vunpack.c.l.b16 %v2433
    %v2722 = vunpack.c.h.b16 %v2433
    %v2723 = vunpack.c.l.b16 %v2434
    %v2724 = vunpack.c.h.b16 %v2434
    %v2725 = vunpack.c.l.b16 %v2435
    %v2726 = vunpack.c.h.b16 %v2435
    %v2727 = vunpack.c.l.b16 %v2436
    %v2728 = vunpack.c.h.b16 %v2436
    %v2729 = vunpack.c.l.b16 %v2437
    %v2730 = vunpack.c.h.b16 %v2437
    %v2731 = vunpack.c.l.b16 %v2438
    %v2732 = vunpack.c.h.b16 %v2438
    %v2733 = vunpack.c.l.b16 %v2439
    %v2734 = vunpack.c.h.b16 %v2439
    %v2735 = vunpack.c.l.b16 %v2440
    %v2736 = vunpack.c.h.b16 %v2440
    %v2737 = vunpack.c.l.b16 %v2441
    %v2738 = vunpack.c.h.b16 %v2441
    %v2739 = vunpack.c.l.b16 %v2442
    %v2740 = vunpack.c.h.b16 %v2442
    %v2741 = vunpack.c.l.b16 %v2443
    %v2742 = vunpack.c.h.b16 %v2443
    %v2743 = vunpack.c.l.b16 %v2444
    %v2744 = vunpack.c.h.b16 %v2444
    %v2745 = vunpack.c.l.b16 %v2445
    %v2746 = vunpack.c.h.b16 %v2445
    %v2747 = vunpack.c.l.b16 %v2446
    %v2748 = vunpack.c.h.b16 %v2446
    %v2749 = vunpack.c.l.b16 %v2447
    %v2750 = vunpack.c.h.b16 %v2447
    %v2751 = vunpack.c.l.b16 %v2448
    %v2752 = vunpack.c.h.b16 %v2448
    %v2753 = vunpack.c.l.b16 %v2449
    %v2754 = vunpack.c.h.b16 %v2449
    %v2755 = vunpack.c.l.b16 %v2450
    %v2756 = vunpack.c.h.b16 %v2450
    %v2757 = vunpack.c.l.b16 %v2451
    %v2758 = vunpack.c.h.b16 %v2451
    %v2759 = vunpack.c.l.b16 %v2452
    %v2760 = vunpack.c.h.b16 %v2452
    %v2761 = vunpack.c.l.b16 %v2453
    %v2762 = vunpack.c.h.b16 %v2453
    %v2763 = vunpack.c.l.b16 %v2454
    %v2764 = vunpack.c.h.b16 %v2454
    %v2765 = vunpack.c.l.b16 %v2455
    %v2766 = vunpack.c.h.b16 %v2455
    %v2767 = vunpack.c.l.b16 %v2456
    %v2768 = vunpack.c.h.b16 %v2456
    %v2769 = vunpack.c.l.b16 %v2457
    %v2770 = vunpack.c.h.b16 %v2457
    %v2771 = vunpack.c.l.b16 %v2458
    %v2772 = vunpack.c.h.b16 %v2458
    %v2773 = vunpack.c.l.b16 %v2459
    %v2774 = vunpack.c.h.b16 %v2459
    %v2775 = vunpack.c.l.b16 %v2460
    %v2776 = vunpack.c.h.b16 %v2460
    %v2777 = vunpack.c.l.b16 %v2461
    %v2778 = vunpack.c.h.b16 %v2461
    %v2779 = vunpack.c.l.b16 %v2462
    %v2780 = vunpack.c.h.b16 %v2462
    %v2781 = vunpack.c.l.b16 %v2463
    %v2782 = vunpack.c.h.b16 %v2463
    %v2783 = vunpack.c.l.b16 %v2464
    %v2784 = vunpack.c.h.b16 %v2464
    %v2785 = vunpack.c.l.b16 %v2465
    %v2786 = vunpack.c.h.b16 %v2465
    %v2787 = vunpack.c.l.b16 %v2466
    %v2788 = vunpack.c.h.b16 %v2466
    %v2789 = vunpack.c.l.b16 %v2467
    %v2790 = vunpack.c.h.b16 %v2467
    %v2791 = vunpack.c.l.b16 %v2468
    %v2792 = vunpack.c.h.b16 %v2468
    %v2793 = vunpack.c.l.b16 %v2469
    %v2794 = vunpack.c.h.b16 %v2469
    %v2795 = vunpack.c.l.b16 %v2470
    %v2796 = vunpack.c.h.b16 %v2470
    %v2797 = vunpack.c.l.b16 %v2471
    %v2798 = vunpack.c.h.b16 %v2471
    %v2799 = vunpack.c.l.b16 %v2472
    %v2800 = vunpack.c.h.b16 %v2472
    %v2801 = vunpack.c.l.b16 %v2473
    %v2802 = vunpack.c.h.b16 %v2473
    %v2803 = vunpack.c.l.b16 %v2474
    %v2804 = vunpack.c.h.b16 %v2474
    %v2805 = vunpack.c.l.b16 %v2475
    %v2806 = vunpack.c.h.b16 %v2475
    %v2807 = vunpack.c.l.b16 %v2476
    %v2808 = vunpack.c.h.b16 %v2476
    %v2809 = vunpack.c.l.b16 %v2477
    %v2810 = vunpack.c.h.b16 %v2477
    %v2811 = vunpack.c.l.b16 %v2478
    %v2812 = vunpack.c.h.b16 %v2478
    %v2813 = vunpack.c.l.b16 %v2479
    %v2814 = vunpack.c.h.b16 %v2479
    %v2815 = vunpack.c.l.b16 %v2480
    %v2816 = vunpack.c.h.b16 %v2480
    %v2817 = vunpack.c.l.b16 %v2481
    %v2818 = vunpack.c.h.b16 %v2481
    %v2819 = vunpack.c.l.b16 %v2482
    %v2820 = vunpack.c.h.b16 %v2482
    %v2821 = vunpack.c.l.b16 %v2483
    %v2822 = vunpack.c.h.b16 %v2483
    %v2823 = vunpack.c.l.b16 %v2484
    %v2824 = vunpack.c.h.b16 %v2484
    %v2825 = vunpack.c.l.b16 %v2485
    %v2826 = vunpack.c.h.b16 %v2485
    %v2827 = vunpack.c.l.b16 %v2486
    %v2828 = vunpack.c.h.b16 %v2486
    %v2829 = vunpack.c.l.b16 %v2487
    %v2830 = vunpack.c.h.b16 %v2487
    %v2831 = vunpack.c.l.b16 %v2488
    %v2832 = vunpack.c.h.b16 %v2488
    %v2833 = vunpack.c.l.b16 %v2489
    %v2834 = vunpack.c.h.b16 %v2489
    %v2835 = vunpack.c.l.b16 %v2490
    %v2836 = vunpack.c.h.b16 %v2490
    %v2837 = vunpack.c.l.b16 %v2491
    %v2838 = vunpack.c.h.b16 %v2491
    %v2839 = vunpack.c.l.b16 %v2492
    %v2840 = vunpack.c.h.b16 %v2492
    %v2841 = vunpack.c.l.b16 %v2493
    %v2842 = vunpack.c.h.b16 %v2493
    %v2843 = vunpack.c.l.b16 %v2494
    %v2844 = vunpack.c.h.b16 %v2494
    %v2845 = vunpack.c.l.b16 %v2495
    %v2846 = vunpack.c.h.b16 %v2495
    %v2847 = vunpack.c.l.b16 %v2496
    %v2848 = vunpack.c.h.b16 %v2496
    %v2849 = vunpack.c.l.b16 %v2497
    %v2850 = vunpack.c.h.b16 %v2497
    %v2851 = vunpack.c.l.b16 %v2498
    %v2852 = vunpack.c.h.b16 %v2498
    %v2853 = vunpack.c.l.b16 %v2499
    %v2854 = vunpack.c.h.b16 %v2499
    %v2855 = vunpack.c.l.b16 %v2500
    %v2856 = vunpack.c.h.b16 %v2500
    %v2857 = vunpack.c.l.b16 %v2501
    %v2858 = vunpack.c.h.b16 %v2501
    %v2859 = vunpack.c.l.b16 %v2502
    %v2860 = vunpack.c.h.b16 %v2502
    %v2861 = vunpack.c.l.b16 %v2503
    %v2862 = vunpack.c.h.b16 %v2503
    %v2863 = vunpack.c.l.b16 %v2504
    %v2864 = vunpack.c.h.b16 %v2504
    %v2865 = vunpack.c.l.b16 %v2505
    %v2866 = vunpack.c.h.b16 %v2505
    %v2867 = vunpack.c.l.b16 %v2506
    %v2868 = vunpack.c.h.b16 %v2506
    %v2869 = vunpack.c.l.b16 %v2507
    %v2870 = vunpack.c.h.b16 %v2507
    %v2871 = vunpack.c.l.b16 %v2508
    %v2872 = vunpack.c.h.b16 %v2508
    %v2873 = vunpack.c.l.b16 %v2509
    %v2874 = vunpack.c.h.b16 %v2509
    %v2875 = vunpack.c.l.b16 %v2510
    %v2876 = vunpack.c.h.b16 %v2510
    %v2877 = vunpack.c.l.b16 %v2511
    %v2878 = vunpack.c.h.b16 %v2511
    %v2879 = vunpack.c.l.b16 %v2512
    %v2880 = vunpack.c.h.b16 %v2512
    %v2881 = vunpack.c.l.b16 %v2513
    %v2882 = vunpack.c.h.b16 %v2513
    %v2883 = vunpack.c.l.b16 %v2514
    %v2884 = vunpack.c.h.b16 %v2514
    %v2885 = vunpack.c.l.b16 %v2515
    %v2886 = vunpack.c.h.b16 %v2515
    %v2887 = vunpack.c.l.b16 %v2516
    %v2888 = vunpack.c.h.b16 %v2516
    %v2889 = vunpack.c.l.b16 %v2517
    %v2890 = vunpack.c.h.b16 %v2517
    %v2891 = vunpack.c.l.b16 %v2518
    %v2892 = vunpack.c.h.b16 %v2518
    %v2893 = vunpack.c.l.b16 %v2519
    %v2894 = vunpack.c.h.b16 %v2519
    %v2895 = vunpack.c.l.b16 %v2520
    %v2896 = vunpack.c.h.b16 %v2520
    %v2897 = vunpack.c.l.b16 %v2521
    %v2898 = vunpack.c.h.b16 %v2521
    %v2899 = vunpack.c.l.b16 %v2522
    %v2900 = vunpack.c.h.b16 %v2522
    %v2901 = vunpack.c.l.b16 %v2523
    %v2902 = vunpack.c.h.b16 %v2523
    %v2903 = vunpack.c.l.b16 %v2524
    %v2904 = vunpack.c.h.b16 %v2524
    %v2905 = vunpack.c.l.b16 %v2525
    %v2906 = vunpack.c.h.b16 %v2525
    %v2907 = vunpack.c.l.b16 %v2526
    %v2908 = vunpack.c.h.b16 %v2526
    %v2909 = vunpack.c.l.b16 %v2527
    %v2910 = vunpack.c.h.b16 %v2527
    %v2911 = vunpack.c.l.b16 %v2528
    %v2912 = vunpack.c.h.b16 %v2528
    %v2913 = vunpack.c.l.b16 %v2529
    %v2914 = vunpack.c.h.b16 %v2529
    %v2915 = vunpack.c.l.b16 %v2530
    %v2916 = vunpack.c.h.b16 %v2530
    %v2917 = vunpack.c.l.b16 %v2531
    %v2918 = vunpack.c.h.b16 %v2531
    %v2919 = vunpack.c.l.b16 %v2532
    %v2920 = vunpack.c.h.b16 %v2532
    %v2921 = vunpack.c.l.b16 %v2533
    %v2922 = vunpack.c.h.b16 %v2533
    %v2923 = vunpack.c.l.b16 %v2534
    %v2924 = vunpack.c.h.b16 %v2534
    %v2925 = vunpack.c.l.b16 %v2535
    %v2926 = vunpack.c.h.b16 %v2535
    %v2927 = vunpack.c.l.b16 %v2536
    %v2928 = vunpack.c.h.b16 %v2536
    %v2929 = vunpack.c.l.b16 %v2537
    %v2930 = vunpack.c.h.b16 %v2537
    %v2931 = vunpack.c.l.b16 %v2538
    %v2932 = vunpack.c.h.b16 %v2538
    %v2933 = vunpack.c.l.b16 %v2539
    %v2934 = vunpack.c.h.b16 %v2539
    %v2935 = vunpack.c.l.b16 %v2540
    %v2936 = vunpack.c.h.b16 %v2540
    %v2937 = vpack.c.b16 %v2683, %v2681
    %v2938 = vpack.c.b16 %v2684, %v2682
    %v2939 = vpack.c.b16 %v2687, %v2685
    %v2940 = vpack.c.b16 %v2688, %v2686
    %v2941 = vpack.c.b16 %v2691, %v2689
    %v2942 = vpack.c.b16 %v2692, %v2690
    %v2943 = vpack.c.b16 %v2695, %v2693
    %v2944 = vpack.c.b16 %v2696, %v2694
    %v2945 = vpack.c.b16 %v2699, %v2697
    %v2946 = vpack.c.b16 %v2700, %v2698
    %v2947 = vpack.c.b16 %v2703, %v2701
    %v2948 = vpack.c.b16 %v2704, %v2702
    %v2949 = vpack.c.b16 %v2707, %v2705
    %v2950 = vpack.c.b16 %v2708, %v2706
    %v2951 = vpack.c.b16 %v2711, %v2709
    %v2952 = vpack.c.b16 %v2712, %v2710
    %v2953 = vpack.c.b16 %v2715, %v2713
    %v2954 = vpack.c.b16 %v2716, %v2714
    %v2955 = vpack.c.b16 %v2719, %v2717
    %v2956 = vpack.c.b16 %v2720, %v2718
    %v2957 = vpack.c.b16 %v2723, %v2721
    %v2958 = vpack.c.b16 %v2724, %v2722
    %v2959 = vpack.c.b16 %v2727, %v2725
    %v2960 = vpack.c.b16 %v2728, %v2726
    %v2961 = vpack.c.b16 %v2731, %v2729
    %v2962 = vpack.c.b16 %v2732, %v2730
    %v2963 = vpack.c.b16 %v2735, %v2733
    %v2964 = vpack.c.b16 %v2736, %v2734
    %v2965 = vpack.c.b16 %v2739, %v2737
    %v2966 = vpack.c.b16 %v2740, %v2738
    %v2967 = vpack.c.b16 %v2743, %v2741
    %v2968 = vpack.c.b16 %v2744, %v2742
    %v2969 = vpack.c.b16 %v2747, %v2745
    %v2970 = vpack.c.b16 %v2748, %v2746
    %v2971 = vpack.c.b16 %v2751, %v2749
    %v2972 = vpack.c.b16 %v2752, %v2750
    %v2973 = vpack.c.b16 %v2755, %v2753
    %v2974 = vpack.c.b16 %v2756, %v2754
    %v2975 = vpack.c.b16 %v2759, %v2757
    %v2976 = vpack.c.b16 %v2760, %v2758
    %v2977 = vpack.c.b16 %v2763, %v2761
    %v2978 = vpack.c.b16 %v2764, %v2762
    %v2979 = vpack.c.b16 %v2767, %v2765
    %v2980 = vpack.c.b16 %v2768, %v2766
    %v2981 = vpack.c.b16 %v2771, %v2769
    %v2982 = vpack.c.b16 %v2772, %v2770
    %v2983 = vpack.c.b16 %v2775, %v2773
    %v2984 = vpack.c.b16 %v2776, %v2774
    %v2985 = vpack.c.b16 %v2779, %v2777
    %v2986 = vpack.c.b16 %v2780, %v2778
    %v2987 = vpack.c.b16 %v2783, %v2781
    %v2988 = vpack.c.b16 %v2784, %v2782
    %v2989 = vpack.c.b16 %v2787, %v2785
    %v2990 = vpack.c.b16 %v2788, %v2786
    %v2991 = vpack.c.b16 %v2791, %v2789
    %v2992 = vpack.c.b16 %v2792, %v2790
    %v2993 = vpack.c.b16 %v2795, %v2793
    %v2994 = vpack.c.b16 %v2796, %v2794
    %v2995 = vpack.c.b16 %v2799, %v2797
    %v2996 = vpack.c.b16 %v2800, %v2798
    %v2997 = vpack.c.b16 %v2803, %v2801
    %v2998 = vpack.c.b16 %v2804, %v2802
    %v2999 = vpack.c.b16 %v2807, %v2805
    %v3000 = vpack.c.b16 %v2808, %v2806
    %v3001 = vpack.c.b16 %v2811, %v2809
    %v3002 = vpack.c.b16 %v2812, %v2810
    %v3003 = vpack.c.b16 %v2815, %v2813
    %v3004 = vpack.c.b16 %v2816, %v2814
    %v3005 = vpack.c.b16 %v2819, %v2817
    %v3006 = vpack.c.b16 %v2820, %v2818
    %v3007 = vpack.c.b16 %v2823, %v2821
    %v3008 = vpack.c.b16 %v2824, %v2822
    %v3009 = vpack.c.b16 %v2827, %v2825
    %v3010 = vpack.c.b16 %v2828, %v2826
    %v3011 = vpack.c.b16 %v2831, %v2829
    %v3012 = vpack.c.b16 %v2832, %v2830
    %v3013 = vpack.c.b16 %v2835, %v2833
    %v3014 = vpack.c.b16 %v2836, %v2834
    %v3015 = vpack.c.b16 %v2839, %v2837
    %v3016 = vpack.c.b16 %v2840, %v2838
    %v3017 = vpack.c.b16 %v2843, %v2841
    %v3018 = vpack.c.b16 %v2844, %v2842
    %v3019 = vpack.c.b16 %v2847, %v2845
    %v3020 = vpack.c.b16 %v2848, %v2846
    %v3021 = vpack.c.b16 %v2851, %v2849
    %v3022 = vpack.c.b16 %v2852, %v2850
    %v3023 = vpack.c.b16 %v2855, %v2853
    %v3024 = vpack.c.b16 %v2856, %v2854
    %v3025 = vpack.c.b16 %v2859, %v2857
    %v3026 = vpack.c.b16 %v2860, %v2858
    %v3027 = vpack.c.b16 %v2863, %v2861
    %v3028 = vpack.c.b16 %v2864, %v2862
    %v3029 = vpack.c.b16 %v2867, %v2865
    %v3030 = vpack.c.b16 %v2868, %v2866
    %v3031 = vpack.c.b16 %v2871, %v2869
    %v3032 = vpack.c.b16 %v2872, %v2870
    %v3033 = vpack.c.b16 %v2875, %v2873
    %v3034 = vpack.c.b16 %v2876, %v2874
    %v3035 = vpack.c.b16 %v2879, %v2877
    %v3036 = vpack.c.b16 %v2880, %v2878
    %v3037 = vpack.c.b16 %v2883, %v2881
    %v3038 = vpack.c.b16 %v2884, %v2882
    %v3039 = vpack.c.b16 %v2887, %v2885
    %v3040 = vpack.c.b16 %v2888, %v2886
    %v3041 = vpack.c.b16 %v2891, %v2889
    %v3042 = vpack.c.b16 %v2892, %v2890
    %v3043 = vpack.c.b16 %v2895, %v2893
    %v3044 = vpack.c.b16 %v2896, %v2894
    %v3045 = vpack.c.b16 %v2899, %v2897
    %v3046 = vpack.c.b16 %v2900, %v2898
    %v3047 = vpack.c.b16 %v2903, %v2901
    %v3048 = vpack.c.b16 %v2904, %v2902
    %v3049 = vpack.c.b16 %v2907, %v2905
    %v3050 = vpack.c.b16 %v2908, %v2906
    %v3051 = vpack.c.b16 %v2911, %v2909
    %v3052 = vpack.c.b16 %v2912, %v2910
    %v3053 = vpack.c.b16 %v2915, %v2913
    %v3054 = vpack.c.b16 %v2916, %v2914
    %v3055 = vpack.c.b16 %v2919, %v2917
    %v3056 = vpack.c.b16 %v2920, %v2918
    %v3057 = vpack.c.b16 %v2923, %v2921
    %v3058 = vpack.c.b16 %v2924, %v2922
    %v3059 = vpack.c.b16 %v2927, %v2925
    %v3060 = vpack.c.b16 %v2928, %v2926
    %v3061 = vpack.c.b16 %v2931, %v2929
    %v3062 = vpack.c.b16 %v2932, %v2930
    %v3063 = vpack.c.b16 %v2935, %v2933
    %v3064 = vpack.c.b16 %v2936, %v2934
    %3193 = vmatprep.subr.bf16.mxu0 %v2952
    %3194 = vmatpush1.bf16.msra.mxu0 %v2951
    %3195 = vmatprep.subr.bf16.mxu0 %v2950
    %3196 = vmatpush1.bf16.msra.mxu0 %v2949
    %3197 = vmatprep.subr.bf16.mxu0 %v2948
    %3198 = vmatpush1.bf16.msra.mxu0 %v2947
    %3199 = vmatprep.subr.bf16.mxu0 %v2946
    %3200 = vmatpush1.bf16.msra.mxu0 %v2945
    %3201 = vmatprep.subr.bf16.mxu0 %v2944
    %3202 = vmatpush1.bf16.msra.mxu0 %v2943
    %3203 = vmatprep.subr.bf16.mxu0 %v2942
    %3204 = vmatpush1.bf16.msra.mxu0 %v2941
    %3205 = vmatprep.subr.bf16.mxu0 %v2940
    %3206 = vmatpush1.bf16.msra.mxu0 %v2939
    %3207 = vmatprep.subr.bf16.mxu0 %v2938
    %3208 = vmatpush1.bf16.msra.mxu0 %v2937
    %3209 = vmatprep.subr.bf16.mxu0 %v2968
    %3210 = vmatpush2.bf16.msra.mxu0 %v2967
    %3211 = vmatprep.subr.bf16.mxu0 %v2966
    %3212 = vmatpush2.bf16.msra.mxu0 %v2965
    %3213 = vmatprep.subr.bf16.mxu0 %v2964
    %3214 = vmatpush2.bf16.msra.mxu0 %v2963
    %3215 = vmatprep.subr.bf16.mxu0 %v2962
    %3216 = vmatpush2.bf16.msra.mxu0 %v2961
    %3217 = vmatprep.subr.bf16.mxu0 %v2960
    %3218 = vmatpush2.bf16.msra.mxu0 %v2959
    %3219 = vmatprep.subr.bf16.mxu0 %v2958
    %3220 = vmatpush2.bf16.msra.mxu0 %v2957
    %3221 = vmatprep.subr.bf16.mxu0 %v2956
    %3222 = vmatpush2.bf16.msra.mxu0 %v2955
    %3223 = vmatprep.subr.bf16.mxu0 %v2954
    %3224 = vmatpush2.bf16.msra.mxu0 %v2953
    %3225 = vmatprep.mubr.bf16.mxu0 %v2398
    %3226 = vmatmul.mubr.bf16.gmra.mxu0 %v2397
    %v3227 = vpop.f32.mrf.mxu0
    %v3228 = vadd.f32 %v2546, %v3227
    %v3229 = vpop.f32.mrf.mxu0
    %v3230 = vadd.f32 %v2550, %v3229
    %v3231 = vpop.f32.mrf.mxu0
    %v3232 = vadd.f32 %v2546, %v3231
    %v3233 = vpop.f32.mrf.mxu0
    %v3234 = vadd.f32 %v2550, %v3233
    %3235 = vmatprep.mubr.bf16.mxu0 %v2406
    %3236 = vmatmul.mubr.bf16.gmra.mxu0 %v2405
    %v3237 = vpop.f32.mrf.mxu0
    %v3238 = vadd.f32 %v2546, %v3237
    %v3239 = vpop.f32.mrf.mxu0
    %v3240 = vadd.f32 %v2550, %v3239
    %v3241 = vpop.f32.mrf.mxu0
    %v3242 = vadd.f32 %v2546, %v3241
    %v3243 = vpop.f32.mrf.mxu0
    %v3244 = vadd.f32 %v2550, %v3243
    %3245 = vdwg.mxu0
    %3246 = vmatprep.subr.bf16.mxu0 %v2984
    %3247 = vmatpush1.bf16.msra.mxu0 %v2983
    %3248 = vmatprep.subr.bf16.mxu0 %v2982
    %3249 = vmatpush1.bf16.msra.mxu0 %v2981
    %3250 = vmatprep.subr.bf16.mxu0 %v2980
    %3251 = vmatpush1.bf16.msra.mxu0 %v2979
    %3252 = vmatprep.subr.bf16.mxu0 %v2978
    %3253 = vmatpush1.bf16.msra.mxu0 %v2977
    %3254 = vmatprep.subr.bf16.mxu0 %v2976
    %3255 = vmatpush1.bf16.msra.mxu0 %v2975
    %3256 = vmatprep.subr.bf16.mxu0 %v2974
    %3257 = vmatpush1.bf16.msra.mxu0 %v2973
    %3258 = vmatprep.subr.bf16.mxu0 %v2972
    %3259 = vmatpush1.bf16.msra.mxu0 %v2971
    %3260 = vmatprep.subr.bf16.mxu0 %v2970
    %3261 = vmatpush1.bf16.msra.mxu0 %v2969
    %3262 = vmatprep.subr.bf16.mxu0 %v3000
    %3263 = vmatpush2.bf16.msra.mxu0 %v2999
    %3264 = vmatprep.subr.bf16.mxu0 %v2998
    %3265 = vmatpush2.bf16.msra.mxu0 %v2997
    %3266 = vmatprep.subr.bf16.mxu0 %v2996
    %3267 = vmatpush2.bf16.msra.mxu0 %v2995
    %3268 = vmatprep.subr.bf16.mxu0 %v2994
    %3269 = vmatpush2.bf16.msra.mxu0 %v2993
    %3270 = vmatprep.subr.bf16.mxu0 %v2992
    %3271 = vmatpush2.bf16.msra.mxu0 %v2991
    %3272 = vmatprep.subr.bf16.mxu0 %v2990
    %3273 = vmatpush2.bf16.msra.mxu0 %v2989
    %3274 = vmatprep.subr.bf16.mxu0 %v2988
    %3275 = vmatpush2.bf16.msra.mxu0 %v2987
    %3276 = vmatprep.subr.bf16.mxu0 %v2986
    %3277 = vmatpush2.bf16.msra.mxu0 %v2985
    %3278 = vmatprep.mubr.bf16.mxu0 %v2400
    %3279 = vmatmul.mubr.bf16.gmra.mxu0 %v2399
    %v3280 = vpop.f32.mrf.mxu0
    %v3281 = vadd.f32 %v3228, %v3280
    %v3282 = vpop.f32.mrf.mxu0
    %v3283 = vadd.f32 %v3230, %v3282
    %v3284 = vpop.f32.mrf.mxu0
    %v3285 = vadd.f32 %v3232, %v3284
    %v3286 = vpop.f32.mrf.mxu0
    %v3287 = vadd.f32 %v3234, %v3286
    %3288 = vmatprep.mubr.bf16.mxu0 %v2408
    %3289 = vmatmul.mubr.bf16.gmra.mxu0 %v2407
    %v3290 = vpop.f32.mrf.mxu0
    %v3291 = vadd.f32 %v3238, %v3290
    %v3292 = vpop.f32.mrf.mxu0
    %v3293 = vadd.f32 %v3240, %v3292
    %v3294 = vpop.f32.mrf.mxu0
    %v3295 = vadd.f32 %v3242, %v3294
    %v3296 = vpop.f32.mrf.mxu0
    %v3297 = vadd.f32 %v3244, %v3296
    %3298 = vdwg.mxu0
    %3299 = vmatprep.subr.bf16.mxu0 %v3016
    %3300 = vmatpush1.bf16.msra.mxu0 %v3015
    %3301 = vmatprep.subr.bf16.mxu0 %v3014
    %3302 = vmatpush1.bf16.msra.mxu0 %v3013
    %3303 = vmatprep.subr.bf16.mxu0 %v3012
    %3304 = vmatpush1.bf16.msra.mxu0 %v3011
    %3305 = vmatprep.subr.bf16.mxu0 %v3010
    %3306 = vmatpush1.bf16.msra.mxu0 %v3009
    %3307 = vmatprep.subr.bf16.mxu0 %v3008
    %3308 = vmatpush1.bf16.msra.mxu0 %v3007
    %3309 = vmatprep.subr.bf16.mxu0 %v3006
    %3310 = vmatpush1.bf16.msra.mxu0 %v3005
    %3311 = vmatprep.subr.bf16.mxu0 %v3004
    %3312 = vmatpush1.bf16.msra.mxu0 %v3003
    %3313 = vmatprep.subr.bf16.mxu0 %v3002
    %3314 = vmatpush1.bf16.msra.mxu0 %v3001
    %3315 = vmatprep.subr.bf16.mxu0 %v3032
    %3316 = vmatpush2.bf16.msra.mxu0 %v3031
    %3317 = vmatprep.subr.bf16.mxu0 %v3030
    %3318 = vmatpush2.bf16.msra.mxu0 %v3029
    %3319 = vmatprep.subr.bf16.mxu0 %v3028
    %3320 = vmatpush2.bf16.msra.mxu0 %v3027
    %3321 = vmatprep.subr.bf16.mxu0 %v3026
    %3322 = vmatpush2.bf16.msra.mxu0 %v3025
    %3323 = vmatprep.subr.bf16.mxu0 %v3024
    %3324 = vmatpush2.bf16.msra.mxu0 %v3023
    %3325 = vmatprep.subr.bf16.mxu0 %v3022
    %3326 = vmatpush2.bf16.msra.mxu0 %v3021
    %3327 = vmatprep.subr.bf16.mxu0 %v3020
    %3328 = vmatpush2.bf16.msra.mxu0 %v3019
    %3329 = vmatprep.subr.bf16.mxu0 %v3018
    %3330 = vmatpush2.bf16.msra.mxu0 %v3017
    %3331 = vmatprep.mubr.bf16.mxu0 %v2402
    %3332 = vmatmul.mubr.bf16.gmra.mxu0 %v2401
    %v3333 = vpop.f32.mrf.mxu0
    %v3334 = vadd.f32 %v3281, %v3333
    %v3335 = vpop.f32.mrf.mxu0
    %v3336 = vadd.f32 %v3283, %v3335
    %v3337 = vpop.f32.mrf.mxu0
    %v3338 = vadd.f32 %v3285, %v3337
    %v3339 = vpop.f32.mrf.mxu0
    %v3340 = vadd.f32 %v3287, %v3339
    %3341 = vmatprep.mubr.bf16.mxu0 %v2410
    %3342 = vmatmul.mubr.bf16.gmra.mxu0 %v2409
    %v3343 = vpop.f32.mrf.mxu0
    %v3344 = vadd.f32 %v3291, %v3343
    %v3345 = vpop.f32.mrf.mxu0
    %v3346 = vadd.f32 %v3293, %v3345
    %v3347 = vpop.f32.mrf.mxu0
    %v3348 = vadd.f32 %v3295, %v3347
    %v3349 = vpop.f32.mrf.mxu0
    %v3350 = vadd.f32 %v3297, %v3349
    %3351 = vdwg.mxu0
    %3352 = vmatprep.subr.bf16.mxu0 %v3048
    %3353 = vmatpush1.bf16.msra.mxu0 %v3047
    %3354 = vmatprep.subr.bf16.mxu0 %v3046
    %3355 = vmatpush1.bf16.msra.mxu0 %v3045
    %3356 = vmatprep.subr.bf16.mxu0 %v3044
    %3357 = vmatpush1.bf16.msra.mxu0 %v3043
    %3358 = vmatprep.subr.bf16.mxu0 %v3042
    %3359 = vmatpush1.bf16.msra.mxu0 %v3041
    %3360 = vmatprep.subr.bf16.mxu0 %v3040
    %3361 = vmatpush1.bf16.msra.mxu0 %v3039
    %3362 = vmatprep.subr.bf16.mxu0 %v3038
    %3363 = vmatpush1.bf16.msra.mxu0 %v3037
    %3364 = vmatprep.subr.bf16.mxu0 %v3036
    %3365 = vmatpush1.bf16.msra.mxu0 %v3035
    %3366 = vmatprep.subr.bf16.mxu0 %v3034
    %3367 = vmatpush1.bf16.msra.mxu0 %v3033
    %3368 = vmatprep.subr.bf16.mxu0 %v3064
    %3369 = vmatpush2.bf16.msra.mxu0 %v3063
    %3370 = vmatprep.subr.bf16.mxu0 %v3062
    %3371 = vmatpush2.bf16.msra.mxu0 %v3061
    %3372 = vmatprep.subr.bf16.mxu0 %v3060
    %3373 = vmatpush2.bf16.msra.mxu0 %v3059
    %3374 = vmatprep.subr.bf16.mxu0 %v3058
    %3375 = vmatpush2.bf16.msra.mxu0 %v3057
    %3376 = vmatprep.subr.bf16.mxu0 %v3056
    %3377 = vmatpush2.bf16.msra.mxu0 %v3055
    %3378 = vmatprep.subr.bf16.mxu0 %v3054
    %3379 = vmatpush2.bf16.msra.mxu0 %v3053
    %3380 = vmatprep.subr.bf16.mxu0 %v3052
    %3381 = vmatpush2.bf16.msra.mxu0 %v3051
    %3382 = vmatprep.subr.bf16.mxu0 %v3050
    %3383 = vmatpush2.bf16.msra.mxu0 %v3049
    %3384 = vmatprep.mubr.bf16.mxu0 %v2404
    %3385 = vmatmul.mubr.bf16.gmra.mxu0 %v2403
    %v3386 = vpop.f32.mrf.mxu0
    %v3387 = vadd.f32 %v3334, %v3386
    %v3388 = vpop.f32.mrf.mxu0
    %v3389 = vadd.f32 %v3336, %v3388
    %v3390 = vpop.f32.mrf.mxu0
    %v3391 = vadd.f32 %v3338, %v3390
    %v3392 = vpop.f32.mrf.mxu0
    %v3393 = vadd.f32 %v3340, %v3392
    %3394 = vmatprep.mubr.bf16.mxu0 %v2412
    %3395 = vmatmul.mubr.bf16.gmra.mxu0 %v2411
    %v3396 = vpop.f32.mrf.mxu0
    %v3397 = vadd.f32 %v3344, %v3396
    %v3398 = vpop.f32.mrf.mxu0
    %v3399 = vadd.f32 %v3346, %v3398
    %v3400 = vpop.f32.mrf.mxu0
    %v3401 = vadd.f32 %v3348, %v3400
    %v3402 = vpop.f32.mrf.mxu0
    %v3403 = vadd.f32 %v3350, %v3402
    %3404 = vdwg.mxu0
    %vm3405 = vcmask 523264
    %v3406 = vsel %vm3405, %v3387, -inf
    %3407 = vmax.xlane.f32.xlu0 %v3406
    %v3408 = vpop.xlane.xlu0 %3407
    %v3409 = vsel %vm3405, %v3391, -inf
    %3410 = vmax.xlane.f32.xlu0 %v3409
    %v3411 = vpop.xlane.xlu0 %3410
    %v3412 = vsel %vm3405, %v3397, -inf
    %3413 = vmax.xlane.f32.xlu0 %v3412
    %v3414 = vpop.xlane.xlu0 %3413
    %v3415 = vsel %vm3405, %v3401, -inf
    %3416 = vmax.xlane.f32.xlu0 %v3415
    %v3417 = vpop.xlane.xlu0 %3416
    %v3418 = vsub.f32 %v3387, %v3408
    %v3419 = vsub.f32 %v3391, %v3411
    %v3420 = vsub.f32 %v3397, %v3414
    %v3421 = vsub.f32 %v3401, %v3417
    %v3422 = vmul.f32 %v3418, 1.442695
    %v3423 = vpow.pop %v3422
    %v3424 = vmul.f32 %v3419, 1.442695
    %v3425 = vpow.pop %v3424
    %v3426 = vmul.f32 %v3420, 1.442695
    %v3427 = vpow.pop %v3426
    %v3428 = vmul.f32 %v3421, 1.442695
    %v3429 = vpow.pop %v3428
    %v3430 = vsel %vm3405, %v3423, 0.0
    %3431 = vadd.xlane.f32.xlu0 %v3430
    %v3432 = vpop.xlane.xlu0 %3431
    %v3433 = vsel %vm3405, %v3425, 0.0
    %3434 = vadd.xlane.f32.xlu0 %v3433
    %v3435 = vpop.xlane.xlu0 %3434
    %v3436 = vsel %vm3405, %v3427, 0.0
    %3437 = vadd.xlane.f32.xlu0 %v3436
    %v3438 = vpop.xlane.xlu0 %3437
    %v3439 = vsel %vm3405, %v3429, 0.0
    %3440 = vadd.xlane.f32.xlu0 %v3439
    %v3441 = vpop.xlane.xlu0 %3440
    %v3442 = vrcp.pop %v3432
    %v3443 = vrcp.pop %v3435
    %v3444 = vrcp.pop %v3438
    %v3445 = vrcp.pop %v3441
    %v3446 = vmul.f32 %v3423, %v3442
    %v3447 = vmul.f32 %v3425, %v3443
    %v3448 = vmul.f32 %v3427, %v3444
    %v3449 = vmul.f32 %v3429, %v3445
    %vm3450 = vcmask 1048064
    %v3451 = vsel %vm3450, %v3387, -inf
    %3452 = vmax.xlane.f32.xlu0 %v3451
    %v3453 = vpop.xlane.xlu0 %3452
    %v3454 = vsel %vm3450, %v3391, -inf
    %3455 = vmax.xlane.f32.xlu0 %v3454
    %v3456 = vpop.xlane.xlu0 %3455
    %v3457 = vsel %vm3450, %v3397, -inf
    %3458 = vmax.xlane.f32.xlu0 %v3457
    %v3459 = vpop.xlane.xlu0 %3458
    %v3460 = vsel %vm3450, %v3401, -inf
    %3461 = vmax.xlane.f32.xlu0 %v3460
    %v3462 = vpop.xlane.xlu0 %3461
    %v3463 = vsub.f32 %v3387, %v3453
    %v3464 = vsub.f32 %v3391, %v3456
    %v3465 = vsub.f32 %v3397, %v3459
    %v3466 = vsub.f32 %v3401, %v3462
    %v3467 = vmul.f32 %v3463, 1.442695
    %v3468 = vpow.pop %v3467
    %v3469 = vmul.f32 %v3464, 1.442695
    %v3470 = vpow.pop %v3469
    %v3471 = vmul.f32 %v3465, 1.442695
    %v3472 = vpow.pop %v3471
    %v3473 = vmul.f32 %v3466, 1.442695
    %v3474 = vpow.pop %v3473
    %3479 = vrot.lane.b32.xlu0 %v3468, 64
    %v3480 = vpop.permute.xlu0 %3479
    %3481 = vrot.lane.b32.xlu0 %v3470, 64
    %v3482 = vpop.permute.xlu0 %3481
    %3483 = vrot.lane.b32.xlu0 %v3472, 64
    %v3484 = vpop.permute.xlu0 %3483
    %3485 = vrot.lane.b32.xlu0 %v3474, 64
    %v3486 = vpop.permute.xlu0 %3485
    %v3491 = vsel %vm3405, %v3480, 0.0
    %3492 = vadd.xlane.f32.xlu0 %v3491
    %v3493 = vpop.xlane.xlu0 %3492
    %v3494 = vsel %vm3405, %v3482, 0.0
    %3495 = vadd.xlane.f32.xlu0 %v3494
    %v3496 = vpop.xlane.xlu0 %3495
    %v3497 = vsel %vm3405, %v3484, 0.0
    %3498 = vadd.xlane.f32.xlu0 %v3497
    %v3499 = vpop.xlane.xlu0 %3498
    %v3500 = vsel %vm3405, %v3486, 0.0
    %3501 = vadd.xlane.f32.xlu0 %v3500
    %v3502 = vpop.xlane.xlu0 %3501
    %v3503 = vrcp.pop %v3493
    %v3504 = vrcp.pop %v3496
    %v3505 = vrcp.pop %v3499
    %v3506 = vrcp.pop %v3502
    %v3507 = vmul.f32 %v3468, %v3503
    %v3508 = vmul.f32 %v3470, %v3504
    %v3509 = vmul.f32 %v3472, %v3505
    %v3510 = vmul.f32 %v3474, %v3506
    %v3511 = vsel %vm3405, %v3389, -inf
    %3512 = vmax.xlane.f32.xlu0 %v3511
    %v3513 = vpop.xlane.xlu0 %3512
    %v3514 = vsel %vm3405, %v3393, -inf
    %3515 = vmax.xlane.f32.xlu0 %v3514
    %v3516 = vpop.xlane.xlu0 %3515
    %v3517 = vsel %vm3405, %v3399, -inf
    %3518 = vmax.xlane.f32.xlu0 %v3517
    %v3519 = vpop.xlane.xlu0 %3518
    %v3520 = vsel %vm3405, %v3403, -inf
    %3521 = vmax.xlane.f32.xlu0 %v3520
    %v3522 = vpop.xlane.xlu0 %3521
    %v3523 = vsub.f32 %v3389, %v3513
    %v3524 = vsub.f32 %v3393, %v3516
    %v3525 = vsub.f32 %v3399, %v3519
    %v3526 = vsub.f32 %v3403, %v3522
    %v3527 = vmul.f32 %v3523, 1.442695
    %v3528 = vpow.pop %v3527
    %v3529 = vmul.f32 %v3524, 1.442695
    %v3530 = vpow.pop %v3529
    %v3531 = vmul.f32 %v3525, 1.442695
    %v3532 = vpow.pop %v3531
    %v3533 = vmul.f32 %v3526, 1.442695
    %v3534 = vpow.pop %v3533
    %v3535 = vsel %vm3405, %v3528, 0.0
    %3536 = vadd.xlane.f32.xlu0 %v3535
    %v3537 = vpop.xlane.xlu0 %3536
    %v3538 = vsel %vm3405, %v3530, 0.0
    %3539 = vadd.xlane.f32.xlu0 %v3538
    %v3540 = vpop.xlane.xlu0 %3539
    %v3541 = vsel %vm3405, %v3532, 0.0
    %3542 = vadd.xlane.f32.xlu0 %v3541
    %v3543 = vpop.xlane.xlu0 %3542
    %v3544 = vsel %vm3405, %v3534, 0.0
    %3545 = vadd.xlane.f32.xlu0 %v3544
    %v3546 = vpop.xlane.xlu0 %3545
    %v3547 = vrcp.pop %v3537
    %v3548 = vrcp.pop %v3540
    %v3549 = vrcp.pop %v3543
    %v3550 = vrcp.pop %v3546
    %v3551 = vmul.f32 %v3528, %v3547
    %v3552 = vmul.f32 %v3530, %v3548
    %v3553 = vmul.f32 %v3532, %v3549
    %v3554 = vmul.f32 %v3534, %v3550
    %v3555 = vsel %vm3450, %v3389, -inf
    %3556 = vmax.xlane.f32.xlu0 %v3555
    %v3557 = vpop.xlane.xlu0 %3556
    %v3558 = vsel %vm3450, %v3393, -inf
    %3559 = vmax.xlane.f32.xlu0 %v3558
    %v3560 = vpop.xlane.xlu0 %3559
    %v3561 = vsel %vm3450, %v3399, -inf
    %3562 = vmax.xlane.f32.xlu0 %v3561
    %v3563 = vpop.xlane.xlu0 %3562
    %v3564 = vsel %vm3450, %v3403, -inf
    %3565 = vmax.xlane.f32.xlu0 %v3564
    %v3566 = vpop.xlane.xlu0 %3565
    %v3567 = vsub.f32 %v3389, %v3557
    %v3568 = vsub.f32 %v3393, %v3560
    %v3569 = vsub.f32 %v3399, %v3563
    %v3570 = vsub.f32 %v3403, %v3566
    %v3571 = vmul.f32 %v3567, 1.442695
    %v3572 = vpow.pop %v3571
    %v3573 = vmul.f32 %v3568, 1.442695
    %v3574 = vpow.pop %v3573
    %v3575 = vmul.f32 %v3569, 1.442695
    %v3576 = vpow.pop %v3575
    %v3577 = vmul.f32 %v3570, 1.442695
    %v3578 = vpow.pop %v3577
    %3583 = vrot.lane.b32.xlu0 %v3572, 64
    %v3584 = vpop.permute.xlu0 %3583
    %3585 = vrot.lane.b32.xlu0 %v3574, 64
    %v3586 = vpop.permute.xlu0 %3585
    %3587 = vrot.lane.b32.xlu0 %v3576, 64
    %v3588 = vpop.permute.xlu0 %3587
    %3589 = vrot.lane.b32.xlu0 %v3578, 64
    %v3590 = vpop.permute.xlu0 %3589
    %v3595 = vsel %vm3405, %v3584, 0.0
    %3596 = vadd.xlane.f32.xlu0 %v3595
    %v3597 = vpop.xlane.xlu0 %3596
    %v3598 = vsel %vm3405, %v3586, 0.0
    %3599 = vadd.xlane.f32.xlu0 %v3598
    %v3600 = vpop.xlane.xlu0 %3599
    %v3601 = vsel %vm3405, %v3588, 0.0
    %3602 = vadd.xlane.f32.xlu0 %v3601
    %v3603 = vpop.xlane.xlu0 %3602
    %v3604 = vsel %vm3405, %v3590, 0.0
    %3605 = vadd.xlane.f32.xlu0 %v3604
    %v3606 = vpop.xlane.xlu0 %3605
    %v3607 = vrcp.pop %v3597
    %v3608 = vrcp.pop %v3600
    %v3609 = vrcp.pop %v3603
    %v3610 = vrcp.pop %v3606
    %v3611 = vmul.f32 %v3572, %v3607
    %v3612 = vmul.f32 %v3574, %v3608
    %v3613 = vmul.f32 %v3576, %v3609
    %v3614 = vmul.f32 %v3578, %v3610
    %v3615 = vsel %vm3405, %v3446, %v3507
    %v3616 = vsel %vm3405, %v3447, %v3508
    %v3617 = vsel %vm3405, %v3448, %v3509
    %v3618 = vsel %vm3405, %v3449, %v3510
    %v3619 = vsel %vm3405, %v3551, %v3611
    %v3620 = vsel %vm3405, %v3552, %v3612
    %v3621 = vsel %vm3405, %v3553, %v3613
    %v3622 = vsel %vm3405, %v3554, %v3614
    %3623 = vst [vmem:[#allocation8] sm:$0xff] %v3615
    %3624 = vst [vmem:[#allocation8 + $0x8] sm:$0xff] %v3619
    %3625 = vst [vmem:[#allocation8 + $0x10] sm:$0xff] %v3616
    %3626 = vst [vmem:[#allocation8 + $0x18] sm:$0xff] %v3620
    %3627 = vst [vmem:[#allocation8 + $0x20] sm:$0xff] %v3617
    %3628 = vst [vmem:[#allocation8 + $0x28] sm:$0xff] %v3621
    %3629 = vst [vmem:[#allocation8 + $0x30] sm:$0xff] %v3618
    %3630 = vst [vmem:[#allocation8 + $0x38] sm:$0xff] %v3622
    // Predicated region
    $region42: #{tpu_custom_call.1} parent=1 // pred_check
      _
    $region43: #{tpu_custom_call.1} parent=1 // pred_check_branch
      %3632 = sbr.rel (0) target = $region45
    $region44: #{tpu_custom_call.1} parent=1 // pred_region
      %s3634 = ssub.s32 1024, 1024
      %3635 = vsyncadd [#allocation4], %s3634
      %s3636 = sshll.u32 [#allocation8], 4
      %s3637 = int_to_ptr.vmem [resolvable:$true] %s3636
      %3642 = dma.vmem_to_hbm [thread:$0]  %s3637, 1024, %s7, [#allocation4], 256, 256, 16
    $region45: #{tpu_custom_call.1} parent=1 // pred_fallthru
      _
    // Predicated region
    $region46: #{tpu_custom_call.1} parent=1 // pred_check
      _
    $region47: #{tpu_custom_call.1} parent=1 // pred_check_branch
      %3644 = sbr.rel (0) target = $region49
    $region48: #{tpu_custom_call.1} parent=1 // pred_region
      %3645 = dma.done [#allocation4], 1024
    $region49: #{tpu_custom_call.1} parent=1 // pred_fallthru
      _
    %3646 = vsyncpa [#allocation3], 1
    %3647 = vsyncpa [#allocation6], 1
    %3648 = vsyncpa [#allocation4], 1

</llo_original>
